<compile_context>
chip_gen: v5e
topology: v5e:2x2
jax: 0.10.0
libtpu: 0.0.40
codegen_flags: <defaults>
</compile_context>

<pallas_src>
import functools

import jax
import jax.numpy as jnp
from jax.experimental import pallas as pl
from jax.experimental.pallas import tpu as pltpu


# Conservative recurrence working-set budget: fits v7x's 64 MiB/TensorCore VMEM
# with headroom; v5e/v6e (128 MiB) have room to spare.
_RECURRENCE_VMEM_BUDGET = 40 * 2 ** 20


def _round_up(x, m):
    return ((x + m - 1) // m) * m


def _vmem_limit_bytes(est):
    """Explicit scoped-VMEM limit when the estimate exceeds v5e's 16 MiB default.

    Capped at 56 MiB so the request stays under v7x's 64 MiB physical VMEM.
    Returns None (compiler default) for small working sets.
    """
    if est <= 12 * 2 ** 20:
        return None
    return min(int(est * 5 // 4) + (2 << 20), 56 * 2 ** 20)


def _is_v7x():
    try:
        kind = jax.devices()[0].device_kind.lower()
    except Exception:  # pragma: no cover - defensive
        return False
    return "v7" in kind


def _pick_time_chunk(T, tc_cap, max_chunk=32):
    """Pick a time-chunk size Tc <= min(max_chunk, tc_cap) minimizing padding.

    Returns (Tc, Tp) with Tp = n_chunks * Tc >= T (tail steps are masked).
    """
    cap = max(1, min(max_chunk, tc_cap, T))
    n_chunks = -(-T // cap)
    tc = -(-T // n_chunks)
    return tc, n_chunks * tc


# ---------------------------------------------------------------------------
# Tiled matmul + bias kernel:  out = X @ W_t + b
#   X: (M, K) bf16, W_t: (K, N) bf16 (already transposed), b: (1, N) f32
# ---------------------------------------------------------------------------
def _matmul_bias_kernel(x_ref, w_ref, b_ref, o_ref, acc_ref):
    @pl.when(pl.program_id(2) == 0)
    def _():
        acc_ref[...] = jnp.zeros_like(acc_ref)

    acc_ref[...] += jnp.dot(x_ref[...], w_ref[...],
                            preferred_element_type=jnp.float32)

    @pl.when(pl.program_id(2) == pl.num_programs(2) - 1)
    def _():
        o_ref[...] = (acc_ref[...] + b_ref[...]).astype(o_ref.dtype)


def matmul_bias(x, w_t, b, *, tm=256, tn=512, tk=512, out_dtype=jnp.float32):
    M, K = x.shape
    K2, N = w_t.shape
    assert K == K2, (K, K2)

    # Sublane-multiple along M (16 for bf16 operands), lane-dense (mult of 128)
    # along N/K so output stores are unmasked full vregs.
    sub = 16 if x.dtype == jnp.bfloat16 else 8
    tm = min(tm, _round_up(M, sub))
    tn = min(tn, _round_up(N, 128))
    tk = min(tk, _round_up(K, 128))
    Mp, Np, Kp = _round_up(M, tm), _round_up(N, tn), _round_up(K, tk)

    xp = jnp.pad(x, ((0, Mp - M), (0, Kp - K))) if (Mp != M or Kp != K) else x
    wp = (jnp.pad(w_t, ((0, Kp - K), (0, Np - N)))
          if (Kp != K or Np != N) else w_t)
    bp = jnp.asarray(b, jnp.float32).reshape(1, N)
    if Np != N:
        bp = jnp.pad(bp, ((0, 0), (0, Np - N)))

    est = (2 * (tm * tk * xp.dtype.itemsize + tk * tn * wp.dtype.itemsize
                + tn * 4)
           + 2 * tm * tn * jnp.dtype(out_dtype).itemsize
           + tm * tn * 4)

    grid = (Mp // tm, Np // tn, Kp // tk)
    out = pl.pallas_call(
        _matmul_bias_kernel,
        out_shape=jax.ShapeDtypeStruct((Mp, Np), out_dtype),
        grid_spec=pltpu.PrefetchScalarGridSpec(
            num_scalar_prefetch=0,
            grid=grid,
            in_specs=[
                pl.BlockSpec((tm, tk), lambda i, j, k: (i, k)),
                pl.BlockSpec((tk, tn), lambda i, j, k: (k, j)),
                pl.BlockSpec((1, tn), lambda i, j, k: (0, j)),
            ],
            out_specs=pl.BlockSpec((tm, tn), lambda i, j, k: (i, j)),
            scratch_shapes=[pltpu.VMEM((tm, tn), jnp.float32)],
        ),
        compiler_params=pltpu.CompilerParams(
            dimension_semantics=("parallel", "parallel", "arbitrary"),
            vmem_limit_bytes=_vmem_limit_bytes(est)),
    )(xp, wp, bp)
    return out[:M, :N]


# ---------------------------------------------------------------------------
# Fused LSTM layer kernel. Per time chunk, each step does:
#   gates = x_t @ W_ih^T + h_prev @ W_hh^T + b       (bf16 MXU, f32 accumulate)
#   i,f,g,o -> c, h                                  (gate slices lane-aligned)
# Grid = (batch_split, n_time_chunks); h/c live in vregs within a chunk and in
# VMEM scratch across chunks. Tail timesteps beyond the real sequence length
# are masked so the final state matches step T-1. Gate order: [i, f, g, o].
# ---------------------------------------------------------------------------
def _lstm_layer_kernel(x_ref, w_ih_ref, w_hh_ref, b_ref, h0_ref, c0_ref,
                       y_ref, hn_ref, cn_ref,
                       h_scr, c_scr,
                       *, hp, tc, t_real, mask_tail, unroll):
    t_blk = pl.program_id(1)
    n_t = pl.num_programs(1)

    @pl.when(t_blk == 0)
    def _():
        h_scr[...] = h0_ref[...]
        c_scr[...] = c0_ref[...]

    w_ih = w_ih_ref[...]          # (I, 4*Hp)  bf16 -- constant block
    w_hh = w_hh_ref[...]          # (Hp, 4*Hp) bf16 -- constant block
    bias = b_ref[...]             # (1, 4*Hp)  f32
    t0 = t_blk * tc

    def step(t, carry):
        h_prev, c_prev = carry
        gates = (jnp.dot(x_ref[t], w_ih, preferred_element_type=jnp.float32)
                 + jnp.dot(h_prev.astype(jnp.bfloat16), w_hh,
                           preferred_element_type=jnp.float32)
                 + bias)
        i_g = jax.nn.sigmoid(gates[:, 0 * hp:1 * hp])
        f_g = jax.nn.sigmoid(gates[:, 1 * hp:2 * hp])
        g_g = jnp.tanh(gates[:, 2 * hp:3 * hp])
        o_g = jax.nn.sigmoid(gates[:, 3 * hp:4 * hp])
        c_new = f_g * c_prev + i_g * g_g
        h_new = o_g * jnp.tanh(c_new)
        y_ref[t] = h_new.astype(y_ref.dtype)
        if mask_tail:
            valid = (t0 + t) < t_real
            h_new = jnp.where(valid, h_new, h_prev)
            c_new = jnp.where(valid, c_new, c_prev)
        return (h_new, c_new)

    h_last, c_last = jax.lax.fori_loop(
        0, tc, step, (h_scr[...], c_scr[...]), unroll=unroll)

    @pl.when(t_blk < n_t - 1)          # skip redundant scratch write on last chunk
    def _():
        h_scr[...] = h_last
        c_scr[...] = c_last

    @pl.when(t_blk == n_t - 1)         # final state stored once
    def _():
        hn_ref[...] = h_last
        cn_ref[...] = c_last


def lstm_layer(x, w_ih_t, w_hh_t, b, h0, c0, *, t_real, tc, batch_split):
    """x: (Tp, Bp, I) bf16 (time/batch already padded). Returns (y, hn, cn)."""
    Tp, Bp, I = x.shape
    Hp = h0.shape[-1]
    Bs = Bp // batch_split
    n_t = Tp // tc
    mask_tail = Tp != t_real

    # Vreg-pressure-aware unroll: full unroll only while one step's f32 gates
    # stay comfortably within the 64x4KiB vreg file.
    per_step_bytes = Bs * 4 * Hp * 4
    unroll = tc if per_step_bytes <= 64 * 1024 else min(tc, 8)

    est = (2 * tc * Bs * (I + Hp) * 2        # x + y double buffers (bf16)
           + 2 * (I + Hp) * 4 * Hp * 2       # W_ih^T + W_hh^T (bf16, 2 buffers)
           + 2 * 4 * Hp * 4                  # bias
           + 10 * Bs * Hp * 4)               # h0/c0/hn/cn buffers + h/c scratch
    # NOTE: W_hh/W_ih blocks are constant across the grid; a single-buffer
    # pipeline mode would halve their VMEM cost for very large H on v7x.

    kernel = functools.partial(_lstm_layer_kernel, hp=Hp, tc=tc, t_real=t_real,
                               mask_tail=mask_tail, unroll=unroll)

    out_shape = (
        jax.ShapeDtypeStruct((Tp, Bp, Hp), jnp.bfloat16),   # per-step hidden
        jax.ShapeDtypeStruct((Bp, Hp), jnp.float32),        # final h
        jax.ShapeDtypeStruct((Bp, Hp), jnp.float32),        # final c
    )
    grid_spec = pltpu.PrefetchScalarGridSpec(
        num_scalar_prefetch=0,
        grid=(batch_split, n_t),
        in_specs=[
            pl.BlockSpec((tc, Bs, I), lambda s, t: (t, s, 0)),
            pl.BlockSpec((I, 4 * Hp), lambda s, t: (0, 0)),
            pl.BlockSpec((Hp, 4 * Hp), lambda s, t: (0, 0)),
            pl.BlockSpec((1, 4 * Hp), lambda s, t: (0, 0)),
            pl.BlockSpec((Bs, Hp), lambda s, t: (s, 0)),
            pl.BlockSpec((Bs, Hp), lambda s, t: (s, 0)),
        ],
        out_specs=(
            pl.BlockSpec((tc, Bs, Hp), lambda s, t: (t, s, 0)),
            pl.BlockSpec((Bs, Hp), lambda s, t: (s, 0)),
            pl.BlockSpec((Bs, Hp), lambda s, t: (s, 0)),
        ),
        scratch_shapes=[
            pltpu.VMEM((Bs, Hp), jnp.float32),
            pltpu.VMEM((Bs, Hp), jnp.float32),
        ],
    )
    return pl.pallas_call(
        kernel,
        out_shape=out_shape,
        grid_spec=grid_spec,
        compiler_params=pltpu.CompilerParams(
            dimension_semantics=("parallel", "arbitrary"),
            vmem_limit_bytes=_vmem_limit_bytes(est)),
    )(x, w_ih_t, w_hh_t, b, h0, c0)


# ---------------------------------------------------------------------------
# Parameter init (mirrors RNNModel.init_weights):
#   dim > 1  -> uniform(-r, r), r = sqrt(3 / max(shape)); dim == 1 -> zeros.
# ---------------------------------------------------------------------------
def init_params(key, ntoken, ninp, nhid, nlayers):
    def uni(k, shape):
        r = (3.0 / max(shape)) ** 0.5
        return jax.random.uniform(k, shape, jnp.float32, minval=-r, maxval=r)

    keys = jax.random.split(key, 2 + 2 * nlayers)
    layers = []
    for l in range(nlayers):
        in_feat = ninp if l == 0 else nhid
        layers.append((
            uni(keys[2 + 2 * l], (4 * nhid, in_feat)),      # w_ih
            uni(keys[3 + 2 * l], (4 * nhid, nhid)),         # w_hh
            jnp.zeros((4 * nhid,), jnp.float32),            # b_ih (dim 1 -> 0)
            jnp.zeros((4 * nhid,), jnp.float32),            # b_hh (dim 1 -> 0)
        ))
    return {
        "emb": uni(keys[0], (ntoken, ninp)),
        "dec_w": uni(keys[1], (ntoken, nhid)),
        "dec_b": jnp.zeros((ntoken,), jnp.float32),
        "layers": layers,
    }


def _pad_gates_t(w, H, Hp, in_pad):
    """(4H, I) PyTorch LSTM weight -> (in_pad, 4*Hp) transposed, gate blocks
    [i|f|g|o] each padded to Hp so every gate starts on a 128-lane boundary."""
    _, I = w.shape
    wt = jnp.transpose(w.reshape(4, H, I), (2, 0, 1))        # (I, 4, H)
    wt = jnp.pad(wt, ((0, in_pad - I), (0, 0), (0, Hp - H)))
    return wt.reshape(in_pad, 4 * Hp)


def _pad_gate_bias(b, H, Hp):
    return jnp.pad(b.reshape(4, H), ((0, 0), (0, Hp - H))).reshape(1, 4 * Hp)


def pack_params(params, nhid):
    """One-time host-side packing: pre-transposed, gate-padded, bf16 weights."""
    H = nhid
    Hp = _round_up(H, 128)
    layers_k = []
    for l, (w_ih, w_hh, b_ih, b_hh) in enumerate(params["layers"]):
        in_feat = w_ih.shape[1]
        in_pad = in_feat if l == 0 else Hp     # layers > 0 consume the Hp-wide y
        layers_k.append((
            _pad_gates_t(w_ih, H, Hp, in_pad).astype(jnp.bfloat16),
            _pad_gates_t(w_hh, H, Hp, Hp).astype(jnp.bfloat16),
            # Combined bias b_ih + b_hh (both zero here; sum matters for
            # imported trained weights).
            _pad_gate_bias(b_ih + b_hh, H, Hp).astype(jnp.float32),
        ))
    dec_w_t = jnp.pad(params["dec_w"].T, ((0, Hp - H), (0, 0)))
    return {
        "emb": params["emb"].astype(jnp.bfloat16),
        "layers": layers_k,
        "dec_w_t": dec_w_t.astype(jnp.bfloat16),
        "dec_b": params["dec_b"].reshape(1, -1).astype(jnp.float32),
    }


# ---------------------------------------------------------------------------
# Full forward pass (RNNModel.forward, rnn_type='LSTM', eval-mode dropout)
# ---------------------------------------------------------------------------
@functools.partial(jax.jit, static_argnames=("batch_split",))
def rnn_model_forward(kparams, tokens, h0, c0, batch_split=None):
    T, B = tokens.shape
    _, _, H = h0.shape
    Hp, V = kparams["dec_w_t"].shape
    ninp = kparams["emb"].shape[1]

    # Embedding lookup (gather) -- plain JAX glue outside the kernels (bf16).
    emb = kparams["emb"][tokens]                       # (T, B, ninp)
    # TODO(synk): nn.Dropout(p=0.2) is stochastic in training mode; applied as
    # identity (eval mode) here and between layers / after the LSTM.

    # Batch padding to the sublane multiple; optional 2-way split so both v7x
    # TensorCores run the recurrence (each half needs >= 16 rows for bf16).
    Bp = _round_up(B, 8)
    if batch_split is None:
        batch_split = 2 if (_is_v7x() and Bp % 32 == 0) else 1
    if batch_split > 1 and (Bp % batch_split or (Bp // batch_split) % 16):
        batch_split = 1
    Bs = Bp // batch_split

    # Derive the time chunk from the recurrence VMEM budget (key on v7x).
    i_max = max(ninp, Hp)
    per_t = 2 * Bs * (i_max + Hp) * 2
    fixed = (2 * (i_max + Hp) * 4 * Hp * 2 + 2 * 4 * Hp * 4 + 10 * Bs * Hp * 4)
    tc_cap = max(1, (_RECURRENCE_VMEM_BUDGET - fixed) // per_t)
    tc, Tp = _pick_time_chunk(T, tc_cap, max_chunk=32)

    x = emb
    if Tp != T or Bp != B:
        x = jnp.pad(x, ((0, Tp - T), (0, Bp - B), (0, 0)))
    if Bp != B or Hp != H:
        h0 = jnp.pad(h0, ((0, 0), (0, Bp - B), (0, Hp - H)))
        c0 = jnp.pad(c0, ((0, 0), (0, Bp - B), (0, Hp - H)))

    h_finals, c_finals = [], []
    for l, (w_ih_t, w_hh_t, b) in enumerate(kparams["layers"]):
        # Fused layer: input projection + recurrence in one kernel, no
        # (T, B, 4H) gates round trip through HBM.
        y, hn, cn = lstm_layer(x, w_ih_t, w_hh_t, b, h0[l], c0[l],
                               t_real=T, tc=tc, batch_split=batch_split)
        h_finals.append(hn[:B, :H])
        c_finals.append(cn[:B, :H])
        x = y                                          # bf16; dropout = identity

    # Decoder: tiled (T*Bp, Hp) @ (Hp, V) + b, bf16 operands, f32 logits.
    decoded = matmul_bias(x[:T].reshape(T * Bp, Hp),
                          kparams["dec_w_t"], kparams["dec_b"],
                          out_dtype=jnp.float32)
    decoded = decoded.reshape(T, Bp, V)[:, :B, :]
    return decoded, (jnp.stack(h_finals), jnp.stack(c_finals))


# ---------------------------------------------------------------------------
# Pure-JAX reference (for correctness checking only)
# ---------------------------------------------------------------------------
@jax.jit
def rnn_model_forward_ref(params, tokens, h0, c0):
    x = params["emb"][tokens]
    hs, cs = [], []
    for l, (w_ih, w_hh, b_ih, b_hh) in enumerate(params["layers"]):
        H = w_hh.shape[1]
        b = b_ih + b_hh

        def cell(carry, x_t, w_ih=w_ih, w_hh=w_hh, b=b, H=H):
            h, c = carry
            g = x_t @ w_ih.T + h @ w_hh.T + b
            i = jax.nn.sigmoid(g[:, 0 * H:1 * H])
            f = jax.nn.sigmoid(g[:, 1 * H:2 * H])
            gg = jnp.tanh(g[:, 2 * H:3 * H])
            o = jax.nn.sigmoid(g[:, 3 * H:4 * H])
            c = f * c + i * gg
            h = o * jnp.tanh(c)
            return (h, c), h

        (hT, cT), y = jax.lax.scan(cell, (h0[l], c0[l]), x)
        hs.append(hT)
        cs.append(cT)
        x = y
    T, B = tokens.shape
    dec = x.reshape(T * B, -1) @ params["dec_w"].T + params["dec_b"]
    return dec.reshape(T, B, -1), (jnp.stack(hs), jnp.stack(cs))


def _bf16_quantized(params):
    """Reference params with weights rounded through bf16 (what the kernel uses)."""
    def q(a):
        a = jnp.asarray(a)
        if a.ndim > 1:
            return a.astype(jnp.bfloat16).astype(jnp.float32)
        return a
    return jax.tree_util.tree_map(q, params)


def _check_config(ntoken, ninp, nhid, nlayers, seq_len, batch, seed,
                  batch_split=None):
    key = jax.random.PRNGKey(seed)
    k_params, k_tok = jax.random.split(key)

    params = init_params(k_params, ntoken, ninp, nhid, nlayers)
    kparams = pack_params(params, nhid)
    tokens = jax.random.randint(k_tok, (seq_len, batch), 0, ntoken,
                                dtype=jnp.int32)
    # get_default_init: zero hidden / cell states
    h0 = jnp.zeros((nlayers, batch, nhid), jnp.float32)
    c0 = jnp.zeros((nlayers, batch, nhid), jnp.float32)

    decoded, (hn, cn) = rnn_model_forward(kparams, tokens, h0, c0,
                                          batch_split=batch_split)
    jax.block_until_ready((decoded, hn, cn))

    assert decoded.shape == (seq_len, batch, ntoken)
    assert hn.shape == (nlayers, batch, nhid)
    assert cn.shape == (nlayers, batch, nhid)
    assert bool(jnp.all(jnp.isfinite(decoded)))

    dec_ref, (hn_ref, cn_ref) = rnn_model_forward_ref(
        _bf16_quantized(params), tokens, h0, c0)
    assert float(jnp.max(jnp.abs(decoded - dec_ref))) < 5e-2
    assert float(jnp.max(jnp.abs(hn - hn_ref))) < 5e-2
    assert float(jnp.max(jnp.abs(cn - cn_ref))) < 5e-2


if __name__ == "__main__":
    # Primary small config (matches the module's expected shapes).
    _check_config(ntoken=50, ninp=32, nhid=32, nlayers=2,
                  seq_len=8, batch=4, seed=0)
    # Second config exercising time padding/masking (T=35 -> Tc=18, Tp=36),
    # non-128 nhid gate padding, and the 2-way batch split path.
    _check_config(ntoken=40, ninp=24, nhid=48, nlayers=2,
                  seq_len=35, batch=32, seed=0, batch_split=2)
    print("KERNEL_OK")
</pallas_src>

<mosaic_0001>
module attributes {stable_mosaic.version = 11 : i64} {
  func.func @_lstm_layer_kernel(%arg0: i32, %arg1: i32, %arg2: memref<8x8x128xbf16, #tpu.memory_space<vmem>>, %arg3: memref<128x512xbf16, #tpu.memory_space<vmem>>, %arg4: memref<128x512xbf16, #tpu.memory_space<vmem>>, %arg5: memref<1x512xf32, #tpu.memory_space<vmem>>, %arg6: memref<8x128xf32, #tpu.memory_space<vmem>>, %arg7: memref<8x128xf32, #tpu.memory_space<vmem>>, %arg8: memref<8x8x128xbf16, #tpu.memory_space<vmem>>, %arg9: memref<8x128xf32, #tpu.memory_space<vmem>>, %arg10: memref<8x128xf32, #tpu.memory_space<vmem>>, %arg11: memref<8x128xf32, #tpu.memory_space<vmem>>, %arg12: memref<8x128xf32, #tpu.memory_space<vmem>>) attributes {dimension_semantics = [#tpu.dimension_semantics<parallel>, #tpu.dimension_semantics<arbitrary>], iteration_bounds = array<i64: 1, 1>, scalar_prefetch = 0 : i64, scratch_operands = 2 : i64, tpu.core_type = #tpu.core_type<tc>, window_params = [{transform_indices = @transform_0, window_bounds = array<i64: 8, 8, 128>}, {pipeline_mode = #tpu.pipeline_mode<synchronous>, transform_indices = @transform_1, window_bounds = array<i64: 128, 512>}, {pipeline_mode = #tpu.pipeline_mode<synchronous>, transform_indices = @transform_2, window_bounds = array<i64: 128, 512>}, {pipeline_mode = #tpu.pipeline_mode<synchronous>, transform_indices = @transform_3, window_bounds = array<i64: 1, 512>}, {transform_indices = @transform_4, window_bounds = array<i64: 8, 128>}, {transform_indices = @transform_5, window_bounds = array<i64: 8, 128>}, {transform_indices = @transform_6, window_bounds = array<i64: 8, 8, 128>}, {transform_indices = @transform_7, window_bounds = array<i64: 8, 128>}, {transform_indices = @transform_8, window_bounds = array<i64: 8, 128>}]} {
    %c0_i32 = arith.constant 0 : i32
    %0 = arith.cmpi eq, %arg1, %c0_i32 : i32
    %1 = arith.extui %0 : i1 to i32
    %c0_i32_0 = arith.constant 0 : i32
    %2 = arith.cmpi ne, %1, %c0_i32_0 : i32
    scf.if %2 {
      %c0_86 = arith.constant 0 : index
      %c0_87 = arith.constant 0 : index
      %326 = vector.load %arg6[%c0_86, %c0_87] : memref<8x128xf32, #tpu.memory_space<vmem>>, vector<8x128xf32>
      %c0_88 = arith.constant 0 : index
      %c0_89 = arith.constant 0 : index
      %327 = vector.load %arg11[%c0_88, %c0_89] : memref<8x128xf32, #tpu.memory_space<vmem>>, vector<8x128xf32>
      tpu.vector_store %arg11[%c0_88, %c0_89], %326 {strides = array<i32>} : memref<8x128xf32, #tpu.memory_space<vmem>>, vector<8x128xf32>,
      %c0_90 = arith.constant 0 : index
      %c0_91 = arith.constant 0 : index
      %328 = vector.load %arg7[%c0_90, %c0_91] : memref<8x128xf32, #tpu.memory_space<vmem>>, vector<8x128xf32>
      %c0_92 = arith.constant 0 : index
      %c0_93 = arith.constant 0 : index
      %329 = vector.load %arg12[%c0_92, %c0_93] : memref<8x128xf32, #tpu.memory_space<vmem>>, vector<8x128xf32>
      tpu.vector_store %arg12[%c0_92, %c0_93], %328 {strides = array<i32>} : memref<8x128xf32, #tpu.memory_space<vmem>>, vector<8x128xf32>,
    } else {
    }
    %c0 = arith.constant 0 : index
    %c0_1 = arith.constant 0 : index
    %3 = vector.load %arg3[%c0, %c0_1] : memref<128x512xbf16, #tpu.memory_space<vmem>>, vector<128x512xbf16>
    %c0_2 = arith.constant 0 : index
    %c0_3 = arith.constant 0 : index
    %4 = vector.load %arg4[%c0_2, %c0_3] : memref<128x512xbf16, #tpu.memory_space<vmem>>, vector<128x512xbf16>
    %c0_4 = arith.constant 0 : index
    %c0_5 = arith.constant 0 : index
    %5 = vector.load %arg5[%c0_4, %c0_5] : memref<1x512xf32, #tpu.memory_space<vmem>>, vector<1x512xf32>
    %c0_6 = arith.constant 0 : index
    %c0_7 = arith.constant 0 : index
    %6 = vector.load %arg11[%c0_6, %c0_7] : memref<8x128xf32, #tpu.memory_space<vmem>>, vector<8x128xf32>
    %c0_8 = arith.constant 0 : index
    %c0_9 = arith.constant 0 : index
    %7 = vector.load %arg12[%c0_8, %c0_9] : memref<8x128xf32, #tpu.memory_space<vmem>>, vector<8x128xf32>
    %c0_i32_10 = arith.constant 0 : i32
    %8 = arith.index_cast %c0_i32_10 : i32 to index
    %c0_11 = arith.constant 0 : index
    %c0_12 = arith.constant 0 : index
    %9 = vector.load %arg2[%8, %c0_11, %c0_12] : memref<8x8x128xbf16, #tpu.memory_space<vmem>>, vector<1x8x128xbf16>
    %10 = vector.shape_cast %9 : vector<1x8x128xbf16> to vector<8x128xbf16>
    %cst = arith.constant dense<0.000000e+00> : vector<8x512xf32>
    %11 = tpu.matmul %10, %3, %cst {dimension_numbers = #tpu.dot_dimension_numbers<[1], [0], [0], [1], [0, 0, 1, 1], [], []>} : vector<8x128xbf16>, vector<128x512xbf16>, vector<8x512xf32> -> vector<8x512xf32>
    %12 = arith.truncf %6 : vector<8x128xf32> to vector<8x128xbf16>
    %cst_13 = arith.constant dense<0.000000e+00> : vector<8x512xf32>
    %13 = tpu.matmul %12, %4, %cst_13 {dimension_numbers = #tpu.dot_dimension_numbers<[1], [0], [0], [1], [0, 0, 1, 1], [], []>} : vector<8x128xbf16>, vector<128x512xbf16>, vector<8x512xf32> -> vector<8x512xf32>
    %14 = arith.addf %11, %13 : vector<8x512xf32>
    %15 = vector.broadcast %5 : vector<1x512xf32> to vector<8x512xf32>
    %16 = arith.addf %14, %15 : vector<8x512xf32>
    %17 = vector.extract_strided_slice %16 {offsets = [0, 0], sizes = [8, 128], strides = [1, 1]} : vector<8x512xf32> to vector<8x128xf32>
    %18 = arith.negf %17 : vector<8x128xf32>
    %19 = math.exp %18 : vector<8x128xf32>
    %cst_14 = arith.constant 1.000000e+00 : f32
    %20 = vector.broadcast %cst_14 : f32 to vector<8x128xf32>
    %21 = arith.addf %20, %19 : vector<8x128xf32>
    %22 = arith.divf %20, %21 : vector<8x128xf32>
    %23 = vector.extract_strided_slice %16 {offsets = [0, 128], sizes = [8, 128], strides = [1, 1]} : vector<8x512xf32> to vector<8x128xf32>
    %24 = arith.negf %23 : vector<8x128xf32>
    %25 = math.exp %24 : vector<8x128xf32>
    %cst_15 = arith.constant 1.000000e+00 : f32
    %26 = vector.broadcast %cst_15 : f32 to vector<8x128xf32>
    %27 = arith.addf %26, %25 : vector<8x128xf32>
    %28 = arith.divf %26, %27 : vector<8x128xf32>
    %29 = vector.extract_strided_slice %16 {offsets = [0, 256], sizes = [8, 128], strides = [1, 1]} : vector<8x512xf32> to vector<8x128xf32>
    %30 = math.tanh %29 : vector<8x128xf32>
    %31 = vector.extract_strided_slice %16 {offsets = [0, 384], sizes = [8, 128], strides = [1, 1]} : vector<8x512xf32> to vector<8x128xf32>
    %32 = arith.negf %31 : vector<8x128xf32>
    %33 = math.exp %32 : vector<8x128xf32>
    %cst_16 = arith.constant 1.000000e+00 : f32
    %34 = vector.broadcast %cst_16 : f32 to vector<8x128xf32>
    %35 = arith.addf %34, %33 : vector<8x128xf32>
    %36 = arith.divf %34, %35 : vector<8x128xf32>
    %37 = arith.mulf %28, %7 : vector<8x128xf32>
    %38 = arith.mulf %22, %30 : vector<8x128xf32>
    %39 = arith.addf %37, %38 : vector<8x128xf32>
    %40 = math.tanh %39 : vector<8x128xf32>
    %41 = arith.mulf %36, %40 : vector<8x128xf32>
    %42 = arith.truncf %41 : vector<8x128xf32> to vector<8x128xbf16>
    %43 = arith.index_cast %c0_i32_10 : i32 to index
    %c0_17 = arith.constant 0 : index
    %c0_18 = arith.constant 0 : index
    %44 = vector.load %arg8[%43, %c0_17, %c0_18] : memref<8x8x128xbf16, #tpu.memory_space<vmem>>, vector<1x8x128xbf16>
    %45 = vector.shape_cast %44 : vector<1x8x128xbf16> to vector<8x128xbf16>
    %46 = vector.shape_cast %42 : vector<8x128xbf16> to vector<1x8x128xbf16>
    tpu.vector_store %arg8[%43, %c0_17, %c0_18], %46 {strides = array<i32>} : memref<8x8x128xbf16, #tpu.memory_space<vmem>>, vector<1x8x128xbf16>,
    %c1_i32 = arith.constant 1 : i32
    %47 = arith.index_cast %c1_i32 : i32 to index
    %c0_19 = arith.constant 0 : index
    %c0_20 = arith.constant 0 : index
    %48 = vector.load %arg2[%47, %c0_19, %c0_20] : memref<8x8x128xbf16, #tpu.memory_space<vmem>>, vector<1x8x128xbf16>
    %49 = vector.shape_cast %48 : vector<1x8x128xbf16> to vector<8x128xbf16>
    %cst_21 = arith.constant dense<0.000000e+00> : vector<8x512xf32>
    %50 = tpu.matmul %49, %3, %cst_21 {dimension_numbers = #tpu.dot_dimension_numbers<[1], [0], [0], [1], [0, 0, 1, 1], [], []>} : vector<8x128xbf16>, vector<128x512xbf16>, vector<8x512xf32> -> vector<8x512xf32>
    %51 = arith.truncf %41 : vector<8x128xf32> to vector<8x128xbf16>
    %cst_22 = arith.constant dense<0.000000e+00> : vector<8x512xf32>
    %52 = tpu.matmul %51, %4, %cst_22 {dimension_numbers = #tpu.dot_dimension_numbers<[1], [0], [0], [1], [0, 0, 1, 1], [], []>} : vector<8x128xbf16>, vector<128x512xbf16>, vector<8x512xf32> -> vector<8x512xf32>
    %53 = arith.addf %50, %52 : vector<8x512xf32>
    %54 = vector.broadcast %5 : vector<1x512xf32> to vector<8x512xf32>
    %55 = arith.addf %53, %54 : vector<8x512xf32>
    %56 = vector.extract_strided_slice %55 {offsets = [0, 0], sizes = [8, 128], strides = [1, 1]} : vector<8x512xf32> to vector<8x128xf32>
    %57 = arith.negf %56 : vector<8x128xf32>
    %58 = math.exp %57 : vector<8x128xf32>
    %cst_23 = arith.constant 1.000000e+00 : f32
    %59 = vector.broadcast %cst_23 : f32 to vector<8x128xf32>
    %60 = arith.addf %59, %58 : vector<8x128xf32>
    %61 = arith.divf %59, %60 : vector<8x128xf32>
    %62 = vector.extract_strided_slice %55 {offsets = [0, 128], sizes = [8, 128], strides = [1, 1]} : vector<8x512xf32> to vector<8x128xf32>
    %63 = arith.negf %62 : vector<8x128xf32>
    %64 = math.exp %63 : vector<8x128xf32>
    %cst_24 = arith.constant 1.000000e+00 : f32
    %65 = vector.broadcast %cst_24 : f32 to vector<8x128xf32>
    %66 = arith.addf %65, %64 : vector<8x128xf32>
    %67 = arith.divf %65, %66 : vector<8x128xf32>
    %68 = vector.extract_strided_slice %55 {offsets = [0, 256], sizes = [8, 128], strides = [1, 1]} : vector<8x512xf32> to vector<8x128xf32>
    %69 = math.tanh %68 : vector<8x128xf32>
    %70 = vector.extract_strided_slice %55 {offsets = [0, 384], sizes = [8, 128], strides = [1, 1]} : vector<8x512xf32> to vector<8x128xf32>
    %71 = arith.negf %70 : vector<8x128xf32>
    %72 = math.exp %71 : vector<8x128xf32>
    %cst_25 = arith.constant 1.000000e+00 : f32
    %73 = vector.broadcast %cst_25 : f32 to vector<8x128xf32>
    %74 = arith.addf %73, %72 : vector<8x128xf32>
    %75 = arith.divf %73, %74 : vector<8x128xf32>
    %76 = arith.mulf %67, %39 : vector<8x128xf32>
    %77 = arith.mulf %61, %69 : vector<8x128xf32>
    %78 = arith.addf %76, %77 : vector<8x128xf32>
    %79 = math.tanh %78 : vector<8x128xf32>
    %80 = arith.mulf %75, %79 : vector<8x128xf32>
    %81 = arith.truncf %80 : vector<8x128xf32> to vector<8x128xbf16>
    %82 = arith.index_cast %c1_i32 : i32 to index
    %c0_26 = arith.constant 0 : index
    %c0_27 = arith.constant 0 : index
    %83 = vector.load %arg8[%82, %c0_26, %c0_27] : memref<8x8x128xbf16, #tpu.memory_space<vmem>>, vector<1x8x128xbf16>
    %84 = vector.shape_cast %83 : vector<1x8x128xbf16> to vector<8x128xbf16>
    %85 = vector.shape_cast %81 : vector<8x128xbf16> to vector<1x8x128xbf16>
    tpu.vector_store %arg8[%82, %c0_26, %c0_27], %85 {strides = array<i32>} : memref<8x8x128xbf16, #tpu.memory_space<vmem>>, vector<1x8x128xbf16>,
    %c2_i32 = arith.constant 2 : i32
    %86 = arith.index_cast %c2_i32 : i32 to index
    %c0_28 = arith.constant 0 : index
    %c0_29 = arith.constant 0 : index
    %87 = vector.load %arg2[%86, %c0_28, %c0_29] : memref<8x8x128xbf16, #tpu.memory_space<vmem>>, vector<1x8x128xbf16>
    %88 = vector.shape_cast %87 : vector<1x8x128xbf16> to vector<8x128xbf16>
    %cst_30 = arith.constant dense<0.000000e+00> : vector<8x512xf32>
    %89 = tpu.matmul %88, %3, %cst_30 {dimension_numbers = #tpu.dot_dimension_numbers<[1], [0], [0], [1], [0, 0, 1, 1], [], []>} : vector<8x128xbf16>, vector<128x512xbf16>, vector<8x512xf32> -> vector<8x512xf32>
    %90 = arith.truncf %80 : vector<8x128xf32> to vector<8x128xbf16>
    %cst_31 = arith.constant dense<0.000000e+00> : vector<8x512xf32>
    %91 = tpu.matmul %90, %4, %cst_31 {dimension_numbers = #tpu.dot_dimension_numbers<[1], [0], [0], [1], [0, 0, 1, 1], [], []>} : vector<8x128xbf16>, vector<128x512xbf16>, vector<8x512xf32> -> vector<8x512xf32>
    %92 = arith.addf %89, %91 : vector<8x512xf32>
    %93 = vector.broadcast %5 : vector<1x512xf32> to vector<8x512xf32>
    %94 = arith.addf %92, %93 : vector<8x512xf32>
    %95 = vector.extract_strided_slice %94 {offsets = [0, 0], sizes = [8, 128], strides = [1, 1]} : vector<8x512xf32> to vector<8x128xf32>
    %96 = arith.negf %95 : vector<8x128xf32>
    %97 = math.exp %96 : vector<8x128xf32>
    %cst_32 = arith.constant 1.000000e+00 : f32
    %98 = vector.broadcast %cst_32 : f32 to vector<8x128xf32>
    %99 = arith.addf %98, %97 : vector<8x128xf32>
    %100 = arith.divf %98, %99 : vector<8x128xf32>
    %101 = vector.extract_strided_slice %94 {offsets = [0, 128], sizes = [8, 128], strides = [1, 1]} : vector<8x512xf32> to vector<8x128xf32>
    %102 = arith.negf %101 : vector<8x128xf32>
    %103 = math.exp %102 : vector<8x128xf32>
    %cst_33 = arith.constant 1.000000e+00 : f32
    %104 = vector.broadcast %cst_33 : f32 to vector<8x128xf32>
    %105 = arith.addf %104, %103 : vector<8x128xf32>
    %106 = arith.divf %104, %105 : vector<8x128xf32>
    %107 = vector.extract_strided_slice %94 {offsets = [0, 256], sizes = [8, 128], strides = [1, 1]} : vector<8x512xf32> to vector<8x128xf32>
    %108 = math.tanh %107 : vector<8x128xf32>
    %109 = vector.extract_strided_slice %94 {offsets = [0, 384], sizes = [8, 128], strides = [1, 1]} : vector<8x512xf32> to vector<8x128xf32>
    %110 = arith.negf %109 : vector<8x128xf32>
    %111 = math.exp %110 : vector<8x128xf32>
    %cst_34 = arith.constant 1.000000e+00 : f32
    %112 = vector.broadcast %cst_34 : f32 to vector<8x128xf32>
    %113 = arith.addf %112, %111 : vector<8x128xf32>
    %114 = arith.divf %112, %113 : vector<8x128xf32>
    %115 = arith.mulf %106, %78 : vector<8x128xf32>
    %116 = arith.mulf %100, %108 : vector<8x128xf32>
    %117 = arith.addf %115, %116 : vector<8x128xf32>
    %118 = math.tanh %117 : vector<8x128xf32>
    %119 = arith.mulf %114, %118 : vector<8x128xf32>
    %120 = arith.truncf %119 : vector<8x128xf32> to vector<8x128xbf16>
    %121 = arith.index_cast %c2_i32 : i32 to index
    %c0_35 = arith.constant 0 : index
    %c0_36 = arith.constant 0 : index
    %122 = vector.load %arg8[%121, %c0_35, %c0_36] : memref<8x8x128xbf16, #tpu.memory_space<vmem>>, vector<1x8x128xbf16>
    %123 = vector.shape_cast %122 : vector<1x8x128xbf16> to vector<8x128xbf16>
    %124 = vector.shape_cast %120 : vector<8x128xbf16> to vector<1x8x128xbf16>
    tpu.vector_store %arg8[%121, %c0_35, %c0_36], %124 {strides = array<i32>} : memref<8x8x128xbf16, #tpu.memory_space<vmem>>, vector<1x8x128xbf16>,
    %c3_i32 = arith.constant 3 : i32
    %125 = arith.index_cast %c3_i32 : i32 to index
    %c0_37 = arith.constant 0 : index
    %c0_38 = arith.constant 0 : index
    %126 = vector.load %arg2[%125, %c0_37, %c0_38] : memref<8x8x128xbf16, #tpu.memory_space<vmem>>, vector<1x8x128xbf16>
    %127 = vector.shape_cast %126 : vector<1x8x128xbf16> to vector<8x128xbf16>
    %cst_39 = arith.constant dense<0.000000e+00> : vector<8x512xf32>
    %128 = tpu.matmul %127, %3, %cst_39 {dimension_numbers = #tpu.dot_dimension_numbers<[1], [0], [0], [1], [0, 0, 1, 1], [], []>} : vector<8x128xbf16>, vector<128x512xbf16>, vector<8x512xf32> -> vector<8x512xf32>
    %129 = arith.truncf %119 : vector<8x128xf32> to vector<8x128xbf16>
    %cst_40 = arith.constant dense<0.000000e+00> : vector<8x512xf32>
    %130 = tpu.matmul %129, %4, %cst_40 {dimension_numbers = #tpu.dot_dimension_numbers<[1], [0], [0], [1], [0, 0, 1, 1], [], []>} : vector<8x128xbf16>, vector<128x512xbf16>, vector<8x512xf32> -> vector<8x512xf32>
    %131 = arith.addf %128, %130 : vector<8x512xf32>
    %132 = vector.broadcast %5 : vector<1x512xf32> to vector<8x512xf32>
    %133 = arith.addf %131, %132 : vector<8x512xf32>
    %134 = vector.extract_strided_slice %133 {offsets = [0, 0], sizes = [8, 128], strides = [1, 1]} : vector<8x512xf32> to vector<8x128xf32>
    %135 = arith.negf %134 : vector<8x128xf32>
    %136 = math.exp %135 : vector<8x128xf32>
    %cst_41 = arith.constant 1.000000e+00 : f32
    %137 = vector.broadcast %cst_41 : f32 to vector<8x128xf32>
    %138 = arith.addf %137, %136 : vector<8x128xf32>
    %139 = arith.divf %137, %138 : vector<8x128xf32>
    %140 = vector.extract_strided_slice %133 {offsets = [0, 128], sizes = [8, 128], strides = [1, 1]} : vector<8x512xf32> to vector<8x128xf32>
    %141 = arith.negf %140 : vector<8x128xf32>
    %142 = math.exp %141 : vector<8x128xf32>
    %cst_42 = arith.constant 1.000000e+00 : f32
    %143 = vector.broadcast %cst_42 : f32 to vector<8x128xf32>
    %144 = arith.addf %143, %142 : vector<8x128xf32>
    %145 = arith.divf %143, %144 : vector<8x128xf32>
    %146 = vector.extract_strided_slice %133 {offsets = [0, 256], sizes = [8, 128], strides = [1, 1]} : vector<8x512xf32> to vector<8x128xf32>
    %147 = math.tanh %146 : vector<8x128xf32>
    %148 = vector.extract_strided_slice %133 {offsets = [0, 384], sizes = [8, 128], strides = [1, 1]} : vector<8x512xf32> to vector<8x128xf32>
    %149 = arith.negf %148 : vector<8x128xf32>
    %150 = math.exp %149 : vector<8x128xf32>
    %cst_43 = arith.constant 1.000000e+00 : f32
    %151 = vector.broadcast %cst_43 : f32 to vector<8x128xf32>
    %152 = arith.addf %151, %150 : vector<8x128xf32>
    %153 = arith.divf %151, %152 : vector<8x128xf32>
    %154 = arith.mulf %145, %117 : vector<8x128xf32>
    %155 = arith.mulf %139, %147 : vector<8x128xf32>
    %156 = arith.addf %154, %155 : vector<8x128xf32>
    %157 = math.tanh %156 : vector<8x128xf32>
    %158 = arith.mulf %153, %157 : vector<8x128xf32>
    %159 = arith.truncf %158 : vector<8x128xf32> to vector<8x128xbf16>
    %160 = arith.index_cast %c3_i32 : i32 to index
    %c0_44 = arith.constant 0 : index
    %c0_45 = arith.constant 0 : index
    %161 = vector.load %arg8[%160, %c0_44, %c0_45] : memref<8x8x128xbf16, #tpu.memory_space<vmem>>, vector<1x8x128xbf16>
    %162 = vector.shape_cast %161 : vector<1x8x128xbf16> to vector<8x128xbf16>
    %163 = vector.shape_cast %159 : vector<8x128xbf16> to vector<1x8x128xbf16>
    tpu.vector_store %arg8[%160, %c0_44, %c0_45], %163 {strides = array<i32>} : memref<8x8x128xbf16, #tpu.memory_space<vmem>>, vector<1x8x128xbf16>,
    %c4_i32 = arith.constant 4 : i32
    %164 = arith.index_cast %c4_i32 : i32 to index
    %c0_46 = arith.constant 0 : index
    %c0_47 = arith.constant 0 : index
    %165 = vector.load %arg2[%164, %c0_46, %c0_47] : memref<8x8x128xbf16, #tpu.memory_space<vmem>>, vector<1x8x128xbf16>
    %166 = vector.shape_cast %165 : vector<1x8x128xbf16> to vector<8x128xbf16>
    %cst_48 = arith.constant dense<0.000000e+00> : vector<8x512xf32>
    %167 = tpu.matmul %166, %3, %cst_48 {dimension_numbers = #tpu.dot_dimension_numbers<[1], [0], [0], [1], [0, 0, 1, 1], [], []>} : vector<8x128xbf16>, vector<128x512xbf16>, vector<8x512xf32> -> vector<8x512xf32>
    %168 = arith.truncf %158 : vector<8x128xf32> to vector<8x128xbf16>
    %cst_49 = arith.constant dense<0.000000e+00> : vector<8x512xf32>
    %169 = tpu.matmul %168, %4, %cst_49 {dimension_numbers = #tpu.dot_dimension_numbers<[1], [0], [0], [1], [0, 0, 1, 1], [], []>} : vector<8x128xbf16>, vector<128x512xbf16>, vector<8x512xf32> -> vector<8x512xf32>
    %170 = arith.addf %167, %169 : vector<8x512xf32>
    %171 = vector.broadcast %5 : vector<1x512xf32> to vector<8x512xf32>
    %172 = arith.addf %170, %171 : vector<8x512xf32>
    %173 = vector.extract_strided_slice %172 {offsets = [0, 0], sizes = [8, 128], strides = [1, 1]} : vector<8x512xf32> to vector<8x128xf32>
    %174 = arith.negf %173 : vector<8x128xf32>
    %175 = math.exp %174 : vector<8x128xf32>
    %cst_50 = arith.constant 1.000000e+00 : f32
    %176 = vector.broadcast %cst_50 : f32 to vector<8x128xf32>
    %177 = arith.addf %176, %175 : vector<8x128xf32>
    %178 = arith.divf %176, %177 : vector<8x128xf32>
    %179 = vector.extract_strided_slice %172 {offsets = [0, 128], sizes = [8, 128], strides = [1, 1]} : vector<8x512xf32> to vector<8x128xf32>
    %180 = arith.negf %179 : vector<8x128xf32>
    %181 = math.exp %180 : vector<8x128xf32>
    %cst_51 = arith.constant 1.000000e+00 : f32
    %182 = vector.broadcast %cst_51 : f32 to vector<8x128xf32>
    %183 = arith.addf %182, %181 : vector<8x128xf32>
    %184 = arith.divf %182, %183 : vector<8x128xf32>
    %185 = vector.extract_strided_slice %172 {offsets = [0, 256], sizes = [8, 128], strides = [1, 1]} : vector<8x512xf32> to vector<8x128xf32>
    %186 = math.tanh %185 : vector<8x128xf32>
    %187 = vector.extract_strided_slice %172 {offsets = [0, 384], sizes = [8, 128], strides = [1, 1]} : vector<8x512xf32> to vector<8x128xf32>
    %188 = arith.negf %187 : vector<8x128xf32>
    %189 = math.exp %188 : vector<8x128xf32>
    %cst_52 = arith.constant 1.000000e+00 : f32
    %190 = vector.broadcast %cst_52 : f32 to vector<8x128xf32>
    %191 = arith.addf %190, %189 : vector<8x128xf32>
    %192 = arith.divf %190, %191 : vector<8x128xf32>
    %193 = arith.mulf %184, %156 : vector<8x128xf32>
    %194 = arith.mulf %178, %186 : vector<8x128xf32>
    %195 = arith.addf %193, %194 : vector<8x128xf32>
    %196 = math.tanh %195 : vector<8x128xf32>
    %197 = arith.mulf %192, %196 : vector<8x128xf32>
    %198 = arith.truncf %197 : vector<8x128xf32> to vector<8x128xbf16>
    %199 = arith.index_cast %c4_i32 : i32 to index
    %c0_53 = arith.constant 0 : index
    %c0_54 = arith.constant 0 : index
    %200 = vector.load %arg8[%199, %c0_53, %c0_54] : memref<8x8x128xbf16, #tpu.memory_space<vmem>>, vector<1x8x128xbf16>
    %201 = vector.shape_cast %200 : vector<1x8x128xbf16> to vector<8x128xbf16>
    %202 = vector.shape_cast %198 : vector<8x128xbf16> to vector<1x8x128xbf16>
    tpu.vector_store %arg8[%199, %c0_53, %c0_54], %202 {strides = array<i32>} : memref<8x8x128xbf16, #tpu.memory_space<vmem>>, vector<1x8x128xbf16>,
    %c5_i32 = arith.constant 5 : i32
    %203 = arith.index_cast %c5_i32 : i32 to index
    %c0_55 = arith.constant 0 : index
    %c0_56 = arith.constant 0 : index
    %204 = vector.load %arg2[%203, %c0_55, %c0_56] : memref<8x8x128xbf16, #tpu.memory_space<vmem>>, vector<1x8x128xbf16>
    %205 = vector.shape_cast %204 : vector<1x8x128xbf16> to vector<8x128xbf16>
    %cst_57 = arith.constant dense<0.000000e+00> : vector<8x512xf32>
    %206 = tpu.matmul %205, %3, %cst_57 {dimension_numbers = #tpu.dot_dimension_numbers<[1], [0], [0], [1], [0, 0, 1, 1], [], []>} : vector<8x128xbf16>, vector<128x512xbf16>, vector<8x512xf32> -> vector<8x512xf32>
    %207 = arith.truncf %197 : vector<8x128xf32> to vector<8x128xbf16>
    %cst_58 = arith.constant dense<0.000000e+00> : vector<8x512xf32>
    %208 = tpu.matmul %207, %4, %cst_58 {dimension_numbers = #tpu.dot_dimension_numbers<[1], [0], [0], [1], [0, 0, 1, 1], [], []>} : vector<8x128xbf16>, vector<128x512xbf16>, vector<8x512xf32> -> vector<8x512xf32>
    %209 = arith.addf %206, %208 : vector<8x512xf32>
    %210 = vector.broadcast %5 : vector<1x512xf32> to vector<8x512xf32>
    %211 = arith.addf %209, %210 : vector<8x512xf32>
    %212 = vector.extract_strided_slice %211 {offsets = [0, 0], sizes = [8, 128], strides = [1, 1]} : vector<8x512xf32> to vector<8x128xf32>
    %213 = arith.negf %212 : vector<8x128xf32>
    %214 = math.exp %213 : vector<8x128xf32>
    %cst_59 = arith.constant 1.000000e+00 : f32
    %215 = vector.broadcast %cst_59 : f32 to vector<8x128xf32>
    %216 = arith.addf %215, %214 : vector<8x128xf32>
    %217 = arith.divf %215, %216 : vector<8x128xf32>
    %218 = vector.extract_strided_slice %211 {offsets = [0, 128], sizes = [8, 128], strides = [1, 1]} : vector<8x512xf32> to vector<8x128xf32>
    %219 = arith.negf %218 : vector<8x128xf32>
    %220 = math.exp %219 : vector<8x128xf32>
    %cst_60 = arith.constant 1.000000e+00 : f32
    %221 = vector.broadcast %cst_60 : f32 to vector<8x128xf32>
    %222 = arith.addf %221, %220 : vector<8x128xf32>
    %223 = arith.divf %221, %222 : vector<8x128xf32>
    %224 = vector.extract_strided_slice %211 {offsets = [0, 256], sizes = [8, 128], strides = [1, 1]} : vector<8x512xf32> to vector<8x128xf32>
    %225 = math.tanh %224 : vector<8x128xf32>
    %226 = vector.extract_strided_slice %211 {offsets = [0, 384], sizes = [8, 128], strides = [1, 1]} : vector<8x512xf32> to vector<8x128xf32>
    %227 = arith.negf %226 : vector<8x128xf32>
    %228 = math.exp %227 : vector<8x128xf32>
    %cst_61 = arith.constant 1.000000e+00 : f32
    %229 = vector.broadcast %cst_61 : f32 to vector<8x128xf32>
    %230 = arith.addf %229, %228 : vector<8x128xf32>
    %231 = arith.divf %229, %230 : vector<8x128xf32>
    %232 = arith.mulf %223, %195 : vector<8x128xf32>
    %233 = arith.mulf %217, %225 : vector<8x128xf32>
    %234 = arith.addf %232, %233 : vector<8x128xf32>
    %235 = math.tanh %234 : vector<8x128xf32>
    %236 = arith.mulf %231, %235 : vector<8x128xf32>
    %237 = arith.truncf %236 : vector<8x128xf32> to vector<8x128xbf16>
    %238 = arith.index_cast %c5_i32 : i32 to index
    %c0_62 = arith.constant 0 : index
    %c0_63 = arith.constant 0 : index
    %239 = vector.load %arg8[%238, %c0_62, %c0_63] : memref<8x8x128xbf16, #tpu.memory_space<vmem>>, vector<1x8x128xbf16>
    %240 = vector.shape_cast %239 : vector<1x8x128xbf16> to vector<8x128xbf16>
    %241 = vector.shape_cast %237 : vector<8x128xbf16> to vector<1x8x128xbf16>
    tpu.vector_store %arg8[%238, %c0_62, %c0_63], %241 {strides = array<i32>} : memref<8x8x128xbf16, #tpu.memory_space<vmem>>, vector<1x8x128xbf16>,
    %c6_i32 = arith.constant 6 : i32
    %242 = arith.index_cast %c6_i32 : i32 to index
    %c0_64 = arith.constant 0 : index
    %c0_65 = arith.constant 0 : index
    %243 = vector.load %arg2[%242, %c0_64, %c0_65] : memref<8x8x128xbf16, #tpu.memory_space<vmem>>, vector<1x8x128xbf16>
    %244 = vector.shape_cast %243 : vector<1x8x128xbf16> to vector<8x128xbf16>
    %cst_66 = arith.constant dense<0.000000e+00> : vector<8x512xf32>
    %245 = tpu.matmul %244, %3, %cst_66 {dimension_numbers = #tpu.dot_dimension_numbers<[1], [0], [0], [1], [0, 0, 1, 1], [], []>} : vector<8x128xbf16>, vector<128x512xbf16>, vector<8x512xf32> -> vector<8x512xf32>
    %246 = arith.truncf %236 : vector<8x128xf32> to vector<8x128xbf16>
    %cst_67 = arith.constant dense<0.000000e+00> : vector<8x512xf32>
    %247 = tpu.matmul %246, %4, %cst_67 {dimension_numbers = #tpu.dot_dimension_numbers<[1], [0], [0], [1], [0, 0, 1, 1], [], []>} : vector<8x128xbf16>, vector<128x512xbf16>, vector<8x512xf32> -> vector<8x512xf32>
    %248 = arith.addf %245, %247 : vector<8x512xf32>
    %249 = vector.broadcast %5 : vector<1x512xf32> to vector<8x512xf32>
    %250 = arith.addf %248, %249 : vector<8x512xf32>
    %251 = vector.extract_strided_slice %250 {offsets = [0, 0], sizes = [8, 128], strides = [1, 1]} : vector<8x512xf32> to vector<8x128xf32>
    %252 = arith.negf %251 : vector<8x128xf32>
    %253 = math.exp %252 : vector<8x128xf32>
    %cst_68 = arith.constant 1.000000e+00 : f32
    %254 = vector.broadcast %cst_68 : f32 to vector<8x128xf32>
    %255 = arith.addf %254, %253 : vector<8x128xf32>
    %256 = arith.divf %254, %255 : vector<8x128xf32>
    %257 = vector.extract_strided_slice %250 {offsets = [0, 128], sizes = [8, 128], strides = [1, 1]} : vector<8x512xf32> to vector<8x128xf32>
    %258 = arith.negf %257 : vector<8x128xf32>
    %259 = math.exp %258 : vector<8x128xf32>
    %cst_69 = arith.constant 1.000000e+00 : f32
    %260 = vector.broadcast %cst_69 : f32 to vector<8x128xf32>
    %261 = arith.addf %260, %259 : vector<8x128xf32>
    %262 = arith.divf %260, %261 : vector<8x128xf32>
    %263 = vector.extract_strided_slice %250 {offsets = [0, 256], sizes = [8, 128], strides = [1, 1]} : vector<8x512xf32> to vector<8x128xf32>
    %264 = math.tanh %263 : vector<8x128xf32>
    %265 = vector.extract_strided_slice %250 {offsets = [0, 384], sizes = [8, 128], strides = [1, 1]} : vector<8x512xf32> to vector<8x128xf32>
    %266 = arith.negf %265 : vector<8x128xf32>
    %267 = math.exp %266 : vector<8x128xf32>
    %cst_70 = arith.constant 1.000000e+00 : f32
    %268 = vector.broadcast %cst_70 : f32 to vector<8x128xf32>
    %269 = arith.addf %268, %267 : vector<8x128xf32>
    %270 = arith.divf %268, %269 : vector<8x128xf32>
    %271 = arith.mulf %262, %234 : vector<8x128xf32>
    %272 = arith.mulf %256, %264 : vector<8x128xf32>
    %273 = arith.addf %271, %272 : vector<8x128xf32>
    %274 = math.tanh %273 : vector<8x128xf32>
    %275 = arith.mulf %270, %274 : vector<8x128xf32>
    %276 = arith.truncf %275 : vector<8x128xf32> to vector<8x128xbf16>
    %277 = arith.index_cast %c6_i32 : i32 to index
    %c0_71 = arith.constant 0 : index
    %c0_72 = arith.constant 0 : index
    %278 = vector.load %arg8[%277, %c0_71, %c0_72] : memref<8x8x128xbf16, #tpu.memory_space<vmem>>, vector<1x8x128xbf16>
    %279 = vector.shape_cast %278 : vector<1x8x128xbf16> to vector<8x128xbf16>
    %280 = vector.shape_cast %276 : vector<8x128xbf16> to vector<1x8x128xbf16>
    tpu.vector_store %arg8[%277, %c0_71, %c0_72], %280 {strides = array<i32>} : memref<8x8x128xbf16, #tpu.memory_space<vmem>>, vector<1x8x128xbf16>,
    %c7_i32 = arith.constant 7 : i32
    %281 = arith.index_cast %c7_i32 : i32 to index
    %c0_73 = arith.constant 0 : index
    %c0_74 = arith.constant 0 : index
    %282 = vector.load %arg2[%281, %c0_73, %c0_74] : memref<8x8x128xbf16, #tpu.memory_space<vmem>>, vector<1x8x128xbf16>
    %283 = vector.shape_cast %282 : vector<1x8x128xbf16> to vector<8x128xbf16>
    %cst_75 = arith.constant dense<0.000000e+00> : vector<8x512xf32>
    %284 = tpu.matmul %283, %3, %cst_75 {dimension_numbers = #tpu.dot_dimension_numbers<[1], [0], [0], [1], [0, 0, 1, 1], [], []>} : vector<8x128xbf16>, vector<128x512xbf16>, vector<8x512xf32> -> vector<8x512xf32>
    %285 = arith.truncf %275 : vector<8x128xf32> to vector<8x128xbf16>
    %cst_76 = arith.constant dense<0.000000e+00> : vector<8x512xf32>
    %286 = tpu.matmul %285, %4, %cst_76 {dimension_numbers = #tpu.dot_dimension_numbers<[1], [0], [0], [1], [0, 0, 1, 1], [], []>} : vector<8x128xbf16>, vector<128x512xbf16>, vector<8x512xf32> -> vector<8x512xf32>
    %287 = arith.addf %284, %286 : vector<8x512xf32>
    %288 = vector.broadcast %5 : vector<1x512xf32> to vector<8x512xf32>
    %289 = arith.addf %287, %288 : vector<8x512xf32>
    %290 = vector.extract_strided_slice %289 {offsets = [0, 0], sizes = [8, 128], strides = [1, 1]} : vector<8x512xf32> to vector<8x128xf32>
    %291 = arith.negf %290 : vector<8x128xf32>
    %292 = math.exp %291 : vector<8x128xf32>
    %cst_77 = arith.constant 1.000000e+00 : f32
    %293 = vector.broadcast %cst_77 : f32 to vector<8x128xf32>
    %294 = arith.addf %293, %292 : vector<8x128xf32>
    %295 = arith.divf %293, %294 : vector<8x128xf32>
    %296 = vector.extract_strided_slice %289 {offsets = [0, 128], sizes = [8, 128], strides = [1, 1]} : vector<8x512xf32> to vector<8x128xf32>
    %297 = arith.negf %296 : vector<8x128xf32>
    %298 = math.exp %297 : vector<8x128xf32>
    %cst_78 = arith.constant 1.000000e+00 : f32
    %299 = vector.broadcast %cst_78 : f32 to vector<8x128xf32>
    %300 = arith.addf %299, %298 : vector<8x128xf32>
    %301 = arith.divf %299, %300 : vector<8x128xf32>
    %302 = vector.extract_strided_slice %289 {offsets = [0, 256], sizes = [8, 128], strides = [1, 1]} : vector<8x512xf32> to vector<8x128xf32>
    %303 = math.tanh %302 : vector<8x128xf32>
    %304 = vector.extract_strided_slice %289 {offsets = [0, 384], sizes = [8, 128], strides = [1, 1]} : vector<8x512xf32> to vector<8x128xf32>
    %305 = arith.negf %304 : vector<8x128xf32>
    %306 = math.exp %305 : vector<8x128xf32>
    %cst_79 = arith.constant 1.000000e+00 : f32
    %307 = vector.broadcast %cst_79 : f32 to vector<8x128xf32>
    %308 = arith.addf %307, %306 : vector<8x128xf32>
    %309 = arith.divf %307, %308 : vector<8x128xf32>
    %310 = arith.mulf %301, %273 : vector<8x128xf32>
    %311 = arith.mulf %295, %303 : vector<8x128xf32>
    %312 = arith.addf %310, %311 : vector<8x128xf32>
    %313 = math.tanh %312 : vector<8x128xf32>
    %314 = arith.mulf %309, %313 : vector<8x128xf32>
    %315 = arith.truncf %314 : vector<8x128xf32> to vector<8x128xbf16>
    %316 = arith.index_cast %c7_i32 : i32 to index
    %c0_80 = arith.constant 0 : index
    %c0_81 = arith.constant 0 : index
    %317 = vector.load %arg8[%316, %c0_80, %c0_81] : memref<8x8x128xbf16, #tpu.memory_space<vmem>>, vector<1x8x128xbf16>
    %318 = vector.shape_cast %317 : vector<1x8x128xbf16> to vector<8x128xbf16>
    %319 = vector.shape_cast %315 : vector<8x128xbf16> to vector<1x8x128xbf16>
    tpu.vector_store %arg8[%316, %c0_80, %c0_81], %319 {strides = array<i32>} : memref<8x8x128xbf16, #tpu.memory_space<vmem>>, vector<1x8x128xbf16>,
    %c8_i32 = arith.constant 8 : i32
    %c0_i32_82 = arith.constant 0 : i32
    %320 = arith.cmpi slt, %arg1, %c0_i32_82 : i32
    %321 = arith.extui %320 : i1 to i32
    %c0_i32_83 = arith.constant 0 : i32
    %322 = arith.cmpi ne, %321, %c0_i32_83 : i32
    scf.if %322 {
      %c0_86 = arith.constant 0 : index
      %c0_87 = arith.constant 0 : index
      %326 = vector.load %arg11[%c0_86, %c0_87] : memref<8x128xf32, #tpu.memory_space<vmem>>, vector<8x128xf32>
      tpu.vector_store %arg11[%c0_86, %c0_87], %314 {strides = array<i32>} : memref<8x128xf32, #tpu.memory_space<vmem>>, vector<8x128xf32>,
      %c0_88 = arith.constant 0 : index
      %c0_89 = arith.constant 0 : index
      %327 = vector.load %arg12[%c0_88, %c0_89] : memref<8x128xf32, #tpu.memory_space<vmem>>, vector<8x128xf32>
      tpu.vector_store %arg12[%c0_88, %c0_89], %312 {strides = array<i32>} : memref<8x128xf32, #tpu.memory_space<vmem>>, vector<8x128xf32>,
    } else {
    }
    %c0_i32_84 = arith.constant 0 : i32
    %323 = arith.cmpi eq, %arg1, %c0_i32_84 : i32
    %324 = arith.extui %323 : i1 to i32
    %c0_i32_85 = arith.constant 0 : i32
    %325 = arith.cmpi ne, %324, %c0_i32_85 : i32
    scf.if %325 {
      %c0_86 = arith.constant 0 : index
      %c0_87 = arith.constant 0 : index
      %326 = vector.load %arg9[%c0_86, %c0_87] : memref<8x128xf32, #tpu.memory_space<vmem>>, vector<8x128xf32>
      tpu.vector_store %arg9[%c0_86, %c0_87], %314 {strides = array<i32>} : memref<8x128xf32, #tpu.memory_space<vmem>>, vector<8x128xf32>,
      %c0_88 = arith.constant 0 : index
      %c0_89 = arith.constant 0 : index
      %327 = vector.load %arg10[%c0_88, %c0_89] : memref<8x128xf32, #tpu.memory_space<vmem>>, vector<8x128xf32>
      tpu.vector_store %arg10[%c0_88, %c0_89], %312 {strides = array<i32>} : memref<8x128xf32, #tpu.memory_space<vmem>>, vector<8x128xf32>,
    } else {
    }
    return
  }
  func.func @transform_0(%arg0: i32, %arg1: i32) -> (i32, i32, i32) {
    %c0_i32 = arith.constant 0 : i32
    %c0_i32_0 = arith.constant 0 : i32
    return %arg1, %arg0, %c0_i32 : i32, i32, i32
  }
  func.func @transform_1(%arg0: i32, %arg1: i32) -> (i32, i32) {
    %c0_i32 = arith.constant 0 : i32
    %c0_i32_0 = arith.constant 0 : i32
    %c0_i32_1 = arith.constant 0 : i32
    return %c0_i32, %c0_i32_0 : i32, i32
  }
  func.func @transform_2(%arg0: i32, %arg1: i32) -> (i32, i32) {
    %c0_i32 = arith.constant 0 : i32
    %c0_i32_0 = arith.constant 0 : i32
    %c0_i32_1 = arith.constant 0 : i32
    return %c0_i32, %c0_i32_0 : i32, i32
  }
  func.func @transform_3(%arg0: i32, %arg1: i32) -> (i32, i32) {
    %c0_i32 = arith.constant 0 : i32
    %c0_i32_0 = arith.constant 0 : i32
    %c0_i32_1 = arith.constant 0 : i32
    return %c0_i32, %c0_i32_0 : i32, i32
  }
  func.func @transform_4(%arg0: i32, %arg1: i32) -> (i32, i32) {
    %c0_i32 = arith.constant 0 : i32
    %c0_i32_0 = arith.constant 0 : i32
    return %arg0, %c0_i32 : i32, i32
  }
  func.func @transform_5(%arg0: i32, %arg1: i32) -> (i32, i32) {
    %c0_i32 = arith.constant 0 : i32
    %c0_i32_0 = arith.constant 0 : i32
    return %arg0, %c0_i32 : i32, i32
  }
  func.func @transform_6(%arg0: i32, %arg1: i32) -> (i32, i32, i32) {
    %c0_i32 = arith.constant 0 : i32
    %c0_i32_0 = arith.constant 0 : i32
    return %arg1, %arg0, %c0_i32 : i32, i32, i32
  }
  func.func @transform_7(%arg0: i32, %arg1: i32) -> (i32, i32) {
    %c0_i32 = arith.constant 0 : i32
    %c0_i32_0 = arith.constant 0 : i32
    return %arg0, %c0_i32 : i32, i32
  }
  func.func @transform_8(%arg0: i32, %arg1: i32) -> (i32, i32) {
    %c0_i32 = arith.constant 0 : i32
    %c0_i32_0 = arith.constant 0 : i32
    return %arg0, %c0_i32 : i32, i32
  }
}

module attributes {stable_mosaic.version = 11 : i64} {
  func.func @_lstm_layer_kernel(%arg0: i32, %arg1: i32, %arg2: memref<8x8x32xbf16, #tpu.memory_space<vmem>>, %arg3: memref<32x512xbf16, #tpu.memory_space<vmem>>, %arg4: memref<128x512xbf16, #tpu.memory_space<vmem>>, %arg5: memref<1x512xf32, #tpu.memory_space<vmem>>, %arg6: memref<8x128xf32, #tpu.memory_space<vmem>>, %arg7: memref<8x128xf32, #tpu.memory_space<vmem>>, %arg8: memref<8x8x128xbf16, #tpu.memory_space<vmem>>, %arg9: memref<8x128xf32, #tpu.memory_space<vmem>>, %arg10: memref<8x128xf32, #tpu.memory_space<vmem>>, %arg11: memref<8x128xf32, #tpu.memory_space<vmem>>, %arg12: memref<8x128xf32, #tpu.memory_space<vmem>>) attributes {dimension_semantics = [#tpu.dimension_semantics<parallel>, #tpu.dimension_semantics<arbitrary>], iteration_bounds = array<i64: 1, 1>, scalar_prefetch = 0 : i64, scratch_operands = 2 : i64, tpu.core_type = #tpu.core_type<tc>, window_params = [{transform_indices = @transform_0, window_bounds = array<i64: 8, 8, 32>}, {pipeline_mode = #tpu.pipeline_mode<synchronous>, transform_indices = @transform_1, window_bounds = array<i64: 32, 512>}, {pipeline_mode = #tpu.pipeline_mode<synchronous>, transform_indices = @transform_2, window_bounds = array<i64: 128, 512>}, {pipeline_mode = #tpu.pipeline_mode<synchronous>, transform_indices = @transform_3, window_bounds = array<i64: 1, 512>}, {transform_indices = @transform_4, window_bounds = array<i64: 8, 128>}, {transform_indices = @transform_5, window_bounds = array<i64: 8, 128>}, {transform_indices = @transform_6, window_bounds = array<i64: 8, 8, 128>}, {transform_indices = @transform_7, window_bounds = array<i64: 8, 128>}, {transform_indices = @transform_8, window_bounds = array<i64: 8, 128>}]} {
    %c0_i32 = arith.constant 0 : i32
    %0 = arith.cmpi eq, %arg1, %c0_i32 : i32
    %1 = arith.extui %0 : i1 to i32
    %c0_i32_0 = arith.constant 0 : i32
    %2 = arith.cmpi ne, %1, %c0_i32_0 : i32
    scf.if %2 {
      %c0_86 = arith.constant 0 : index
      %c0_87 = arith.constant 0 : index
      %326 = vector.load %arg6[%c0_86, %c0_87] : memref<8x128xf32, #tpu.memory_space<vmem>>, vector<8x128xf32>
      %c0_88 = arith.constant 0 : index
      %c0_89 = arith.constant 0 : index
      %327 = vector.load %arg11[%c0_88, %c0_89] : memref<8x128xf32, #tpu.memory_space<vmem>>, vector<8x128xf32>
      tpu.vector_store %arg11[%c0_88, %c0_89], %326 {strides = array<i32>} : memref<8x128xf32, #tpu.memory_space<vmem>>, vector<8x128xf32>,
      %c0_90 = arith.constant 0 : index
      %c0_91 = arith.constant 0 : index
      %328 = vector.load %arg7[%c0_90, %c0_91] : memref<8x128xf32, #tpu.memory_space<vmem>>, vector<8x128xf32>
      %c0_92 = arith.constant 0 : index
      %c0_93 = arith.constant 0 : index
      %329 = vector.load %arg12[%c0_92, %c0_93] : memref<8x128xf32, #tpu.memory_space<vmem>>, vector<8x128xf32>
      tpu.vector_store %arg12[%c0_92, %c0_93], %328 {strides = array<i32>} : memref<8x128xf32, #tpu.memory_space<vmem>>, vector<8x128xf32>,
    } else {
    }
    %c0 = arith.constant 0 : index
    %c0_1 = arith.constant 0 : index
    %3 = vector.load %arg3[%c0, %c0_1] : memref<32x512xbf16, #tpu.memory_space<vmem>>, vector<32x512xbf16>
    %c0_2 = arith.constant 0 : index
    %c0_3 = arith.constant 0 : index
    %4 = vector.load %arg4[%c0_2, %c0_3] : memref<128x512xbf16, #tpu.memory_space<vmem>>, vector<128x512xbf16>
    %c0_4 = arith.constant 0 : index
    %c0_5 = arith.constant 0 : index
    %5 = vector.load %arg5[%c0_4, %c0_5] : memref<1x512xf32, #tpu.memory_space<vmem>>, vector<1x512xf32>
    %c0_6 = arith.constant 0 : index
    %c0_7 = arith.constant 0 : index
    %6 = vector.load %arg11[%c0_6, %c0_7] : memref<8x128xf32, #tpu.memory_space<vmem>>, vector<8x128xf32>
    %c0_8 = arith.constant 0 : index
    %c0_9 = arith.constant 0 : index
    %7 = vector.load %arg12[%c0_8, %c0_9] : memref<8x128xf32, #tpu.memory_space<vmem>>, vector<8x128xf32>
    %c0_i32_10 = arith.constant 0 : i32
    %8 = arith.index_cast %c0_i32_10 : i32 to index
    %c0_11 = arith.constant 0 : index
    %c0_12 = arith.constant 0 : index
    %9 = vector.load %arg2[%8, %c0_11, %c0_12] : memref<8x8x32xbf16, #tpu.memory_space<vmem>>, vector<1x8x32xbf16>
    %10 = vector.shape_cast %9 : vector<1x8x32xbf16> to vector<8x32xbf16>
    %cst = arith.constant dense<0.000000e+00> : vector<8x512xf32>
    %11 = tpu.matmul %10, %3, %cst {dimension_numbers = #tpu.dot_dimension_numbers<[1], [0], [0], [1], [0, 0, 1, 1], [], []>} : vector<8x32xbf16>, vector<32x512xbf16>, vector<8x512xf32> -> vector<8x512xf32>
    %12 = arith.truncf %6 : vector<8x128xf32> to vector<8x128xbf16>
    %cst_13 = arith.constant dense<0.000000e+00> : vector<8x512xf32>
    %13 = tpu.matmul %12, %4, %cst_13 {dimension_numbers = #tpu.dot_dimension_numbers<[1], [0], [0], [1], [0, 0, 1, 1], [], []>} : vector<8x128xbf16>, vector<128x512xbf16>, vector<8x512xf32> -> vector<8x512xf32>
    %14 = arith.addf %11, %13 : vector<8x512xf32>
    %15 = vector.broadcast %5 : vector<1x512xf32> to vector<8x512xf32>
    %16 = arith.addf %14, %15 : vector<8x512xf32>
    %17 = vector.extract_strided_slice %16 {offsets = [0, 0], sizes = [8, 128], strides = [1, 1]} : vector<8x512xf32> to vector<8x128xf32>
    %18 = arith.negf %17 : vector<8x128xf32>
    %19 = math.exp %18 : vector<8x128xf32>
    %cst_14 = arith.constant 1.000000e+00 : f32
    %20 = vector.broadcast %cst_14 : f32 to vector<8x128xf32>
    %21 = arith.addf %20, %19 : vector<8x128xf32>
    %22 = arith.divf %20, %21 : vector<8x128xf32>
    %23 = vector.extract_strided_slice %16 {offsets = [0, 128], sizes = [8, 128], strides = [1, 1]} : vector<8x512xf32> to vector<8x128xf32>
    %24 = arith.negf %23 : vector<8x128xf32>
    %25 = math.exp %24 : vector<8x128xf32>
    %cst_15 = arith.constant 1.000000e+00 : f32
    %26 = vector.broadcast %cst_15 : f32 to vector<8x128xf32>
    %27 = arith.addf %26, %25 : vector<8x128xf32>
    %28 = arith.divf %26, %27 : vector<8x128xf32>
    %29 = vector.extract_strided_slice %16 {offsets = [0, 256], sizes = [8, 128], strides = [1, 1]} : vector<8x512xf32> to vector<8x128xf32>
    %30 = math.tanh %29 : vector<8x128xf32>
    %31 = vector.extract_strided_slice %16 {offsets = [0, 384], sizes = [8, 128], strides = [1, 1]} : vector<8x512xf32> to vector<8x128xf32>
    %32 = arith.negf %31 : vector<8x128xf32>
    %33 = math.exp %32 : vector<8x128xf32>
    %cst_16 = arith.constant 1.000000e+00 : f32
    %34 = vector.broadcast %cst_16 : f32 to vector<8x128xf32>
    %35 = arith.addf %34, %33 : vector<8x128xf32>
    %36 = arith.divf %34, %35 : vector<8x128xf32>
    %37 = arith.mulf %28, %7 : vector<8x128xf32>
    %38 = arith.mulf %22, %30 : vector<8x128xf32>
    %39 = arith.addf %37, %38 : vector<8x128xf32>
    %40 = math.tanh %39 : vector<8x128xf32>
    %41 = arith.mulf %36, %40 : vector<8x128xf32>
    %42 = arith.truncf %41 : vector<8x128xf32> to vector<8x128xbf16>
    %43 = arith.index_cast %c0_i32_10 : i32 to index
    %c0_17 = arith.constant 0 : index
    %c0_18 = arith.constant 0 : index
    %44 = vector.load %arg8[%43, %c0_17, %c0_18] : memref<8x8x128xbf16, #tpu.memory_space<vmem>>, vector<1x8x128xbf16>
    %45 = vector.shape_cast %44 : vector<1x8x128xbf16> to vector<8x128xbf16>
    %46 = vector.shape_cast %42 : vector<8x128xbf16> to vector<1x8x128xbf16>
    tpu.vector_store %arg8[%43, %c0_17, %c0_18], %46 {strides = array<i32>} : memref<8x8x128xbf16, #tpu.memory_space<vmem>>, vector<1x8x128xbf16>,
    %c1_i32 = arith.constant 1 : i32
    %47 = arith.index_cast %c1_i32 : i32 to index
    %c0_19 = arith.constant 0 : index
    %c0_20 = arith.constant 0 : index
    %48 = vector.load %arg2[%47, %c0_19, %c0_20] : memref<8x8x32xbf16, #tpu.memory_space<vmem>>, vector<1x8x32xbf16>
    %49 = vector.shape_cast %48 : vector<1x8x32xbf16> to vector<8x32xbf16>
    %cst_21 = arith.constant dense<0.000000e+00> : vector<8x512xf32>
    %50 = tpu.matmul %49, %3, %cst_21 {dimension_numbers = #tpu.dot_dimension_numbers<[1], [0], [0], [1], [0, 0, 1, 1], [], []>} : vector<8x32xbf16>, vector<32x512xbf16>, vector<8x512xf32> -> vector<8x512xf32>
    %51 = arith.truncf %41 : vector<8x128xf32> to vector<8x128xbf16>
    %cst_22 = arith.constant dense<0.000000e+00> : vector<8x512xf32>
    %52 = tpu.matmul %51, %4, %cst_22 {dimension_numbers = #tpu.dot_dimension_numbers<[1], [0], [0], [1], [0, 0, 1, 1], [], []>} : vector<8x128xbf16>, vector<128x512xbf16>, vector<8x512xf32> -> vector<8x512xf32>
    %53 = arith.addf %50, %52 : vector<8x512xf32>
    %54 = vector.broadcast %5 : vector<1x512xf32> to vector<8x512xf32>
    %55 = arith.addf %53, %54 : vector<8x512xf32>
    %56 = vector.extract_strided_slice %55 {offsets = [0, 0], sizes = [8, 128], strides = [1, 1]} : vector<8x512xf32> to vector<8x128xf32>
    %57 = arith.negf %56 : vector<8x128xf32>
    %58 = math.exp %57 : vector<8x128xf32>
    %cst_23 = arith.constant 1.000000e+00 : f32
    %59 = vector.broadcast %cst_23 : f32 to vector<8x128xf32>
    %60 = arith.addf %59, %58 : vector<8x128xf32>
    %61 = arith.divf %59, %60 : vector<8x128xf32>
    %62 = vector.extract_strided_slice %55 {offsets = [0, 128], sizes = [8, 128], strides = [1, 1]} : vector<8x512xf32> to vector<8x128xf32>
    %63 = arith.negf %62 : vector<8x128xf32>
    %64 = math.exp %63 : vector<8x128xf32>
    %cst_24 = arith.constant 1.000000e+00 : f32
    %65 = vector.broadcast %cst_24 : f32 to vector<8x128xf32>
    %66 = arith.addf %65, %64 : vector<8x128xf32>
    %67 = arith.divf %65, %66 : vector<8x128xf32>
    %68 = vector.extract_strided_slice %55 {offsets = [0, 256], sizes = [8, 128], strides = [1, 1]} : vector<8x512xf32> to vector<8x128xf32>
    %69 = math.tanh %68 : vector<8x128xf32>
    %70 = vector.extract_strided_slice %55 {offsets = [0, 384], sizes = [8, 128], strides = [1, 1]} : vector<8x512xf32> to vector<8x128xf32>
    %71 = arith.negf %70 : vector<8x128xf32>
    %72 = math.exp %71 : vector<8x128xf32>
    %cst_25 = arith.constant 1.000000e+00 : f32
    %73 = vector.broadcast %cst_25 : f32 to vector<8x128xf32>
    %74 = arith.addf %73, %72 : vector<8x128xf32>
    %75 = arith.divf %73, %74 : vector<8x128xf32>
    %76 = arith.mulf %67, %39 : vector<8x128xf32>
    %77 = arith.mulf %61, %69 : vector<8x128xf32>
    %78 = arith.addf %76, %77 : vector<8x128xf32>
    %79 = math.tanh %78 : vector<8x128xf32>
    %80 = arith.mulf %75, %79 : vector<8x128xf32>
    %81 = arith.truncf %80 : vector<8x128xf32> to vector<8x128xbf16>
    %82 = arith.index_cast %c1_i32 : i32 to index
    %c0_26 = arith.constant 0 : index
    %c0_27 = arith.constant 0 : index
    %83 = vector.load %arg8[%82, %c0_26, %c0_27] : memref<8x8x128xbf16, #tpu.memory_space<vmem>>, vector<1x8x128xbf16>
    %84 = vector.shape_cast %83 : vector<1x8x128xbf16> to vector<8x128xbf16>
    %85 = vector.shape_cast %81 : vector<8x128xbf16> to vector<1x8x128xbf16>
    tpu.vector_store %arg8[%82, %c0_26, %c0_27], %85 {strides = array<i32>} : memref<8x8x128xbf16, #tpu.memory_space<vmem>>, vector<1x8x128xbf16>,
    %c2_i32 = arith.constant 2 : i32
    %86 = arith.index_cast %c2_i32 : i32 to index
    %c0_28 = arith.constant 0 : index
    %c0_29 = arith.constant 0 : index
    %87 = vector.load %arg2[%86, %c0_28, %c0_29] : memref<8x8x32xbf16, #tpu.memory_space<vmem>>, vector<1x8x32xbf16>
    %88 = vector.shape_cast %87 : vector<1x8x32xbf16> to vector<8x32xbf16>
    %cst_30 = arith.constant dense<0.000000e+00> : vector<8x512xf32>
    %89 = tpu.matmul %88, %3, %cst_30 {dimension_numbers = #tpu.dot_dimension_numbers<[1], [0], [0], [1], [0, 0, 1, 1], [], []>} : vector<8x32xbf16>, vector<32x512xbf16>, vector<8x512xf32> -> vector<8x512xf32>
    %90 = arith.truncf %80 : vector<8x128xf32> to vector<8x128xbf16>
    %cst_31 = arith.constant dense<0.000000e+00> : vector<8x512xf32>
    %91 = tpu.matmul %90, %4, %cst_31 {dimension_numbers = #tpu.dot_dimension_numbers<[1], [0], [0], [1], [0, 0, 1, 1], [], []>} : vector<8x128xbf16>, vector<128x512xbf16>, vector<8x512xf32> -> vector<8x512xf32>
    %92 = arith.addf %89, %91 : vector<8x512xf32>
    %93 = vector.broadcast %5 : vector<1x512xf32> to vector<8x512xf32>
    %94 = arith.addf %92, %93 : vector<8x512xf32>
    %95 = vector.extract_strided_slice %94 {offsets = [0, 0], sizes = [8, 128], strides = [1, 1]} : vector<8x512xf32> to vector<8x128xf32>
    %96 = arith.negf %95 : vector<8x128xf32>
    %97 = math.exp %96 : vector<8x128xf32>
    %cst_32 = arith.constant 1.000000e+00 : f32
    %98 = vector.broadcast %cst_32 : f32 to vector<8x128xf32>
    %99 = arith.addf %98, %97 : vector<8x128xf32>
    %100 = arith.divf %98, %99 : vector<8x128xf32>
    %101 = vector.extract_strided_slice %94 {offsets = [0, 128], sizes = [8, 128], strides = [1, 1]} : vector<8x512xf32> to vector<8x128xf32>
    %102 = arith.negf %101 : vector<8x128xf32>
    %103 = math.exp %102 : vector<8x128xf32>
    %cst_33 = arith.constant 1.000000e+00 : f32
    %104 = vector.broadcast %cst_33 : f32 to vector<8x128xf32>
    %105 = arith.addf %104, %103 : vector<8x128xf32>
    %106 = arith.divf %104, %105 : vector<8x128xf32>
    %107 = vector.extract_strided_slice %94 {offsets = [0, 256], sizes = [8, 128], strides = [1, 1]} : vector<8x512xf32> to vector<8x128xf32>
    %108 = math.tanh %107 : vector<8x128xf32>
    %109 = vector.extract_strided_slice %94 {offsets = [0, 384], sizes = [8, 128], strides = [1, 1]} : vector<8x512xf32> to vector<8x128xf32>
    %110 = arith.negf %109 : vector<8x128xf32>
    %111 = math.exp %110 : vector<8x128xf32>
    %cst_34 = arith.constant 1.000000e+00 : f32
    %112 = vector.broadcast %cst_34 : f32 to vector<8x128xf32>
    %113 = arith.addf %112, %111 : vector<8x128xf32>
    %114 = arith.divf %112, %113 : vector<8x128xf32>
    %115 = arith.mulf %106, %78 : vector<8x128xf32>
    %116 = arith.mulf %100, %108 : vector<8x128xf32>
    %117 = arith.addf %115, %116 : vector<8x128xf32>
    %118 = math.tanh %117 : vector<8x128xf32>
    %119 = arith.mulf %114, %118 : vector<8x128xf32>
    %120 = arith.truncf %119 : vector<8x128xf32> to vector<8x128xbf16>
    %121 = arith.index_cast %c2_i32 : i32 to index
    %c0_35 = arith.constant 0 : index
    %c0_36 = arith.constant 0 : index
    %122 = vector.load %arg8[%121, %c0_35, %c0_36] : memref<8x8x128xbf16, #tpu.memory_space<vmem>>, vector<1x8x128xbf16>
    %123 = vector.shape_cast %122 : vector<1x8x128xbf16> to vector<8x128xbf16>
    %124 = vector.shape_cast %120 : vector<8x128xbf16> to vector<1x8x128xbf16>
    tpu.vector_store %arg8[%121, %c0_35, %c0_36], %124 {strides = array<i32>} : memref<8x8x128xbf16, #tpu.memory_space<vmem>>, vector<1x8x128xbf16>,
    %c3_i32 = arith.constant 3 : i32
    %125 = arith.index_cast %c3_i32 : i32 to index
    %c0_37 = arith.constant 0 : index
    %c0_38 = arith.constant 0 : index
    %126 = vector.load %arg2[%125, %c0_37, %c0_38] : memref<8x8x32xbf16, #tpu.memory_space<vmem>>, vector<1x8x32xbf16>
    %127 = vector.shape_cast %126 : vector<1x8x32xbf16> to vector<8x32xbf16>
    %cst_39 = arith.constant dense<0.000000e+00> : vector<8x512xf32>
    %128 = tpu.matmul %127, %3, %cst_39 {dimension_numbers = #tpu.dot_dimension_numbers<[1], [0], [0], [1], [0, 0, 1, 1], [], []>} : vector<8x32xbf16>, vector<32x512xbf16>, vector<8x512xf32> -> vector<8x512xf32>
    %129 = arith.truncf %119 : vector<8x128xf32> to vector<8x128xbf16>
    %cst_40 = arith.constant dense<0.000000e+00> : vector<8x512xf32>
    %130 = tpu.matmul %129, %4, %cst_40 {dimension_numbers = #tpu.dot_dimension_numbers<[1], [0], [0], [1], [0, 0, 1, 1], [], []>} : vector<8x128xbf16>, vector<128x512xbf16>, vector<8x512xf32> -> vector<8x512xf32>
    %131 = arith.addf %128, %130 : vector<8x512xf32>
    %132 = vector.broadcast %5 : vector<1x512xf32> to vector<8x512xf32>
    %133 = arith.addf %131, %132 : vector<8x512xf32>
    %134 = vector.extract_strided_slice %133 {offsets = [0, 0], sizes = [8, 128], strides = [1, 1]} : vector<8x512xf32> to vector<8x128xf32>
    %135 = arith.negf %134 : vector<8x128xf32>
    %136 = math.exp %135 : vector<8x128xf32>
    %cst_41 = arith.constant 1.000000e+00 : f32
    %137 = vector.broadcast %cst_41 : f32 to vector<8x128xf32>
    %138 = arith.addf %137, %136 : vector<8x128xf32>
    %139 = arith.divf %137, %138 : vector<8x128xf32>
    %140 = vector.extract_strided_slice %133 {offsets = [0, 128], sizes = [8, 128], strides = [1, 1]} : vector<8x512xf32> to vector<8x128xf32>
    %141 = arith.negf %140 : vector<8x128xf32>
    %142 = math.exp %141 : vector<8x128xf32>
    %cst_42 = arith.constant 1.000000e+00 : f32
    %143 = vector.broadcast %cst_42 : f32 to vector<8x128xf32>
    %144 = arith.addf %143, %142 : vector<8x128xf32>
    %145 = arith.divf %143, %144 : vector<8x128xf32>
    %146 = vector.extract_strided_slice %133 {offsets = [0, 256], sizes = [8, 128], strides = [1, 1]} : vector<8x512xf32> to vector<8x128xf32>
    %147 = math.tanh %146 : vector<8x128xf32>
    %148 = vector.extract_strided_slice %133 {offsets = [0, 384], sizes = [8, 128], strides = [1, 1]} : vector<8x512xf32> to vector<8x128xf32>
    %149 = arith.negf %148 : vector<8x128xf32>
    %150 = math.exp %149 : vector<8x128xf32>
    %cst_43 = arith.constant 1.000000e+00 : f32
    %151 = vector.broadcast %cst_43 : f32 to vector<8x128xf32>
    %152 = arith.addf %151, %150 : vector<8x128xf32>
    %153 = arith.divf %151, %152 : vector<8x128xf32>
    %154 = arith.mulf %145, %117 : vector<8x128xf32>
    %155 = arith.mulf %139, %147 : vector<8x128xf32>
    %156 = arith.addf %154, %155 : vector<8x128xf32>
    %157 = math.tanh %156 : vector<8x128xf32>
    %158 = arith.mulf %153, %157 : vector<8x128xf32>
    %159 = arith.truncf %158 : vector<8x128xf32> to vector<8x128xbf16>
    %160 = arith.index_cast %c3_i32 : i32 to index
    %c0_44 = arith.constant 0 : index
    %c0_45 = arith.constant 0 : index
    %161 = vector.load %arg8[%160, %c0_44, %c0_45] : memref<8x8x128xbf16, #tpu.memory_space<vmem>>, vector<1x8x128xbf16>
    %162 = vector.shape_cast %161 : vector<1x8x128xbf16> to vector<8x128xbf16>
    %163 = vector.shape_cast %159 : vector<8x128xbf16> to vector<1x8x128xbf16>
    tpu.vector_store %arg8[%160, %c0_44, %c0_45], %163 {strides = array<i32>} : memref<8x8x128xbf16, #tpu.memory_space<vmem>>, vector<1x8x128xbf16>,
    %c4_i32 = arith.constant 4 : i32
    %164 = arith.index_cast %c4_i32 : i32 to index
    %c0_46 = arith.constant 0 : index
    %c0_47 = arith.constant 0 : index
    %165 = vector.load %arg2[%164, %c0_46, %c0_47] : memref<8x8x32xbf16, #tpu.memory_space<vmem>>, vector<1x8x32xbf16>
    %166 = vector.shape_cast %165 : vector<1x8x32xbf16> to vector<8x32xbf16>
    %cst_48 = arith.constant dense<0.000000e+00> : vector<8x512xf32>
    %167 = tpu.matmul %166, %3, %cst_48 {dimension_numbers = #tpu.dot_dimension_numbers<[1], [0], [0], [1], [0, 0, 1, 1], [], []>} : vector<8x32xbf16>, vector<32x512xbf16>, vector<8x512xf32> -> vector<8x512xf32>
    %168 = arith.truncf %158 : vector<8x128xf32> to vector<8x128xbf16>
    %cst_49 = arith.constant dense<0.000000e+00> : vector<8x512xf32>
    %169 = tpu.matmul %168, %4, %cst_49 {dimension_numbers = #tpu.dot_dimension_numbers<[1], [0], [0], [1], [0, 0, 1, 1], [], []>} : vector<8x128xbf16>, vector<128x512xbf16>, vector<8x512xf32> -> vector<8x512xf32>
    %170 = arith.addf %167, %169 : vector<8x512xf32>
    %171 = vector.broadcast %5 : vector<1x512xf32> to vector<8x512xf32>
    %172 = arith.addf %170, %171 : vector<8x512xf32>
    %173 = vector.extract_strided_slice %172 {offsets = [0, 0], sizes = [8, 128], strides = [1, 1]} : vector<8x512xf32> to vector<8x128xf32>
    %174 = arith.negf %173 : vector<8x128xf32>
    %175 = math.exp %174 : vector<8x128xf32>
    %cst_50 = arith.constant 1.000000e+00 : f32
    %176 = vector.broadcast %cst_50 : f32 to vector<8x128xf32>
    %177 = arith.addf %176, %175 : vector<8x128xf32>
    %178 = arith.divf %176, %177 : vector<8x128xf32>
    %179 = vector.extract_strided_slice %172 {offsets = [0, 128], sizes = [8, 128], strides = [1, 1]} : vector<8x512xf32> to vector<8x128xf32>
    %180 = arith.negf %179 : vector<8x128xf32>
    %181 = math.exp %180 : vector<8x128xf32>
    %cst_51 = arith.constant 1.000000e+00 : f32
    %182 = vector.broadcast %cst_51 : f32 to vector<8x128xf32>
    %183 = arith.addf %182, %181 : vector<8x128xf32>
    %184 = arith.divf %182, %183 : vector<8x128xf32>
    %185 = vector.extract_strided_slice %172 {offsets = [0, 256], sizes = [8, 128], strides = [1, 1]} : vector<8x512xf32> to vector<8x128xf32>
    %186 = math.tanh %185 : vector<8x128xf32>
    %187 = vector.extract_strided_slice %172 {offsets = [0, 384], sizes = [8, 128], strides = [1, 1]} : vector<8x512xf32> to vector<8x128xf32>
    %188 = arith.negf %187 : vector<8x128xf32>
    %189 = math.exp %188 : vector<8x128xf32>
    %cst_52 = arith.constant 1.000000e+00 : f32
    %190 = vector.broadcast %cst_52 : f32 to vector<8x128xf32>
    %191 = arith.addf %190, %189 : vector<8x128xf32>
    %192 = arith.divf %190, %191 : vector<8x128xf32>
    %193 = arith.mulf %184, %156 : vector<8x128xf32>
    %194 = arith.mulf %178, %186 : vector<8x128xf32>
    %195 = arith.addf %193, %194 : vector<8x128xf32>
    %196 = math.tanh %195 : vector<8x128xf32>
    %197 = arith.mulf %192, %196 : vector<8x128xf32>
    %198 = arith.truncf %197 : vector<8x128xf32> to vector<8x128xbf16>
    %199 = arith.index_cast %c4_i32 : i32 to index
    %c0_53 = arith.constant 0 : index
    %c0_54 = arith.constant 0 : index
    %200 = vector.load %arg8[%199, %c0_53, %c0_54] : memref<8x8x128xbf16, #tpu.memory_space<vmem>>, vector<1x8x128xbf16>
    %201 = vector.shape_cast %200 : vector<1x8x128xbf16> to vector<8x128xbf16>
    %202 = vector.shape_cast %198 : vector<8x128xbf16> to vector<1x8x128xbf16>
    tpu.vector_store %arg8[%199, %c0_53, %c0_54], %202 {strides = array<i32>} : memref<8x8x128xbf16, #tpu.memory_space<vmem>>, vector<1x8x128xbf16>,
    %c5_i32 = arith.constant 5 : i32
    %203 = arith.index_cast %c5_i32 : i32 to index
    %c0_55 = arith.constant 0 : index
    %c0_56 = arith.constant 0 : index
    %204 = vector.load %arg2[%203, %c0_55, %c0_56] : memref<8x8x32xbf16, #tpu.memory_space<vmem>>, vector<1x8x32xbf16>
    %205 = vector.shape_cast %204 : vector<1x8x32xbf16> to vector<8x32xbf16>
    %cst_57 = arith.constant dense<0.000000e+00> : vector<8x512xf32>
    %206 = tpu.matmul %205, %3, %cst_57 {dimension_numbers = #tpu.dot_dimension_numbers<[1], [0], [0], [1], [0, 0, 1, 1], [], []>} : vector<8x32xbf16>, vector<32x512xbf16>, vector<8x512xf32> -> vector<8x512xf32>
    %207 = arith.truncf %197 : vector<8x128xf32> to vector<8x128xbf16>
    %cst_58 = arith.constant dense<0.000000e+00> : vector<8x512xf32>
    %208 = tpu.matmul %207, %4, %cst_58 {dimension_numbers = #tpu.dot_dimension_numbers<[1], [0], [0], [1], [0, 0, 1, 1], [], []>} : vector<8x128xbf16>, vector<128x512xbf16>, vector<8x512xf32> -> vector<8x512xf32>
    %209 = arith.addf %206, %208 : vector<8x512xf32>
    %210 = vector.broadcast %5 : vector<1x512xf32> to vector<8x512xf32>
    %211 = arith.addf %209, %210 : vector<8x512xf32>
    %212 = vector.extract_strided_slice %211 {offsets = [0, 0], sizes = [8, 128], strides = [1, 1]} : vector<8x512xf32> to vector<8x128xf32>
    %213 = arith.negf %212 : vector<8x128xf32>
    %214 = math.exp %213 : vector<8x128xf32>
    %cst_59 = arith.constant 1.000000e+00 : f32
    %215 = vector.broadcast %cst_59 : f32 to vector<8x128xf32>
    %216 = arith.addf %215, %214 : vector<8x128xf32>
    %217 = arith.divf %215, %216 : vector<8x128xf32>
    %218 = vector.extract_strided_slice %211 {offsets = [0, 128], sizes = [8, 128], strides = [1, 1]} : vector<8x512xf32> to vector<8x128xf32>
    %219 = arith.negf %218 : vector<8x128xf32>
    %220 = math.exp %219 : vector<8x128xf32>
    %cst_60 = arith.constant 1.000000e+00 : f32
    %221 = vector.broadcast %cst_60 : f32 to vector<8x128xf32>
    %222 = arith.addf %221, %220 : vector<8x128xf32>
    %223 = arith.divf %221, %222 : vector<8x128xf32>
    %224 = vector.extract_strided_slice %211 {offsets = [0, 256], sizes = [8, 128], strides = [1, 1]} : vector<8x512xf32> to vector<8x128xf32>
    %225 = math.tanh %224 : vector<8x128xf32>
    %226 = vector.extract_strided_slice %211 {offsets = [0, 384], sizes = [8, 128], strides = [1, 1]} : vector<8x512xf32> to vector<8x128xf32>
    %227 = arith.negf %226 : vector<8x128xf32>
    %228 = math.exp %227 : vector<8x128xf32>
    %cst_61 = arith.constant 1.000000e+00 : f32
    %229 = vector.broadcast %cst_61 : f32 to vector<8x128xf32>
    %230 = arith.addf %229, %228 : vector<8x128xf32>
    %231 = arith.divf %229, %230 : vector<8x128xf32>
    %232 = arith.mulf %223, %195 : vector<8x128xf32>
    %233 = arith.mulf %217, %225 : vector<8x128xf32>
    %234 = arith.addf %232, %233 : vector<8x128xf32>
    %235 = math.tanh %234 : vector<8x128xf32>
    %236 = arith.mulf %231, %235 : vector<8x128xf32>
    %237 = arith.truncf %236 : vector<8x128xf32> to vector<8x128xbf16>
    %238 = arith.index_cast %c5_i32 : i32 to index
    %c0_62 = arith.constant 0 : index
    %c0_63 = arith.constant 0 : index
    %239 = vector.load %arg8[%238, %c0_62, %c0_63] : memref<8x8x128xbf16, #tpu.memory_space<vmem>>, vector<1x8x128xbf16>
    %240 = vector.shape_cast %239 : vector<1x8x128xbf16> to vector<8x128xbf16>
    %241 = vector.shape_cast %237 : vector<8x128xbf16> to vector<1x8x128xbf16>
    tpu.vector_store %arg8[%238, %c0_62, %c0_63], %241 {strides = array<i32>} : memref<8x8x128xbf16, #tpu.memory_space<vmem>>, vector<1x8x128xbf16>,
    %c6_i32 = arith.constant 6 : i32
    %242 = arith.index_cast %c6_i32 : i32 to index
    %c0_64 = arith.constant 0 : index
    %c0_65 = arith.constant 0 : index
    %243 = vector.load %arg2[%242, %c0_64, %c0_65] : memref<8x8x32xbf16, #tpu.memory_space<vmem>>, vector<1x8x32xbf16>
    %244 = vector.shape_cast %243 : vector<1x8x32xbf16> to vector<8x32xbf16>
    %cst_66 = arith.constant dense<0.000000e+00> : vector<8x512xf32>
    %245 = tpu.matmul %244, %3, %cst_66 {dimension_numbers = #tpu.dot_dimension_numbers<[1], [0], [0], [1], [0, 0, 1, 1], [], []>} : vector<8x32xbf16>, vector<32x512xbf16>, vector<8x512xf32> -> vector<8x512xf32>
    %246 = arith.truncf %236 : vector<8x128xf32> to vector<8x128xbf16>
    %cst_67 = arith.constant dense<0.000000e+00> : vector<8x512xf32>
    %247 = tpu.matmul %246, %4, %cst_67 {dimension_numbers = #tpu.dot_dimension_numbers<[1], [0], [0], [1], [0, 0, 1, 1], [], []>} : vector<8x128xbf16>, vector<128x512xbf16>, vector<8x512xf32> -> vector<8x512xf32>
    %248 = arith.addf %245, %247 : vector<8x512xf32>
    %249 = vector.broadcast %5 : vector<1x512xf32> to vector<8x512xf32>
    %250 = arith.addf %248, %249 : vector<8x512xf32>
    %251 = vector.extract_strided_slice %250 {offsets = [0, 0], sizes = [8, 128], strides = [1, 1]} : vector<8x512xf32> to vector<8x128xf32>
    %252 = arith.negf %251 : vector<8x128xf32>
    %253 = math.exp %252 : vector<8x128xf32>
    %cst_68 = arith.constant 1.000000e+00 : f32
    %254 = vector.broadcast %cst_68 : f32 to vector<8x128xf32>
    %255 = arith.addf %254, %253 : vector<8x128xf32>
    %256 = arith.divf %254, %255 : vector<8x128xf32>
    %257 = vector.extract_strided_slice %250 {offsets = [0, 128], sizes = [8, 128], strides = [1, 1]} : vector<8x512xf32> to vector<8x128xf32>
    %258 = arith.negf %257 : vector<8x128xf32>
    %259 = math.exp %258 : vector<8x128xf32>
    %cst_69 = arith.constant 1.000000e+00 : f32
    %260 = vector.broadcast %cst_69 : f32 to vector<8x128xf32>
    %261 = arith.addf %260, %259 : vector<8x128xf32>
    %262 = arith.divf %260, %261 : vector<8x128xf32>
    %263 = vector.extract_strided_slice %250 {offsets = [0, 256], sizes = [8, 128], strides = [1, 1]} : vector<8x512xf32> to vector<8x128xf32>
    %264 = math.tanh %263 : vector<8x128xf32>
    %265 = vector.extract_strided_slice %250 {offsets = [0, 384], sizes = [8, 128], strides = [1, 1]} : vector<8x512xf32> to vector<8x128xf32>
    %266 = arith.negf %265 : vector<8x128xf32>
    %267 = math.exp %266 : vector<8x128xf32>
    %cst_70 = arith.constant 1.000000e+00 : f32
    %268 = vector.broadcast %cst_70 : f32 to vector<8x128xf32>
    %269 = arith.addf %268, %267 : vector<8x128xf32>
    %270 = arith.divf %268, %269 : vector<8x128xf32>
    %271 = arith.mulf %262, %234 : vector<8x128xf32>
    %272 = arith.mulf %256, %264 : vector<8x128xf32>
    %273 = arith.addf %271, %272 : vector<8x128xf32>
    %274 = math.tanh %273 : vector<8x128xf32>
    %275 = arith.mulf %270, %274 : vector<8x128xf32>
    %276 = arith.truncf %275 : vector<8x128xf32> to vector<8x128xbf16>
    %277 = arith.index_cast %c6_i32 : i32 to index
    %c0_71 = arith.constant 0 : index
    %c0_72 = arith.constant 0 : index
    %278 = vector.load %arg8[%277, %c0_71, %c0_72] : memref<8x8x128xbf16, #tpu.memory_space<vmem>>, vector<1x8x128xbf16>
    %279 = vector.shape_cast %278 : vector<1x8x128xbf16> to vector<8x128xbf16>
    %280 = vector.shape_cast %276 : vector<8x128xbf16> to vector<1x8x128xbf16>
    tpu.vector_store %arg8[%277, %c0_71, %c0_72], %280 {strides = array<i32>} : memref<8x8x128xbf16, #tpu.memory_space<vmem>>, vector<1x8x128xbf16>,
    %c7_i32 = arith.constant 7 : i32
    %281 = arith.index_cast %c7_i32 : i32 to index
    %c0_73 = arith.constant 0 : index
    %c0_74 = arith.constant 0 : index
    %282 = vector.load %arg2[%281, %c0_73, %c0_74] : memref<8x8x32xbf16, #tpu.memory_space<vmem>>, vector<1x8x32xbf16>
    %283 = vector.shape_cast %282 : vector<1x8x32xbf16> to vector<8x32xbf16>
    %cst_75 = arith.constant dense<0.000000e+00> : vector<8x512xf32>
    %284 = tpu.matmul %283, %3, %cst_75 {dimension_numbers = #tpu.dot_dimension_numbers<[1], [0], [0], [1], [0, 0, 1, 1], [], []>} : vector<8x32xbf16>, vector<32x512xbf16>, vector<8x512xf32> -> vector<8x512xf32>
    %285 = arith.truncf %275 : vector<8x128xf32> to vector<8x128xbf16>
    %cst_76 = arith.constant dense<0.000000e+00> : vector<8x512xf32>
    %286 = tpu.matmul %285, %4, %cst_76 {dimension_numbers = #tpu.dot_dimension_numbers<[1], [0], [0], [1], [0, 0, 1, 1], [], []>} : vector<8x128xbf16>, vector<128x512xbf16>, vector<8x512xf32> -> vector<8x512xf32>
    %287 = arith.addf %284, %286 : vector<8x512xf32>
    %288 = vector.broadcast %5 : vector<1x512xf32> to vector<8x512xf32>
    %289 = arith.addf %287, %288 : vector<8x512xf32>
    %290 = vector.extract_strided_slice %289 {offsets = [0, 0], sizes = [8, 128], strides = [1, 1]} : vector<8x512xf32> to vector<8x128xf32>
    %291 = arith.negf %290 : vector<8x128xf32>
    %292 = math.exp %291 : vector<8x128xf32>
    %cst_77 = arith.constant 1.000000e+00 : f32
    %293 = vector.broadcast %cst_77 : f32 to vector<8x128xf32>
    %294 = arith.addf %293, %292 : vector<8x128xf32>
    %295 = arith.divf %293, %294 : vector<8x128xf32>
    %296 = vector.extract_strided_slice %289 {offsets = [0, 128], sizes = [8, 128], strides = [1, 1]} : vector<8x512xf32> to vector<8x128xf32>
    %297 = arith.negf %296 : vector<8x128xf32>
    %298 = math.exp %297 : vector<8x128xf32>
    %cst_78 = arith.constant 1.000000e+00 : f32
    %299 = vector.broadcast %cst_78 : f32 to vector<8x128xf32>
    %300 = arith.addf %299, %298 : vector<8x128xf32>
    %301 = arith.divf %299, %300 : vector<8x128xf32>
    %302 = vector.extract_strided_slice %289 {offsets = [0, 256], sizes = [8, 128], strides = [1, 1]} : vector<8x512xf32> to vector<8x128xf32>
    %303 = math.tanh %302 : vector<8x128xf32>
    %304 = vector.extract_strided_slice %289 {offsets = [0, 384], sizes = [8, 128], strides = [1, 1]} : vector<8x512xf32> to vector<8x128xf32>
    %305 = arith.negf %304 : vector<8x128xf32>
    %306 = math.exp %305 : vector<8x128xf32>
    %cst_79 = arith.constant 1.000000e+00 : f32
    %307 = vector.broadcast %cst_79 : f32 to vector<8x128xf32>
    %308 = arith.addf %307, %306 : vector<8x128xf32>
    %309 = arith.divf %307, %308 : vector<8x128xf32>
    %310 = arith.mulf %301, %273 : vector<8x128xf32>
    %311 = arith.mulf %295, %303 : vector<8x128xf32>
    %312 = arith.addf %310, %311 : vector<8x128xf32>
    %313 = math.tanh %312 : vector<8x128xf32>
    %314 = arith.mulf %309, %313 : vector<8x128xf32>
    %315 = arith.truncf %314 : vector<8x128xf32> to vector<8x128xbf16>
    %316 = arith.index_cast %c7_i32 : i32 to index
    %c0_80 = arith.constant 0 : index
    %c0_81 = arith.constant 0 : index
    %317 = vector.load %arg8[%316, %c0_80, %c0_81] : memref<8x8x128xbf16, #tpu.memory_space<vmem>>, vector<1x8x128xbf16>
    %318 = vector.shape_cast %317 : vector<1x8x128xbf16> to vector<8x128xbf16>
    %319 = vector.shape_cast %315 : vector<8x128xbf16> to vector<1x8x128xbf16>
    tpu.vector_store %arg8[%316, %c0_80, %c0_81], %319 {strides = array<i32>} : memref<8x8x128xbf16, #tpu.memory_space<vmem>>, vector<1x8x128xbf16>,
    %c8_i32 = arith.constant 8 : i32
    %c0_i32_82 = arith.constant 0 : i32
    %320 = arith.cmpi slt, %arg1, %c0_i32_82 : i32
    %321 = arith.extui %320 : i1 to i32
    %c0_i32_83 = arith.constant 0 : i32
    %322 = arith.cmpi ne, %321, %c0_i32_83 : i32
    scf.if %322 {
      %c0_86 = arith.constant 0 : index
      %c0_87 = arith.constant 0 : index
      %326 = vector.load %arg11[%c0_86, %c0_87] : memref<8x128xf32, #tpu.memory_space<vmem>>, vector<8x128xf32>
      tpu.vector_store %arg11[%c0_86, %c0_87], %314 {strides = array<i32>} : memref<8x128xf32, #tpu.memory_space<vmem>>, vector<8x128xf32>,
      %c0_88 = arith.constant 0 : index
      %c0_89 = arith.constant 0 : index
      %327 = vector.load %arg12[%c0_88, %c0_89] : memref<8x128xf32, #tpu.memory_space<vmem>>, vector<8x128xf32>
      tpu.vector_store %arg12[%c0_88, %c0_89], %312 {strides = array<i32>} : memref<8x128xf32, #tpu.memory_space<vmem>>, vector<8x128xf32>,
    } else {
    }
    %c0_i32_84 = arith.constant 0 : i32
    %323 = arith.cmpi eq, %arg1, %c0_i32_84 : i32
    %324 = arith.extui %323 : i1 to i32
    %c0_i32_85 = arith.constant 0 : i32
    %325 = arith.cmpi ne, %324, %c0_i32_85 : i32
    scf.if %325 {
      %c0_86 = arith.constant 0 : index
      %c0_87 = arith.constant 0 : index
      %326 = vector.load %arg9[%c0_86, %c0_87] : memref<8x128xf32, #tpu.memory_space<vmem>>, vector<8x128xf32>
      tpu.vector_store %arg9[%c0_86, %c0_87], %314 {strides = array<i32>} : memref<8x128xf32, #tpu.memory_space<vmem>>, vector<8x128xf32>,
      %c0_88 = arith.constant 0 : index
      %c0_89 = arith.constant 0 : index
      %327 = vector.load %arg10[%c0_88, %c0_89] : memref<8x128xf32, #tpu.memory_space<vmem>>, vector<8x128xf32>
      tpu.vector_store %arg10[%c0_88, %c0_89], %312 {strides = array<i32>} : memref<8x128xf32, #tpu.memory_space<vmem>>, vector<8x128xf32>,
    } else {
    }
    return
  }
  func.func @transform_0(%arg0: i32, %arg1: i32) -> (i32, i32, i32) {
    %c0_i32 = arith.constant 0 : i32
    %c0_i32_0 = arith.constant 0 : i32
    return %arg1, %arg0, %c0_i32 : i32, i32, i32
  }
  func.func @transform_1(%arg0: i32, %arg1: i32) -> (i32, i32) {
    %c0_i32 = arith.constant 0 : i32
    %c0_i32_0 = arith.constant 0 : i32
    %c0_i32_1 = arith.constant 0 : i32
    return %c0_i32, %c0_i32_0 : i32, i32
  }
  func.func @transform_2(%arg0: i32, %arg1: i32) -> (i32, i32) {
    %c0_i32 = arith.constant 0 : i32
    %c0_i32_0 = arith.constant 0 : i32
    %c0_i32_1 = arith.constant 0 : i32
    return %c0_i32, %c0_i32_0 : i32, i32
  }
  func.func @transform_3(%arg0: i32, %arg1: i32) -> (i32, i32) {
    %c0_i32 = arith.constant 0 : i32
    %c0_i32_0 = arith.constant 0 : i32
    %c0_i32_1 = arith.constant 0 : i32
    return %c0_i32, %c0_i32_0 : i32, i32
  }
  func.func @transform_4(%arg0: i32, %arg1: i32) -> (i32, i32) {
    %c0_i32 = arith.constant 0 : i32
    %c0_i32_0 = arith.constant 0 : i32
    return %arg0, %c0_i32 : i32, i32
  }
  func.func @transform_5(%arg0: i32, %arg1: i32) -> (i32, i32) {
    %c0_i32 = arith.constant 0 : i32
    %c0_i32_0 = arith.constant 0 : i32
    return %arg0, %c0_i32 : i32, i32
  }
  func.func @transform_6(%arg0: i32, %arg1: i32) -> (i32, i32, i32) {
    %c0_i32 = arith.constant 0 : i32
    %c0_i32_0 = arith.constant 0 : i32
    return %arg1, %arg0, %c0_i32 : i32, i32, i32
  }
  func.func @transform_7(%arg0: i32, %arg1: i32) -> (i32, i32) {
    %c0_i32 = arith.constant 0 : i32
    %c0_i32_0 = arith.constant 0 : i32
    return %arg0, %c0_i32 : i32, i32
  }
  func.func @transform_8(%arg0: i32, %arg1: i32) -> (i32, i32) {
    %c0_i32 = arith.constant 0 : i32
    %c0_i32_0 = arith.constant 0 : i32
    return %arg0, %c0_i32 : i32, i32
  }
}

module attributes {stable_mosaic.version = 11 : i64} {
  func.func @_matmul_bias_kernel(%arg0: i32, %arg1: i32, %arg2: i32, %arg3: memref<64x128xbf16, #tpu.memory_space<vmem>>, %arg4: memref<128x128xbf16, #tpu.memory_space<vmem>>, %arg5: memref<1x128xf32, #tpu.memory_space<vmem>>, %arg6: memref<64x128xf32, #tpu.memory_space<vmem>>, %arg7: memref<64x128xf32, #tpu.memory_space<vmem>>) attributes {dimension_semantics = [#tpu.dimension_semantics<parallel>, #tpu.dimension_semantics<parallel>, #tpu.dimension_semantics<arbitrary>], iteration_bounds = array<i64: 1, 1, 1>, scalar_prefetch = 0 : i64, scratch_operands = 1 : i64, tpu.core_type = #tpu.core_type<tc>, window_params = [{transform_indices = @transform_0, window_bounds = array<i64: 64, 128>}, {transform_indices = @transform_1, window_bounds = array<i64: 128, 128>}, {transform_indices = @transform_2, window_bounds = array<i64: 1, 128>}, {transform_indices = @transform_3, window_bounds = array<i64: 64, 128>}]} {
    %c0_i32 = arith.constant 0 : i32
    %0 = arith.cmpi eq, %arg2, %c0_i32 : i32
    %1 = arith.extui %0 : i1 to i32
    %c0_i32_0 = arith.constant 0 : i32
    %2 = arith.cmpi ne, %1, %c0_i32_0 : i32
    scf.if %2 {
      %cst_10 = arith.constant 0.000000e+00 : f32
      %12 = vector.broadcast %cst_10 : f32 to vector<64x128xf32>
      %c0_11 = arith.constant 0 : index
      %c0_12 = arith.constant 0 : index
      %13 = vector.load %arg7[%c0_11, %c0_12] : memref<64x128xf32, #tpu.memory_space<vmem>>, vector<64x128xf32>
      tpu.vector_store %arg7[%c0_11, %c0_12], %12 {strides = array<i32>} : memref<64x128xf32, #tpu.memory_space<vmem>>, vector<64x128xf32>,
    } else {
    }
    %c0 = arith.constant 0 : index
    %c0_1 = arith.constant 0 : index
    %3 = vector.load %arg7[%c0, %c0_1] : memref<64x128xf32, #tpu.memory_space<vmem>>, vector<64x128xf32>
    %c0_2 = arith.constant 0 : index
    %c0_3 = arith.constant 0 : index
    %4 = vector.load %arg3[%c0_2, %c0_3] : memref<64x128xbf16, #tpu.memory_space<vmem>>, vector<64x128xbf16>
    %c0_4 = arith.constant 0 : index
    %c0_5 = arith.constant 0 : index
    %5 = vector.load %arg4[%c0_4, %c0_5] : memref<128x128xbf16, #tpu.memory_space<vmem>>, vector<128x128xbf16>
    %cst = arith.constant dense<0.000000e+00> : vector<64x128xf32>
    %6 = tpu.matmul %4, %5, %cst {dimension_numbers = #tpu.dot_dimension_numbers<[1], [0], [0], [1], [0, 0, 1, 1], [], []>} : vector<64x128xbf16>, vector<128x128xbf16>, vector<64x128xf32> -> vector<64x128xf32>
    %7 = arith.addf %3, %6 : vector<64x128xf32>
    %c0_6 = arith.constant 0 : index
    %c0_7 = arith.constant 0 : index
    %8 = vector.load %arg7[%c0_6, %c0_7] : memref<64x128xf32, #tpu.memory_space<vmem>>, vector<64x128xf32>
    tpu.vector_store %arg7[%c0_6, %c0_7], %7 {strides = array<i32>} : memref<64x128xf32, #tpu.memory_space<vmem>>, vector<64x128xf32>,
    %c0_i32_8 = arith.constant 0 : i32
    %9 = arith.cmpi eq, %arg2, %c0_i32_8 : i32
    %10 = arith.extui %9 : i1 to i32
    %c0_i32_9 = arith.constant 0 : i32
    %11 = arith.cmpi ne, %10, %c0_i32_9 : i32
    scf.if %11 {
      %c0_10 = arith.constant 0 : index
      %c0_11 = arith.constant 0 : index
      %12 = vector.load %arg7[%c0_10, %c0_11] : memref<64x128xf32, #tpu.memory_space<vmem>>, vector<64x128xf32>
      %c0_12 = arith.constant 0 : index
      %c0_13 = arith.constant 0 : index
      %13 = vector.load %arg5[%c0_12, %c0_13] : memref<1x128xf32, #tpu.memory_space<vmem>>, vector<1x128xf32>
      %14 = vector.broadcast %13 : vector<1x128xf32> to vector<64x128xf32>
      %15 = arith.addf %12, %14 : vector<64x128xf32>
      %c0_14 = arith.constant 0 : index
      %c0_15 = arith.constant 0 : index
      %16 = vector.load %arg6[%c0_14, %c0_15] : memref<64x128xf32, #tpu.memory_space<vmem>>, vector<64x128xf32>
      tpu.vector_store %arg6[%c0_14, %c0_15], %15 {strides = array<i32>} : memref<64x128xf32, #tpu.memory_space<vmem>>, vector<64x128xf32>,
    } else {
    }
    return
  }
  func.func @transform_0(%arg0: i32, %arg1: i32, %arg2: i32) -> (i32, i32) {
    %c0_i32 = arith.constant 0 : i32
    return %arg0, %arg2 : i32, i32
  }
  func.func @transform_1(%arg0: i32, %arg1: i32, %arg2: i32) -> (i32, i32) {
    %c0_i32 = arith.constant 0 : i32
    return %arg2, %arg1 : i32, i32
  }
  func.func @transform_2(%arg0: i32, %arg1: i32, %arg2: i32) -> (i32, i32) {
    %c0_i32 = arith.constant 0 : i32
    %c0_i32_0 = arith.constant 0 : i32
    return %c0_i32, %arg1 : i32, i32
  }
  func.func @transform_3(%arg0: i32, %arg1: i32, %arg2: i32) -> (i32, i32) {
    %c0_i32 = arith.constant 0 : i32
    return %arg0, %arg1 : i32, i32
  }
}

</mosaic_0001>

<llo_original>
// kernel: rnn_model_forward.5
$region0: #{rnn_model_forward.5}
  #allocation0 [shape = 'u32[]', space=smem, size = 0x4, offset = 0x4, fixed_abs, tag = 'smem constant byte address 0x4 - core index']
  #allocation1 [shape = 'u32[72,128]{1,0:T(1,128)}', space=vmem, size = 0x9000, scoped, tag = 'internal scratch']
  #allocation2 [shape = 'f32[64,128]{1,0:T(8,128)}', space=vmem, size = 0x8000, scoped, tag = 'scratch operand']
  %s0 = inlined_call_operand.vmem [shape: bf16[64,128], index: 0, kind: input, shape index: {}]
  %s1 = inlined_call_operand.vmem [shape: bf16[128,128], index: 1, kind: input, shape index: {}]
  %s2 = inlined_call_operand.vmem [shape: f32[1,128], index: 2, kind: input, shape index: {}]
  %s3 = inlined_call_operand.vmem [shape: f32[64,128], index: 3, kind: output, shape index: {}]
  %s4 = sld [smem:[#allocation0]]
  $region30: #{rnn_model_forward.5} parent=0
    _
  %s6 = ssub.s32 1, %s4
  %s7 = scalar_select 0, %s6, %s4
  // Predicated region
  $region2: #{rnn_model_forward.5} parent=0 // pred_check
    _
  $region3: #{rnn_model_forward.5} parent=0 // pred_check_branch
    %9 = sbr.rel (0) target = $region5
  $region4: #{rnn_model_forward.5} parent=0 // pred_region
    _
  $region5: #{rnn_model_forward.5} parent=0 // pred_fallthru
    _
  // Predicated region
  $region6: #{rnn_model_forward.5} parent=0 // pred_check
    _
  $region7: #{rnn_model_forward.5} parent=0 // pred_check_branch
    %11 = sbr.rel (0) target = $region9
  $region8: #{rnn_model_forward.5} parent=0 // pred_region
    _
  $region9: #{rnn_model_forward.5} parent=0 // pred_fallthru
    _
  // Predicated region
  $region10: #{rnn_model_forward.5} parent=0 // pred_check
    _
  $region11: #{rnn_model_forward.5} parent=0 // pred_check_branch
    %13 = sbr.rel (0) target = $region13
  $region12: #{rnn_model_forward.5} parent=0 // pred_region
    _
  $region13: #{rnn_model_forward.5} parent=0 // pred_fallthru
    _
  %p14 = scmp.eq.s32.totalorder 0, 0
  // Predicated region
  $region14: #{rnn_model_forward.5} parent=0 // pred_check
    %p15 = pneg %p14
  $region15: #{rnn_model_forward.5} parent=0 // pred_check_branch
    %17 = sbr.rel (%p15) target = $region17
  $region16: #{rnn_model_forward.5} parent=0 // pred_region
    %18 = vst [vmem:[#allocation2] sm:$0xff] 0.0
    %19 = vst [vmem:[#allocation2 + $0x8] sm:$0xff] 0.0
    %20 = vst [vmem:[#allocation2 + $0x10] sm:$0xff] 0.0
    %21 = vst [vmem:[#allocation2 + $0x18] sm:$0xff] 0.0
    %22 = vst [vmem:[#allocation2 + $0x20] sm:$0xff] 0.0
    %23 = vst [vmem:[#allocation2 + $0x28] sm:$0xff] 0.0
    %24 = vst [vmem:[#allocation2 + $0x30] sm:$0xff] 0.0
    %25 = vst [vmem:[#allocation2 + $0x38] sm:$0xff] 0.0
  $region17: #{rnn_model_forward.5} parent=0 // pred_fallthru
    _
  %v26 = vld [vmem:[#allocation2] sm:$0xff]
  %v27 = vld [vmem:[#allocation2 + $0x8] sm:$0xff]
  %v28 = vld [vmem:[#allocation2 + $0x10] sm:$0xff]
  %v29 = vld [vmem:[#allocation2 + $0x18] sm:$0xff]
  %v30 = vld [vmem:[#allocation2 + $0x20] sm:$0xff]
  %v31 = vld [vmem:[#allocation2 + $0x28] sm:$0xff]
  %v32 = vld [vmem:[#allocation2 + $0x30] sm:$0xff]
  %v33 = vld [vmem:[#allocation2 + $0x38] sm:$0xff]
  %v34 = vld [vmem:[%s0] sm:$0xf]
  %v35 = vld [vmem:[%s0 + $0x4] sm:$0xf]
  %v36 = vld [vmem:[%s0 + $0x8] sm:$0xf]
  %v37 = vld [vmem:[%s0 + $0xc] sm:$0xf]
  %v38 = vld [vmem:[%s0 + $0x10] sm:$0xf]
  %v39 = vld [vmem:[%s0 + $0x14] sm:$0xf]
  %v40 = vld [vmem:[%s0 + $0x18] sm:$0xf]
  %v41 = vld [vmem:[%s0 + $0x1c] sm:$0xf]
  %v42 = vld [vmem:[%s1] sm:$0xf]
  %v43 = vld [vmem:[%s1 + $0x4] sm:$0xf]
  %v44 = vld [vmem:[%s1 + $0x8] sm:$0xf]
  %v45 = vld [vmem:[%s1 + $0xc] sm:$0xf]
  %v46 = vld [vmem:[%s1 + $0x10] sm:$0xf]
  %v47 = vld [vmem:[%s1 + $0x14] sm:$0xf]
  %v48 = vld [vmem:[%s1 + $0x18] sm:$0xf]
  %v49 = vld [vmem:[%s1 + $0x1c] sm:$0xf]
  %v50 = vld [vmem:[%s1 + $0x20] sm:$0xf]
  %v51 = vld [vmem:[%s1 + $0x24] sm:$0xf]
  %v52 = vld [vmem:[%s1 + $0x28] sm:$0xf]
  %v53 = vld [vmem:[%s1 + $0x2c] sm:$0xf]
  %v54 = vld [vmem:[%s1 + $0x30] sm:$0xf]
  %v55 = vld [vmem:[%s1 + $0x34] sm:$0xf]
  %v56 = vld [vmem:[%s1 + $0x38] sm:$0xf]
  %v57 = vld [vmem:[%s1 + $0x3c] sm:$0xf]
  %v66 = vunpack.c.l.b16 %v34
  %v67 = vunpack.c.l.b16 %v35
  %v68 = vunpack.c.l.b16 %v36
  %v69 = vunpack.c.l.b16 %v37
  %v70 = vunpack.c.l.b16 %v38
  %v71 = vunpack.c.l.b16 %v39
  %v72 = vunpack.c.l.b16 %v40
  %v73 = vunpack.c.l.b16 %v41
  %v74 = vpack.c.b16 %v67, %v66
  %v75 = vpack.c.b16 %v69, %v68
  %v76 = vpack.c.b16 %v71, %v70
  %v77 = vpack.c.b16 %v73, %v72
  %v98 = vunpack.c.l.b16 %v42
  %v99 = vunpack.c.l.b16 %v43
  %v100 = vunpack.c.l.b16 %v44
  %v101 = vunpack.c.l.b16 %v45
  %v102 = vunpack.c.l.b16 %v46
  %v103 = vunpack.c.l.b16 %v47
  %v104 = vunpack.c.l.b16 %v48
  %v105 = vunpack.c.l.b16 %v49
  %v106 = vunpack.c.l.b16 %v50
  %v107 = vunpack.c.l.b16 %v51
  %v108 = vunpack.c.l.b16 %v52
  %v109 = vunpack.c.l.b16 %v53
  %v110 = vunpack.c.l.b16 %v54
  %v111 = vunpack.c.l.b16 %v55
  %v112 = vunpack.c.l.b16 %v56
  %v113 = vunpack.c.l.b16 %v57
  %v114 = vpack.c.b16 %v99, %v98
  %v115 = vpack.c.b16 %v101, %v100
  %v116 = vpack.c.b16 %v103, %v102
  %v117 = vpack.c.b16 %v105, %v104
  %v118 = vpack.c.b16 %v107, %v106
  %v119 = vpack.c.b16 %v109, %v108
  %v120 = vpack.c.b16 %v111, %v110
  %v121 = vpack.c.b16 %v113, %v112
  %130 = vmatpush.bf16.msra.mxu0 %v121
  %131 = vmatpush.bf16.msra.mxu0 %v120
  %132 = vmatpush.bf16.msra.mxu0 %v119
  %133 = vmatpush.bf16.msra.mxu0 %v118
  %134 = vmatpush.bf16.msra.mxu0 %v117
  %135 = vmatpush.bf16.msra.mxu0 %v116
  %136 = vmatpush.bf16.msra.mxu0 %v115
  %137 = vmatpush.bf16.msra.mxu0 %v114
  %138 = vmatmul.bf16.gmra.mxu0 %v74
  %v139 = vpop.f32.mrf.mxu0
  %v140 = vadd.f32 0.0, %v139
  %v141 = vpop.f32.mrf.mxu0
  %v142 = vadd.f32 0.0, %v141
  %143 = vmatmul.bf16.gmra.mxu0 %v75
  %v144 = vpop.f32.mrf.mxu0
  %v145 = vadd.f32 0.0, %v144
  %v146 = vpop.f32.mrf.mxu0
  %v147 = vadd.f32 0.0, %v146
  %148 = vmatmul.bf16.gmra.mxu0 %v76
  %v149 = vpop.f32.mrf.mxu0
  %v150 = vadd.f32 0.0, %v149
  %v151 = vpop.f32.mrf.mxu0
  %v152 = vadd.f32 0.0, %v151
  %153 = vmatmul.bf16.gmra.mxu0 %v77
  %v154 = vpop.f32.mrf.mxu0
  %v155 = vadd.f32 0.0, %v154
  %v156 = vpop.f32.mrf.mxu0
  %v157 = vadd.f32 0.0, %v156
  %158 = vdwg.mxu0
  %v159 = vadd.f32 %v26, %v140
  %v160 = vadd.f32 %v27, %v142
  %v161 = vadd.f32 %v28, %v145
  %v162 = vadd.f32 %v29, %v147
  %v163 = vadd.f32 %v30, %v150
  %v164 = vadd.f32 %v31, %v152
  %v165 = vadd.f32 %v32, %v155
  %v166 = vadd.f32 %v33, %v157
  %167 = vst [vmem:[#allocation2] sm:$0xff] %v159
  %168 = vst [vmem:[#allocation2 + $0x8] sm:$0xff] %v160
  %169 = vst [vmem:[#allocation2 + $0x10] sm:$0xff] %v161
  %170 = vst [vmem:[#allocation2 + $0x18] sm:$0xff] %v162
  %171 = vst [vmem:[#allocation2 + $0x20] sm:$0xff] %v163
  %172 = vst [vmem:[#allocation2 + $0x28] sm:$0xff] %v164
  %173 = vst [vmem:[#allocation2 + $0x30] sm:$0xff] %v165
  %174 = vst [vmem:[#allocation2 + $0x38] sm:$0xff] %v166
  // Predicated region
  $region18: #{rnn_model_forward.5} parent=0 // pred_check
    %p175 = pneg %p14
  $region19: #{rnn_model_forward.5} parent=0 // pred_check_branch
    %177 = sbr.rel (%p175) target = $region21
  $region20: #{rnn_model_forward.5} parent=0 // pred_region
    %v178 = vld [vmem:[#allocation2] sm:$0xff]
    %v179 = vld [vmem:[#allocation2 + $0x8] sm:$0xff]
    %v180 = vld [vmem:[#allocation2 + $0x10] sm:$0xff]
    %v181 = vld [vmem:[#allocation2 + $0x18] sm:$0xff]
    %v182 = vld [vmem:[#allocation2 + $0x20] sm:$0xff]
    %v183 = vld [vmem:[#allocation2 + $0x28] sm:$0xff]
    %v184 = vld [vmem:[#allocation2 + $0x30] sm:$0xff]
    %v185 = vld [vmem:[#allocation2 + $0x38] sm:$0xff]
    %v186 = vld [vmem:[%s2] sm:$0x1]
    %v188 = vperm.slane %v186, 0
    %v190 = vadd.f32 %v178, %v188
    %v191 = vadd.f32 %v179, %v188
    %v192 = vadd.f32 %v180, %v188
    %v193 = vadd.f32 %v181, %v188
    %v194 = vadd.f32 %v182, %v188
    %v195 = vadd.f32 %v183, %v188
    %v196 = vadd.f32 %v184, %v188
    %v197 = vadd.f32 %v185, %v188
    %198 = vst [vmem:[%s3] sm:$0xff] %v190
    %199 = vst [vmem:[%s3 + $0x8] sm:$0xff] %v191
    %200 = vst [vmem:[%s3 + $0x10] sm:$0xff] %v192
    %201 = vst [vmem:[%s3 + $0x18] sm:$0xff] %v193
    %202 = vst [vmem:[%s3 + $0x20] sm:$0xff] %v194
    %203 = vst [vmem:[%s3 + $0x28] sm:$0xff] %v195
    %204 = vst [vmem:[%s3 + $0x30] sm:$0xff] %v196
    %205 = vst [vmem:[%s3 + $0x38] sm:$0xff] %v197
  $region21: #{rnn_model_forward.5} parent=0 // pred_fallthru
    _
  // Predicated region
  $region22: #{rnn_model_forward.5} parent=0 // pred_check
    _
  $region23: #{rnn_model_forward.5} parent=0 // pred_check_branch
    %207 = sbr.rel (0) target = $region25
  $region24: #{rnn_model_forward.5} parent=0 // pred_region
    _
  $region25: #{rnn_model_forward.5} parent=0 // pred_fallthru
    _
  // Predicated region
  $region26: #{rnn_model_forward.5} parent=0 // pred_check
    _
  $region27: #{rnn_model_forward.5} parent=0 // pred_check_branch
    %209 = sbr.rel (0) target = $region29
  $region28: #{rnn_model_forward.5} parent=0 // pred_region
    _
  $region29: #{rnn_model_forward.5} parent=0 // pred_fallthru
    _

// kernel: rnn_model_forward.3
$region0: #{rnn_model_forward.3}
  #allocation0 [shape = 'u32[]', space=smem, size = 0x4, offset = 0x4, fixed_abs, tag = 'smem constant byte address 0x4 - core index']
  #allocation1 [shape = 'u32[72,128]{1,0:T(1,128)}', space=vmem, size = 0x9000, scoped, tag = 'internal scratch']
  #allocation2 [shape = 'f32[8,128]{1,0:T(8,128)}', space=vmem, size = 0x1000, scoped, tag = 'scratch operand']
  #allocation3 [shape = 'f32[8,128]{1,0:T(8,128)}', space=vmem, size = 0x1000, scoped, tag = 'scratch operand']
  %s0 = inlined_call_operand.vmem [shape: bf16[8,8,32], index: 0, kind: input, shape index: {}]
  %s1 = inlined_call_operand.hbm [shape: bf16[32,512], index: 1, kind: input, shape index: {}]
  %s2 = inlined_call_operand.vmem [shape: bf16[128,512], index: 2, kind: input, shape index: {}]
  %s3 = inlined_call_operand.vmem [shape: f32[1,512], index: 3, kind: input, shape index: {}]
  %s4 = inlined_call_operand.vmem [shape: f32[8,128], index: 4, kind: input, shape index: {}]
  %s5 = inlined_call_operand.vmem [shape: f32[8,128], index: 5, kind: input, shape index: {}]
  %s6 = inlined_call_operand.vmem [shape: bf16[8,8,128], index: 6, kind: output, shape index: {0}]
  %s7 = inlined_call_operand.vmem [shape: f32[8,128], index: 7, kind: output, shape index: {1}]
  %s8 = inlined_call_operand.vmem [shape: f32[8,128], index: 8, kind: output, shape index: {2}]
  %9 = xla_tuple %s6, %s7, %s8
  %s10 = sld [smem:[#allocation0]]
  $region66: #{rnn_model_forward.3} parent=0
    _
  %s12 = ssub.s32 1, %s10
  %s13 = scalar_select 0, %s12, %s10
  $region1: #{rnn_model_forward.3} parent=0
    #allocation4 [shape = 'u8[32768]{0}', space=vmem, size = 0x8000, scoped, tag = 'input window, operand 1, single buffered']
    #allocation5 [shape = 's32[1]{0}', space=sflag, size = 0x4, scoped, tag = 'scoped memory for rnn_model_forward.3']
    %14 = vsyncpa [#allocation5], 0
    // Predicated region
    $region2: #{rnn_model_forward.3} parent=1 // pred_check
      _
    $region3: #{rnn_model_forward.3} parent=1 // pred_check_branch
      %16 = sbr.rel (0) target = $region5
    $region4: #{rnn_model_forward.3} parent=1 // pred_region
      _
    $region5: #{rnn_model_forward.3} parent=1 // pred_fallthru
      _
    // Predicated region
    $region6: #{rnn_model_forward.3} parent=1 // pred_check
      _
    $region7: #{rnn_model_forward.3} parent=1 // pred_check_branch
      %18 = sbr.rel (0) target = $region9
    $region8: #{rnn_model_forward.3} parent=1 // pred_region
      %20 = vsyncadd [#allocation5], 0
      %s21 = sshll.u32 %s1, 4
      %s22 = int_to_ptr.hbm [resolvable:$true] %s21
      %s23 = sshll.u32 [#allocation4], 4
      %s24 = int_to_ptr.vmem [resolvable:$true] %s23
      %29 = dma.hbm_to_vmem [thread:$0]  %s22, 1024, %s24, [#allocation5], 256, 256, 16
    $region9: #{rnn_model_forward.3} parent=1 // pred_fallthru
      _
    // Predicated region
    $region10: #{rnn_model_forward.3} parent=1 // pred_check
      _
    $region11: #{rnn_model_forward.3} parent=1 // pred_check_branch
      %31 = sbr.rel (0) target = $region13
    $region12: #{rnn_model_forward.3} parent=1 // pred_region
      _
    $region13: #{rnn_model_forward.3} parent=1 // pred_fallthru
      _
    // Predicated region
    $region14: #{rnn_model_forward.3} parent=1 // pred_check
      _
    $region15: #{rnn_model_forward.3} parent=1 // pred_check_branch
      %33 = sbr.rel (0) target = $region17
    $region16: #{rnn_model_forward.3} parent=1 // pred_region
      _
    $region17: #{rnn_model_forward.3} parent=1 // pred_fallthru
      _
    // Predicated region
    $region18: #{rnn_model_forward.3} parent=1 // pred_check
      _
    $region19: #{rnn_model_forward.3} parent=1 // pred_check_branch
      %35 = sbr.rel (0) target = $region21
    $region20: #{rnn_model_forward.3} parent=1 // pred_region
      _
    $region21: #{rnn_model_forward.3} parent=1 // pred_fallthru
      _
    // Predicated region
    $region22: #{rnn_model_forward.3} parent=1 // pred_check
      _
    $region23: #{rnn_model_forward.3} parent=1 // pred_check_branch
      %37 = sbr.rel (0) target = $region25
    $region24: #{rnn_model_forward.3} parent=1 // pred_region
      _
    $region25: #{rnn_model_forward.3} parent=1 // pred_fallthru
      _
    // Predicated region
    $region26: #{rnn_model_forward.3} parent=1 // pred_check
      _
    $region27: #{rnn_model_forward.3} parent=1 // pred_check_branch
      %39 = sbr.rel (0) target = $region29
    $region28: #{rnn_model_forward.3} parent=1 // pred_region
      %41 = dma.done [#allocation5], 1024
    $region29: #{rnn_model_forward.3} parent=1 // pred_fallthru
      _
    %p43 = scmp.eq.s32.totalorder 0, 0
    // Predicated region
    $region30: #{rnn_model_forward.3} parent=1 // pred_check
      %p44 = pneg %p43
    $region31: #{rnn_model_forward.3} parent=1 // pred_check_branch
      %46 = sbr.rel (%p44) target = $region33
    $region32: #{rnn_model_forward.3} parent=1 // pred_region
      %v47 = vld [vmem:[%s4] sm:$0xff]
      %48 = vst [vmem:[#allocation2] sm:$0xff] %v47
      %v49 = vld [vmem:[%s5] sm:$0xff]
      %50 = vst [vmem:[#allocation3] sm:$0xff] %v49
    $region33: #{rnn_model_forward.3} parent=1 // pred_fallthru
      _
    %v51 = vld [vmem:[#allocation4] sm:$0xff]
    %v52 = vld [vmem:[#allocation4 + $0x8] sm:$0xff]
    %v53 = vld [vmem:[#allocation4 + $0x10] sm:$0xff]
    %v54 = vld [vmem:[#allocation4 + $0x18] sm:$0xff]
    %v55 = vld [vmem:[#allocation4 + $0x20] sm:$0xff]
    %v56 = vld [vmem:[#allocation4 + $0x28] sm:$0xff]
    %v57 = vld [vmem:[#allocation4 + $0x30] sm:$0xff]
    %v58 = vld [vmem:[#allocation4 + $0x38] sm:$0xff]
    %v59 = vld [vmem:[%s2] sm:$0xff]
    %v60 = vld [vmem:[%s2 + $0x8] sm:$0xff]
    %v61 = vld [vmem:[%s2 + $0x10] sm:$0xff]
    %v62 = vld [vmem:[%s2 + $0x18] sm:$0xff]
    %v63 = vld [vmem:[%s2 + $0x20] sm:$0xff]
    %v64 = vld [vmem:[%s2 + $0x28] sm:$0xff]
    %v65 = vld [vmem:[%s2 + $0x30] sm:$0xff]
    %v66 = vld [vmem:[%s2 + $0x38] sm:$0xff]
    %v67 = vld [vmem:[%s2 + $0x40] sm:$0xff]
    %v68 = vld [vmem:[%s2 + $0x48] sm:$0xff]
    %v69 = vld [vmem:[%s2 + $0x50] sm:$0xff]
    %v70 = vld [vmem:[%s2 + $0x58] sm:$0xff]
    %v71 = vld [vmem:[%s2 + $0x60] sm:$0xff]
    %v72 = vld [vmem:[%s2 + $0x68] sm:$0xff]
    %v73 = vld [vmem:[%s2 + $0x70] sm:$0xff]
    %v74 = vld [vmem:[%s2 + $0x78] sm:$0xff]
    %v75 = vld [vmem:[%s2 + $0x80] sm:$0xff]
    %v76 = vld [vmem:[%s2 + $0x88] sm:$0xff]
    %v77 = vld [vmem:[%s2 + $0x90] sm:$0xff]
    %v78 = vld [vmem:[%s2 + $0x98] sm:$0xff]
    %v79 = vld [vmem:[%s2 + $0xa0] sm:$0xff]
    %v80 = vld [vmem:[%s2 + $0xa8] sm:$0xff]
    %v81 = vld [vmem:[%s2 + $0xb0] sm:$0xff]
    %v82 = vld [vmem:[%s2 + $0xb8] sm:$0xff]
    %v83 = vld [vmem:[%s2 + $0xc0] sm:$0xff]
    %v84 = vld [vmem:[%s2 + $0xc8] sm:$0xff]
    %v85 = vld [vmem:[%s2 + $0xd0] sm:$0xff]
    %v86 = vld [vmem:[%s2 + $0xd8] sm:$0xff]
    %v87 = vld [vmem:[%s2 + $0xe0] sm:$0xff]
    %v88 = vld [vmem:[%s2 + $0xe8] sm:$0xff]
    %v89 = vld [vmem:[%s2 + $0xf0] sm:$0xff]
    %v90 = vld [vmem:[%s2 + $0xf8] sm:$0xff]
    %v91 = vld [vmem:[%s3] sm:$0xf]
    %v92 = vld [vmem:[#allocation2] sm:$0xff]
    %v93 = vld [vmem:[#allocation3] sm:$0xff]
    %v94 = vld [vmem:[%s0] sm:$0xf]
    %v95 = vpack.c.bf16 %v92, %v92
    %v128 = vunpack.c.l.b16 %v59
    %v129 = vunpack.c.h.b16 %v59
    %v130 = vunpack.c.l.b16 %v60
    %v131 = vunpack.c.h.b16 %v60
    %v132 = vunpack.c.l.b16 %v61
    %v133 = vunpack.c.h.b16 %v61
    %v134 = vunpack.c.l.b16 %v62
    %v135 = vunpack.c.h.b16 %v62
    %v136 = vunpack.c.l.b16 %v63
    %v137 = vunpack.c.h.b16 %v63
    %v138 = vunpack.c.l.b16 %v64
    %v139 = vunpack.c.h.b16 %v64
    %v140 = vunpack.c.l.b16 %v65
    %v141 = vunpack.c.h.b16 %v65
    %v142 = vunpack.c.l.b16 %v66
    %v143 = vunpack.c.h.b16 %v66
    %v144 = vunpack.c.l.b16 %v67
    %v145 = vunpack.c.h.b16 %v67
    %v146 = vunpack.c.l.b16 %v68
    %v147 = vunpack.c.h.b16 %v68
    %v148 = vunpack.c.l.b16 %v69
    %v149 = vunpack.c.h.b16 %v69
    %v150 = vunpack.c.l.b16 %v70
    %v151 = vunpack.c.h.b16 %v70
    %v152 = vunpack.c.l.b16 %v71
    %v153 = vunpack.c.h.b16 %v71
    %v154 = vunpack.c.l.b16 %v72
    %v155 = vunpack.c.h.b16 %v72
    %v156 = vunpack.c.l.b16 %v73
    %v157 = vunpack.c.h.b16 %v73
    %v158 = vunpack.c.l.b16 %v74
    %v159 = vunpack.c.h.b16 %v74
    %v160 = vunpack.c.l.b16 %v75
    %v161 = vunpack.c.h.b16 %v75
    %v162 = vunpack.c.l.b16 %v76
    %v163 = vunpack.c.h.b16 %v76
    %v164 = vunpack.c.l.b16 %v77
    %v165 = vunpack.c.h.b16 %v77
    %v166 = vunpack.c.l.b16 %v78
    %v167 = vunpack.c.h.b16 %v78
    %v168 = vunpack.c.l.b16 %v79
    %v169 = vunpack.c.h.b16 %v79
    %v170 = vunpack.c.l.b16 %v80
    %v171 = vunpack.c.h.b16 %v80
    %v172 = vunpack.c.l.b16 %v81
    %v173 = vunpack.c.h.b16 %v81
    %v174 = vunpack.c.l.b16 %v82
    %v175 = vunpack.c.h.b16 %v82
    %v176 = vunpack.c.l.b16 %v83
    %v177 = vunpack.c.h.b16 %v83
    %v178 = vunpack.c.l.b16 %v84
    %v179 = vunpack.c.h.b16 %v84
    %v180 = vunpack.c.l.b16 %v85
    %v181 = vunpack.c.h.b16 %v85
    %v182 = vunpack.c.l.b16 %v86
    %v183 = vunpack.c.h.b16 %v86
    %v184 = vunpack.c.l.b16 %v87
    %v185 = vunpack.c.h.b16 %v87
    %v186 = vunpack.c.l.b16 %v88
    %v187 = vunpack.c.h.b16 %v88
    %v188 = vunpack.c.l.b16 %v89
    %v189 = vunpack.c.h.b16 %v89
    %v190 = vunpack.c.l.b16 %v90
    %v191 = vunpack.c.h.b16 %v90
    %v192 = vpack.c.b16 %v132, %v128
    %v193 = vpack.c.b16 %v133, %v129
    %v194 = vpack.c.b16 %v134, %v130
    %v195 = vpack.c.b16 %v135, %v131
    %v196 = vpack.c.b16 %v140, %v136
    %v197 = vpack.c.b16 %v141, %v137
    %v198 = vpack.c.b16 %v142, %v138
    %v199 = vpack.c.b16 %v143, %v139
    %v200 = vpack.c.b16 %v148, %v144
    %v201 = vpack.c.b16 %v149, %v145
    %v202 = vpack.c.b16 %v150, %v146
    %v203 = vpack.c.b16 %v151, %v147
    %v204 = vpack.c.b16 %v156, %v152
    %v205 = vpack.c.b16 %v157, %v153
    %v206 = vpack.c.b16 %v158, %v154
    %v207 = vpack.c.b16 %v159, %v155
    %v208 = vpack.c.b16 %v164, %v160
    %v209 = vpack.c.b16 %v165, %v161
    %v210 = vpack.c.b16 %v166, %v162
    %v211 = vpack.c.b16 %v167, %v163
    %v212 = vpack.c.b16 %v172, %v168
    %v213 = vpack.c.b16 %v173, %v169
    %v214 = vpack.c.b16 %v174, %v170
    %v215 = vpack.c.b16 %v175, %v171
    %v216 = vpack.c.b16 %v180, %v176
    %v217 = vpack.c.b16 %v181, %v177
    %v218 = vpack.c.b16 %v182, %v178
    %v219 = vpack.c.b16 %v183, %v179
    %v220 = vpack.c.b16 %v188, %v184
    %v221 = vpack.c.b16 %v189, %v185
    %v222 = vpack.c.b16 %v190, %v186
    %v223 = vpack.c.b16 %v191, %v187
    %256 = vmatpush.bf16.msra.mxu0 %v220
    %257 = vmatpush.bf16.msra.mxu0 %v216
    %258 = vmatpush.bf16.msra.mxu0 %v212
    %259 = vmatpush.bf16.msra.mxu0 %v208
    %260 = vmatpush.bf16.msra.mxu0 %v204
    %261 = vmatpush.bf16.msra.mxu0 %v200
    %262 = vmatpush.bf16.msra.mxu0 %v196
    %263 = vmatpush.bf16.msra.mxu0 %v192
    %264 = vmatmul.bf16.gmra.mxu0 %v95
    %v265 = vpop.f32.mrf.mxu0
    %v266 = vadd.f32 0.0, %v265
    %v267 = vpop.f32.mrf.mxu0
    %268 = vdwg.mxu0
    %269 = vmatpush.bf16.msra.mxu0 %v221
    %270 = vmatpush.bf16.msra.mxu0 %v217
    %271 = vmatpush.bf16.msra.mxu0 %v213
    %272 = vmatpush.bf16.msra.mxu0 %v209
    %273 = vmatpush.bf16.msra.mxu0 %v205
    %274 = vmatpush.bf16.msra.mxu0 %v201
    %275 = vmatpush.bf16.msra.mxu0 %v197
    %276 = vmatpush.bf16.msra.mxu0 %v193
    %277 = vmatmul.bf16.gmra.mxu0 %v95
    %v278 = vpop.f32.mrf.mxu0
    %v279 = vadd.f32 0.0, %v278
    %v280 = vpop.f32.mrf.mxu0
    %281 = vdwg.mxu0
    %282 = vmatpush.bf16.msra.mxu0 %v222
    %283 = vmatpush.bf16.msra.mxu0 %v218
    %284 = vmatpush.bf16.msra.mxu0 %v214
    %285 = vmatpush.bf16.msra.mxu0 %v210
    %286 = vmatpush.bf16.msra.mxu0 %v206
    %287 = vmatpush.bf16.msra.mxu0 %v202
    %288 = vmatpush.bf16.msra.mxu0 %v198
    %289 = vmatpush.bf16.msra.mxu0 %v194
    %290 = vmatmul.bf16.gmra.mxu0 %v95
    %v291 = vpop.f32.mrf.mxu0
    %v292 = vadd.f32 0.0, %v291
    %v293 = vpop.f32.mrf.mxu0
    %294 = vdwg.mxu0
    %295 = vmatpush.bf16.msra.mxu0 %v223
    %296 = vmatpush.bf16.msra.mxu0 %v219
    %297 = vmatpush.bf16.msra.mxu0 %v215
    %298 = vmatpush.bf16.msra.mxu0 %v211
    %299 = vmatpush.bf16.msra.mxu0 %v207
    %300 = vmatpush.bf16.msra.mxu0 %v203
    %301 = vmatpush.bf16.msra.mxu0 %v199
    %302 = vmatpush.bf16.msra.mxu0 %v195
    %303 = vmatmul.bf16.gmra.mxu0 %v95
    %v304 = vpop.f32.mrf.mxu0
    %v305 = vadd.f32 0.0, %v304
    %v306 = vpop.f32.mrf.mxu0
    %307 = vdwg.mxu0
    %v316 = vunpack.c.l.b16 %v51
    %v317 = vunpack.c.h.b16 %v51
    %v318 = vunpack.c.l.b16 %v52
    %v319 = vunpack.c.h.b16 %v52
    %v320 = vunpack.c.l.b16 %v53
    %v321 = vunpack.c.h.b16 %v53
    %v322 = vunpack.c.l.b16 %v54
    %v323 = vunpack.c.h.b16 %v54
    %v324 = vunpack.c.l.b16 %v55
    %v325 = vunpack.c.h.b16 %v55
    %v326 = vunpack.c.l.b16 %v56
    %v327 = vunpack.c.h.b16 %v56
    %v328 = vunpack.c.l.b16 %v57
    %v329 = vunpack.c.h.b16 %v57
    %v330 = vunpack.c.l.b16 %v58
    %v331 = vunpack.c.h.b16 %v58
    %v332 = vpack.c.b16 %v320, %v316
    %v333 = vpack.c.b16 %v321, %v317
    %v334 = vpack.c.b16 %v322, %v318
    %v335 = vpack.c.b16 %v323, %v319
    %v336 = vpack.c.b16 %v328, %v324
    %v337 = vpack.c.b16 %v329, %v325
    %v338 = vpack.c.b16 %v330, %v326
    %v339 = vpack.c.b16 %v331, %v327
    %vm348 = vcmask 261120
    %v350 = vsel %vm348, %v94, 0
    %352 = vmatpush.bf16.msra.mxu0 0
    %353 = vmatpush.bf16.msra.mxu0 0
    %354 = vmatpush.bf16.msra.mxu0 0
    %355 = vmatpush.bf16.msra.mxu0 0
    %356 = vmatpush.bf16.msra.mxu0 0
    %357 = vmatpush.bf16.msra.mxu0 0
    %358 = vmatpush.bf16.msra.mxu0 %v336
    %359 = vmatpush.bf16.msra.mxu0 %v332
    %360 = vmatmul.bf16.gmra.mxu0 %v350
    %v361 = vpop.f32.mrf.mxu0
    %v362 = vadd.f32 %v266, %v361
    %v363 = vpop.f32.mrf.mxu0
    %364 = vdwg.mxu0
    %365 = vmatpush.bf16.msra.mxu0 0
    %366 = vmatpush.bf16.msra.mxu0 0
    %367 = vmatpush.bf16.msra.mxu0 0
    %368 = vmatpush.bf16.msra.mxu0 0
    %369 = vmatpush.bf16.msra.mxu0 0
    %370 = vmatpush.bf16.msra.mxu0 0
    %371 = vmatpush.bf16.msra.mxu0 %v337
    %372 = vmatpush.bf16.msra.mxu0 %v333
    %373 = vmatmul.bf16.gmra.mxu0 %v350
    %v374 = vpop.f32.mrf.mxu0
    %v375 = vadd.f32 %v279, %v374
    %v376 = vpop.f32.mrf.mxu0
    %377 = vdwg.mxu0
    %378 = vmatpush.bf16.msra.mxu0 0
    %379 = vmatpush.bf16.msra.mxu0 0
    %380 = vmatpush.bf16.msra.mxu0 0
    %381 = vmatpush.bf16.msra.mxu0 0
    %382 = vmatpush.bf16.msra.mxu0 0
    %383 = vmatpush.bf16.msra.mxu0 0
    %384 = vmatpush.bf16.msra.mxu0 %v338
    %385 = vmatpush.bf16.msra.mxu0 %v334
    %386 = vmatmul.bf16.gmra.mxu0 %v350
    %v387 = vpop.f32.mrf.mxu0
    %v388 = vadd.f32 %v292, %v387
    %v389 = vpop.f32.mrf.mxu0
    %390 = vdwg.mxu0
    %391 = vmatpush.bf16.msra.mxu0 0
    %392 = vmatpush.bf16.msra.mxu0 0
    %393 = vmatpush.bf16.msra.mxu0 0
    %394 = vmatpush.bf16.msra.mxu0 0
    %395 = vmatpush.bf16.msra.mxu0 0
    %396 = vmatpush.bf16.msra.mxu0 0
    %397 = vmatpush.bf16.msra.mxu0 %v339
    %398 = vmatpush.bf16.msra.mxu0 %v335
    %399 = vmatmul.bf16.gmra.mxu0 %v350
    %v400 = vpop.f32.mrf.mxu0
    %v401 = vadd.f32 %v305, %v400
    %v402 = vpop.f32.mrf.mxu0
    %403 = vdwg.mxu0
    %v405 = vperm.slane %v91, 0
    %v406 = vperm.slane %v91, 1
    %v407 = vperm.slane %v91, 2
    %v408 = vperm.slane %v91, 3
    %v413 = vadd.f32 %v362, %v405
    %v414 = vadd.f32 %v375, %v406
    %v415 = vadd.f32 %v388, %v407
    %v416 = vadd.f32 %v401, %v408
    %v417 = vxor.u32 %v413, 2147483648
    %v418 = vmul.f32 %v417, 1.442695
    %v419 = vpow.pop %v418
    %v420 = vadd.f32 %v419, 1.0
    %v421 = vrcp.pop %v420
    %v422 = vmul.f32 %v420, %v421
    %v423 = vsub.f32 1.0, %v422
    %v424 = vmul.f32 %v421, %v423
    %v425 = vadd.f32 %v421, %v424
    %vm426 = vweird.f32 %v420
    %vm427 = vweird.f32 %v421
    %vm428 = vmor %vm426, %vm427
    %v429 = vsel %vm428, %v421, %v425
    %v430 = vand.u32 2147483647, %v420
    %vm431 = vcmp.eq.f32.partialorder %v430, 8.507059e+37
    %v432 = vand.u32 %v420, 2147483648
    %v433 = vor.u32 1.1754944e-38, %v432
    %v434 = vsel %vm431, %v433, %v429
    %v435 = vmul.f32 1.0, %v434
    %v436 = vxor.u32 %v414, 2147483648
    %v437 = vmul.f32 %v436, 1.442695
    %v438 = vpow.pop %v437
    %v439 = vadd.f32 %v438, 1.0
    %v440 = vrcp.pop %v439
    %v441 = vmul.f32 %v439, %v440
    %v442 = vsub.f32 1.0, %v441
    %v443 = vmul.f32 %v440, %v442
    %v444 = vadd.f32 %v440, %v443
    %vm445 = vweird.f32 %v439
    %vm446 = vweird.f32 %v440
    %vm447 = vmor %vm445, %vm446
    %v448 = vsel %vm447, %v440, %v444
    %v449 = vand.u32 2147483647, %v439
    %vm450 = vcmp.eq.f32.partialorder %v449, 8.507059e+37
    %v451 = vand.u32 %v439, 2147483648
    %v452 = vor.u32 1.1754944e-38, %v451
    %v453 = vsel %vm450, %v452, %v448
    %v454 = vmul.f32 1.0, %v453
    %v455 = vtanh.pop %v415
    %v456 = vxor.u32 %v416, 2147483648
    %v457 = vmul.f32 %v456, 1.442695
    %v458 = vpow.pop %v457
    %v459 = vadd.f32 %v458, 1.0
    %v460 = vrcp.pop %v459
    %v461 = vmul.f32 %v459, %v460
    %v462 = vsub.f32 1.0, %v461
    %v463 = vmul.f32 %v460, %v462
    %v464 = vadd.f32 %v460, %v463
    %vm465 = vweird.f32 %v459
    %vm466 = vweird.f32 %v460
    %vm467 = vmor %vm465, %vm466
    %v468 = vsel %vm467, %v460, %v464
    %v469 = vand.u32 2147483647, %v459
    %vm470 = vcmp.eq.f32.partialorder %v469, 8.507059e+37
    %v471 = vand.u32 %v459, 2147483648
    %v472 = vor.u32 1.1754944e-38, %v471
    %v473 = vsel %vm470, %v472, %v468
    %v474 = vmul.f32 1.0, %v473
    %v475 = vmul.f32 %v454, %v93
    %v476 = vmul.f32 %v435, %v455
    %v477 = vadd.f32 %v475, %v476
    %v478 = vtanh.pop %v477
    %v479 = vmul.f32 %v474, %v478
    %v480 = vpack.c.bf16 %v479, %v479
    %481 = vst [vmem:[%s6] sm:$0xf] %v480
    %s482 = scalar_lea.vmem %s0, 4
    %v483 = vld [vmem:[%s482] sm:$0xf]
    %484 = vmatpush.bf16.msra.mxu0 %v220
    %485 = vmatpush.bf16.msra.mxu0 %v216
    %486 = vmatpush.bf16.msra.mxu0 %v212
    %487 = vmatpush.bf16.msra.mxu0 %v208
    %488 = vmatpush.bf16.msra.mxu0 %v204
    %489 = vmatpush.bf16.msra.mxu0 %v200
    %490 = vmatpush.bf16.msra.mxu0 %v196
    %491 = vmatpush.bf16.msra.mxu0 %v192
    %492 = vmatmul.bf16.gmra.mxu0 %v480
    %v493 = vpop.f32.mrf.mxu0
    %v494 = vadd.f32 0.0, %v493
    %v495 = vpop.f32.mrf.mxu0
    %496 = vdwg.mxu0
    %497 = vmatpush.bf16.msra.mxu0 %v221
    %498 = vmatpush.bf16.msra.mxu0 %v217
    %499 = vmatpush.bf16.msra.mxu0 %v213
    %500 = vmatpush.bf16.msra.mxu0 %v209
    %501 = vmatpush.bf16.msra.mxu0 %v205
    %502 = vmatpush.bf16.msra.mxu0 %v201
    %503 = vmatpush.bf16.msra.mxu0 %v197
    %504 = vmatpush.bf16.msra.mxu0 %v193
    %505 = vmatmul.bf16.gmra.mxu0 %v480
    %v506 = vpop.f32.mrf.mxu0
    %v507 = vadd.f32 0.0, %v506
    %v508 = vpop.f32.mrf.mxu0
    %509 = vdwg.mxu0
    %510 = vmatpush.bf16.msra.mxu0 %v222
    %511 = vmatpush.bf16.msra.mxu0 %v218
    %512 = vmatpush.bf16.msra.mxu0 %v214
    %513 = vmatpush.bf16.msra.mxu0 %v210
    %514 = vmatpush.bf16.msra.mxu0 %v206
    %515 = vmatpush.bf16.msra.mxu0 %v202
    %516 = vmatpush.bf16.msra.mxu0 %v198
    %517 = vmatpush.bf16.msra.mxu0 %v194
    %518 = vmatmul.bf16.gmra.mxu0 %v480
    %v519 = vpop.f32.mrf.mxu0
    %v520 = vadd.f32 0.0, %v519
    %v521 = vpop.f32.mrf.mxu0
    %522 = vdwg.mxu0
    %523 = vmatpush.bf16.msra.mxu0 %v223
    %524 = vmatpush.bf16.msra.mxu0 %v219
    %525 = vmatpush.bf16.msra.mxu0 %v215
    %526 = vmatpush.bf16.msra.mxu0 %v211
    %527 = vmatpush.bf16.msra.mxu0 %v207
    %528 = vmatpush.bf16.msra.mxu0 %v203
    %529 = vmatpush.bf16.msra.mxu0 %v199
    %530 = vmatpush.bf16.msra.mxu0 %v195
    %531 = vmatmul.bf16.gmra.mxu0 %v480
    %v532 = vpop.f32.mrf.mxu0
    %v533 = vadd.f32 0.0, %v532
    %v534 = vpop.f32.mrf.mxu0
    %535 = vdwg.mxu0
    %v537 = vsel %vm348, %v483, 0
    %539 = vmatpush.bf16.msra.mxu0 0
    %540 = vmatpush.bf16.msra.mxu0 0
    %541 = vmatpush.bf16.msra.mxu0 0
    %542 = vmatpush.bf16.msra.mxu0 0
    %543 = vmatpush.bf16.msra.mxu0 0
    %544 = vmatpush.bf16.msra.mxu0 0
    %545 = vmatpush.bf16.msra.mxu0 %v336
    %546 = vmatpush.bf16.msra.mxu0 %v332
    %547 = vmatmul.bf16.gmra.mxu0 %v537
    %v548 = vpop.f32.mrf.mxu0
    %v549 = vadd.f32 %v494, %v548
    %v550 = vpop.f32.mrf.mxu0
    %551 = vdwg.mxu0
    %552 = vmatpush.bf16.msra.mxu0 0
    %553 = vmatpush.bf16.msra.mxu0 0
    %554 = vmatpush.bf16.msra.mxu0 0
    %555 = vmatpush.bf16.msra.mxu0 0
    %556 = vmatpush.bf16.msra.mxu0 0
    %557 = vmatpush.bf16.msra.mxu0 0
    %558 = vmatpush.bf16.msra.mxu0 %v337
    %559 = vmatpush.bf16.msra.mxu0 %v333
    %560 = vmatmul.bf16.gmra.mxu0 %v537
    %v561 = vpop.f32.mrf.mxu0
    %v562 = vadd.f32 %v507, %v561
    %v563 = vpop.f32.mrf.mxu0
    %564 = vdwg.mxu0
    %565 = vmatpush.bf16.msra.mxu0 0
    %566 = vmatpush.bf16.msra.mxu0 0
    %567 = vmatpush.bf16.msra.mxu0 0
    %568 = vmatpush.bf16.msra.mxu0 0
    %569 = vmatpush.bf16.msra.mxu0 0
    %570 = vmatpush.bf16.msra.mxu0 0
    %571 = vmatpush.bf16.msra.mxu0 %v338
    %572 = vmatpush.bf16.msra.mxu0 %v334
    %573 = vmatmul.bf16.gmra.mxu0 %v537
    %v574 = vpop.f32.mrf.mxu0
    %v575 = vadd.f32 %v520, %v574
    %v576 = vpop.f32.mrf.mxu0
    %577 = vdwg.mxu0
    %578 = vmatpush.bf16.msra.mxu0 0
    %579 = vmatpush.bf16.msra.mxu0 0
    %580 = vmatpush.bf16.msra.mxu0 0
    %581 = vmatpush.bf16.msra.mxu0 0
    %582 = vmatpush.bf16.msra.mxu0 0
    %583 = vmatpush.bf16.msra.mxu0 0
    %584 = vmatpush.bf16.msra.mxu0 %v339
    %585 = vmatpush.bf16.msra.mxu0 %v335
    %586 = vmatmul.bf16.gmra.mxu0 %v537
    %v587 = vpop.f32.mrf.mxu0
    %v588 = vadd.f32 %v533, %v587
    %v589 = vpop.f32.mrf.mxu0
    %590 = vdwg.mxu0
    %v591 = vadd.f32 %v549, %v405
    %v592 = vadd.f32 %v562, %v406
    %v593 = vadd.f32 %v575, %v407
    %v594 = vadd.f32 %v588, %v408
    %v595 = vxor.u32 %v591, 2147483648
    %v596 = vmul.f32 %v595, 1.442695
    %v597 = vpow.pop %v596
    %v598 = vadd.f32 %v597, 1.0
    %v599 = vrcp.pop %v598
    %v600 = vmul.f32 %v598, %v599
    %v601 = vsub.f32 1.0, %v600
    %v602 = vmul.f32 %v599, %v601
    %v603 = vadd.f32 %v599, %v602
    %vm604 = vweird.f32 %v598
    %vm605 = vweird.f32 %v599
    %vm606 = vmor %vm604, %vm605
    %v607 = vsel %vm606, %v599, %v603
    %v608 = vand.u32 2147483647, %v598
    %vm609 = vcmp.eq.f32.partialorder %v608, 8.507059e+37
    %v610 = vand.u32 %v598, 2147483648
    %v611 = vor.u32 1.1754944e-38, %v610
    %v612 = vsel %vm609, %v611, %v607
    %v613 = vmul.f32 1.0, %v612
    %v614 = vxor.u32 %v592, 2147483648
    %v615 = vmul.f32 %v614, 1.442695
    %v616 = vpow.pop %v615
    %v617 = vadd.f32 %v616, 1.0
    %v618 = vrcp.pop %v617
    %v619 = vmul.f32 %v617, %v618
    %v620 = vsub.f32 1.0, %v619
    %v621 = vmul.f32 %v618, %v620
    %v622 = vadd.f32 %v618, %v621
    %vm623 = vweird.f32 %v617
    %vm624 = vweird.f32 %v618
    %vm625 = vmor %vm623, %vm624
    %v626 = vsel %vm625, %v618, %v622
    %v627 = vand.u32 2147483647, %v617
    %vm628 = vcmp.eq.f32.partialorder %v627, 8.507059e+37
    %v629 = vand.u32 %v617, 2147483648
    %v630 = vor.u32 1.1754944e-38, %v629
    %v631 = vsel %vm628, %v630, %v626
    %v632 = vmul.f32 1.0, %v631
    %v633 = vtanh.pop %v593
    %v634 = vxor.u32 %v594, 2147483648
    %v635 = vmul.f32 %v634, 1.442695
    %v636 = vpow.pop %v635
    %v637 = vadd.f32 %v636, 1.0
    %v638 = vrcp.pop %v637
    %v639 = vmul.f32 %v637, %v638
    %v640 = vsub.f32 1.0, %v639
    %v641 = vmul.f32 %v638, %v640
    %v642 = vadd.f32 %v638, %v641
    %vm643 = vweird.f32 %v637
    %vm644 = vweird.f32 %v638
    %vm645 = vmor %vm643, %vm644
    %v646 = vsel %vm645, %v638, %v642
    %v647 = vand.u32 2147483647, %v637
    %vm648 = vcmp.eq.f32.partialorder %v647, 8.507059e+37
    %v649 = vand.u32 %v637, 2147483648
    %v650 = vor.u32 1.1754944e-38, %v649
    %v651 = vsel %vm648, %v650, %v646
    %v652 = vmul.f32 1.0, %v651
    %v653 = vmul.f32 %v632, %v477
    %v654 = vmul.f32 %v613, %v633
    %v655 = vadd.f32 %v653, %v654
    %v656 = vtanh.pop %v655
    %v657 = vmul.f32 %v652, %v656
    %v658 = vpack.c.bf16 %v657, %v657
    %s659 = scalar_lea.vmem %s6, 4
    %660 = vst [vmem:[%s659] sm:$0xf] %v658
    %s661 = scalar_lea.vmem %s0, 8
    %v662 = vld [vmem:[%s661] sm:$0xf]
    %663 = vmatpush.bf16.msra.mxu0 %v220
    %664 = vmatpush.bf16.msra.mxu0 %v216
    %665 = vmatpush.bf16.msra.mxu0 %v212
    %666 = vmatpush.bf16.msra.mxu0 %v208
    %667 = vmatpush.bf16.msra.mxu0 %v204
    %668 = vmatpush.bf16.msra.mxu0 %v200
    %669 = vmatpush.bf16.msra.mxu0 %v196
    %670 = vmatpush.bf16.msra.mxu0 %v192
    %671 = vmatmul.bf16.gmra.mxu0 %v658
    %v672 = vpop.f32.mrf.mxu0
    %v673 = vadd.f32 0.0, %v672
    %v674 = vpop.f32.mrf.mxu0
    %675 = vdwg.mxu0
    %676 = vmatpush.bf16.msra.mxu0 %v221
    %677 = vmatpush.bf16.msra.mxu0 %v217
    %678 = vmatpush.bf16.msra.mxu0 %v213
    %679 = vmatpush.bf16.msra.mxu0 %v209
    %680 = vmatpush.bf16.msra.mxu0 %v205
    %681 = vmatpush.bf16.msra.mxu0 %v201
    %682 = vmatpush.bf16.msra.mxu0 %v197
    %683 = vmatpush.bf16.msra.mxu0 %v193
    %684 = vmatmul.bf16.gmra.mxu0 %v658
    %v685 = vpop.f32.mrf.mxu0
    %v686 = vadd.f32 0.0, %v685
    %v687 = vpop.f32.mrf.mxu0
    %688 = vdwg.mxu0
    %689 = vmatpush.bf16.msra.mxu0 %v222
    %690 = vmatpush.bf16.msra.mxu0 %v218
    %691 = vmatpush.bf16.msra.mxu0 %v214
    %692 = vmatpush.bf16.msra.mxu0 %v210
    %693 = vmatpush.bf16.msra.mxu0 %v206
    %694 = vmatpush.bf16.msra.mxu0 %v202
    %695 = vmatpush.bf16.msra.mxu0 %v198
    %696 = vmatpush.bf16.msra.mxu0 %v194
    %697 = vmatmul.bf16.gmra.mxu0 %v658
    %v698 = vpop.f32.mrf.mxu0
    %v699 = vadd.f32 0.0, %v698
    %v700 = vpop.f32.mrf.mxu0
    %701 = vdwg.mxu0
    %702 = vmatpush.bf16.msra.mxu0 %v223
    %703 = vmatpush.bf16.msra.mxu0 %v219
    %704 = vmatpush.bf16.msra.mxu0 %v215
    %705 = vmatpush.bf16.msra.mxu0 %v211
    %706 = vmatpush.bf16.msra.mxu0 %v207
    %707 = vmatpush.bf16.msra.mxu0 %v203
    %708 = vmatpush.bf16.msra.mxu0 %v199
    %709 = vmatpush.bf16.msra.mxu0 %v195
    %710 = vmatmul.bf16.gmra.mxu0 %v658
    %v711 = vpop.f32.mrf.mxu0
    %v712 = vadd.f32 0.0, %v711
    %v713 = vpop.f32.mrf.mxu0
    %714 = vdwg.mxu0
    %v716 = vsel %vm348, %v662, 0
    %718 = vmatpush.bf16.msra.mxu0 0
    %719 = vmatpush.bf16.msra.mxu0 0
    %720 = vmatpush.bf16.msra.mxu0 0
    %721 = vmatpush.bf16.msra.mxu0 0
    %722 = vmatpush.bf16.msra.mxu0 0
    %723 = vmatpush.bf16.msra.mxu0 0
    %724 = vmatpush.bf16.msra.mxu0 %v336
    %725 = vmatpush.bf16.msra.mxu0 %v332
    %726 = vmatmul.bf16.gmra.mxu0 %v716
    %v727 = vpop.f32.mrf.mxu0
    %v728 = vadd.f32 %v673, %v727
    %v729 = vpop.f32.mrf.mxu0
    %730 = vdwg.mxu0
    %731 = vmatpush.bf16.msra.mxu0 0
    %732 = vmatpush.bf16.msra.mxu0 0
    %733 = vmatpush.bf16.msra.mxu0 0
    %734 = vmatpush.bf16.msra.mxu0 0
    %735 = vmatpush.bf16.msra.mxu0 0
    %736 = vmatpush.bf16.msra.mxu0 0
    %737 = vmatpush.bf16.msra.mxu0 %v337
    %738 = vmatpush.bf16.msra.mxu0 %v333
    %739 = vmatmul.bf16.gmra.mxu0 %v716
    %v740 = vpop.f32.mrf.mxu0
    %v741 = vadd.f32 %v686, %v740
    %v742 = vpop.f32.mrf.mxu0
    %743 = vdwg.mxu0
    %744 = vmatpush.bf16.msra.mxu0 0
    %745 = vmatpush.bf16.msra.mxu0 0
    %746 = vmatpush.bf16.msra.mxu0 0
    %747 = vmatpush.bf16.msra.mxu0 0
    %748 = vmatpush.bf16.msra.mxu0 0
    %749 = vmatpush.bf16.msra.mxu0 0
    %750 = vmatpush.bf16.msra.mxu0 %v338
    %751 = vmatpush.bf16.msra.mxu0 %v334
    %752 = vmatmul.bf16.gmra.mxu0 %v716
    %v753 = vpop.f32.mrf.mxu0
    %v754 = vadd.f32 %v699, %v753
    %v755 = vpop.f32.mrf.mxu0
    %756 = vdwg.mxu0
    %757 = vmatpush.bf16.msra.mxu0 0
    %758 = vmatpush.bf16.msra.mxu0 0
    %759 = vmatpush.bf16.msra.mxu0 0
    %760 = vmatpush.bf16.msra.mxu0 0
    %761 = vmatpush.bf16.msra.mxu0 0
    %762 = vmatpush.bf16.msra.mxu0 0
    %763 = vmatpush.bf16.msra.mxu0 %v339
    %764 = vmatpush.bf16.msra.mxu0 %v335
    %765 = vmatmul.bf16.gmra.mxu0 %v716
    %v766 = vpop.f32.mrf.mxu0
    %v767 = vadd.f32 %v712, %v766
    %v768 = vpop.f32.mrf.mxu0
    %769 = vdwg.mxu0
    %v770 = vadd.f32 %v728, %v405
    %v771 = vadd.f32 %v741, %v406
    %v772 = vadd.f32 %v754, %v407
    %v773 = vadd.f32 %v767, %v408
    %v774 = vxor.u32 %v770, 2147483648
    %v775 = vmul.f32 %v774, 1.442695
    %v776 = vpow.pop %v775
    %v777 = vadd.f32 %v776, 1.0
    %v778 = vrcp.pop %v777
    %v779 = vmul.f32 %v777, %v778
    %v780 = vsub.f32 1.0, %v779
    %v781 = vmul.f32 %v778, %v780
    %v782 = vadd.f32 %v778, %v781
    %vm783 = vweird.f32 %v777
    %vm784 = vweird.f32 %v778
    %vm785 = vmor %vm783, %vm784
    %v786 = vsel %vm785, %v778, %v782
    %v787 = vand.u32 2147483647, %v777
    %vm788 = vcmp.eq.f32.partialorder %v787, 8.507059e+37
    %v789 = vand.u32 %v777, 2147483648
    %v790 = vor.u32 1.1754944e-38, %v789
    %v791 = vsel %vm788, %v790, %v786
    %v792 = vmul.f32 1.0, %v791
    %v793 = vxor.u32 %v771, 2147483648
    %v794 = vmul.f32 %v793, 1.442695
    %v795 = vpow.pop %v794
    %v796 = vadd.f32 %v795, 1.0
    %v797 = vrcp.pop %v796
    %v798 = vmul.f32 %v796, %v797
    %v799 = vsub.f32 1.0, %v798
    %v800 = vmul.f32 %v797, %v799
    %v801 = vadd.f32 %v797, %v800
    %vm802 = vweird.f32 %v796
    %vm803 = vweird.f32 %v797
    %vm804 = vmor %vm802, %vm803
    %v805 = vsel %vm804, %v797, %v801
    %v806 = vand.u32 2147483647, %v796
    %vm807 = vcmp.eq.f32.partialorder %v806, 8.507059e+37
    %v808 = vand.u32 %v796, 2147483648
    %v809 = vor.u32 1.1754944e-38, %v808
    %v810 = vsel %vm807, %v809, %v805
    %v811 = vmul.f32 1.0, %v810
    %v812 = vtanh.pop %v772
    %v813 = vxor.u32 %v773, 2147483648
    %v814 = vmul.f32 %v813, 1.442695
    %v815 = vpow.pop %v814
    %v816 = vadd.f32 %v815, 1.0
    %v817 = vrcp.pop %v816
    %v818 = vmul.f32 %v816, %v817
    %v819 = vsub.f32 1.0, %v818
    %v820 = vmul.f32 %v817, %v819
    %v821 = vadd.f32 %v817, %v820
    %vm822 = vweird.f32 %v816
    %vm823 = vweird.f32 %v817
    %vm824 = vmor %vm822, %vm823
    %v825 = vsel %vm824, %v817, %v821
    %v826 = vand.u32 2147483647, %v816
    %vm827 = vcmp.eq.f32.partialorder %v826, 8.507059e+37
    %v828 = vand.u32 %v816, 2147483648
    %v829 = vor.u32 1.1754944e-38, %v828
    %v830 = vsel %vm827, %v829, %v825
    %v831 = vmul.f32 1.0, %v830
    %v832 = vmul.f32 %v811, %v655
    %v833 = vmul.f32 %v792, %v812
    %v834 = vadd.f32 %v832, %v833
    %v835 = vtanh.pop %v834
    %v836 = vmul.f32 %v831, %v835
    %v837 = vpack.c.bf16 %v836, %v836
    %s838 = scalar_lea.vmem %s6, 8
    %839 = vst [vmem:[%s838] sm:$0xf] %v837
    %s840 = scalar_lea.vmem %s0, 12
    %v841 = vld [vmem:[%s840] sm:$0xf]
    %842 = vmatpush.bf16.msra.mxu0 %v220
    %843 = vmatpush.bf16.msra.mxu0 %v216
    %844 = vmatpush.bf16.msra.mxu0 %v212
    %845 = vmatpush.bf16.msra.mxu0 %v208
    %846 = vmatpush.bf16.msra.mxu0 %v204
    %847 = vmatpush.bf16.msra.mxu0 %v200
    %848 = vmatpush.bf16.msra.mxu0 %v196
    %849 = vmatpush.bf16.msra.mxu0 %v192
    %850 = vmatmul.bf16.gmra.mxu0 %v837
    %v851 = vpop.f32.mrf.mxu0
    %v852 = vadd.f32 0.0, %v851
    %v853 = vpop.f32.mrf.mxu0
    %854 = vdwg.mxu0
    %855 = vmatpush.bf16.msra.mxu0 %v221
    %856 = vmatpush.bf16.msra.mxu0 %v217
    %857 = vmatpush.bf16.msra.mxu0 %v213
    %858 = vmatpush.bf16.msra.mxu0 %v209
    %859 = vmatpush.bf16.msra.mxu0 %v205
    %860 = vmatpush.bf16.msra.mxu0 %v201
    %861 = vmatpush.bf16.msra.mxu0 %v197
    %862 = vmatpush.bf16.msra.mxu0 %v193
    %863 = vmatmul.bf16.gmra.mxu0 %v837
    %v864 = vpop.f32.mrf.mxu0
    %v865 = vadd.f32 0.0, %v864
    %v866 = vpop.f32.mrf.mxu0
    %867 = vdwg.mxu0
    %868 = vmatpush.bf16.msra.mxu0 %v222
    %869 = vmatpush.bf16.msra.mxu0 %v218
    %870 = vmatpush.bf16.msra.mxu0 %v214
    %871 = vmatpush.bf16.msra.mxu0 %v210
    %872 = vmatpush.bf16.msra.mxu0 %v206
    %873 = vmatpush.bf16.msra.mxu0 %v202
    %874 = vmatpush.bf16.msra.mxu0 %v198
    %875 = vmatpush.bf16.msra.mxu0 %v194
    %876 = vmatmul.bf16.gmra.mxu0 %v837
    %v877 = vpop.f32.mrf.mxu0
    %v878 = vadd.f32 0.0, %v877
    %v879 = vpop.f32.mrf.mxu0
    %880 = vdwg.mxu0
    %881 = vmatpush.bf16.msra.mxu0 %v223
    %882 = vmatpush.bf16.msra.mxu0 %v219
    %883 = vmatpush.bf16.msra.mxu0 %v215
    %884 = vmatpush.bf16.msra.mxu0 %v211
    %885 = vmatpush.bf16.msra.mxu0 %v207
    %886 = vmatpush.bf16.msra.mxu0 %v203
    %887 = vmatpush.bf16.msra.mxu0 %v199
    %888 = vmatpush.bf16.msra.mxu0 %v195
    %889 = vmatmul.bf16.gmra.mxu0 %v837
    %v890 = vpop.f32.mrf.mxu0
    %v891 = vadd.f32 0.0, %v890
    %v892 = vpop.f32.mrf.mxu0
    %893 = vdwg.mxu0
    %v895 = vsel %vm348, %v841, 0
    %897 = vmatpush.bf16.msra.mxu0 0
    %898 = vmatpush.bf16.msra.mxu0 0
    %899 = vmatpush.bf16.msra.mxu0 0
    %900 = vmatpush.bf16.msra.mxu0 0
    %901 = vmatpush.bf16.msra.mxu0 0
    %902 = vmatpush.bf16.msra.mxu0 0
    %903 = vmatpush.bf16.msra.mxu0 %v336
    %904 = vmatpush.bf16.msra.mxu0 %v332
    %905 = vmatmul.bf16.gmra.mxu0 %v895
    %v906 = vpop.f32.mrf.mxu0
    %v907 = vadd.f32 %v852, %v906
    %v908 = vpop.f32.mrf.mxu0
    %909 = vdwg.mxu0
    %910 = vmatpush.bf16.msra.mxu0 0
    %911 = vmatpush.bf16.msra.mxu0 0
    %912 = vmatpush.bf16.msra.mxu0 0
    %913 = vmatpush.bf16.msra.mxu0 0
    %914 = vmatpush.bf16.msra.mxu0 0
    %915 = vmatpush.bf16.msra.mxu0 0
    %916 = vmatpush.bf16.msra.mxu0 %v337
    %917 = vmatpush.bf16.msra.mxu0 %v333
    %918 = vmatmul.bf16.gmra.mxu0 %v895
    %v919 = vpop.f32.mrf.mxu0
    %v920 = vadd.f32 %v865, %v919
    %v921 = vpop.f32.mrf.mxu0
    %922 = vdwg.mxu0
    %923 = vmatpush.bf16.msra.mxu0 0
    %924 = vmatpush.bf16.msra.mxu0 0
    %925 = vmatpush.bf16.msra.mxu0 0
    %926 = vmatpush.bf16.msra.mxu0 0
    %927 = vmatpush.bf16.msra.mxu0 0
    %928 = vmatpush.bf16.msra.mxu0 0
    %929 = vmatpush.bf16.msra.mxu0 %v338
    %930 = vmatpush.bf16.msra.mxu0 %v334
    %931 = vmatmul.bf16.gmra.mxu0 %v895
    %v932 = vpop.f32.mrf.mxu0
    %v933 = vadd.f32 %v878, %v932
    %v934 = vpop.f32.mrf.mxu0
    %935 = vdwg.mxu0
    %936 = vmatpush.bf16.msra.mxu0 0
    %937 = vmatpush.bf16.msra.mxu0 0
    %938 = vmatpush.bf16.msra.mxu0 0
    %939 = vmatpush.bf16.msra.mxu0 0
    %940 = vmatpush.bf16.msra.mxu0 0
    %941 = vmatpush.bf16.msra.mxu0 0
    %942 = vmatpush.bf16.msra.mxu0 %v339
    %943 = vmatpush.bf16.msra.mxu0 %v335
    %944 = vmatmul.bf16.gmra.mxu0 %v895
    %v945 = vpop.f32.mrf.mxu0
    %v946 = vadd.f32 %v891, %v945
    %v947 = vpop.f32.mrf.mxu0
    %948 = vdwg.mxu0
    %v949 = vadd.f32 %v907, %v405
    %v950 = vadd.f32 %v920, %v406
    %v951 = vadd.f32 %v933, %v407
    %v952 = vadd.f32 %v946, %v408
    %v953 = vxor.u32 %v949, 2147483648
    %v954 = vmul.f32 %v953, 1.442695
    %v955 = vpow.pop %v954
    %v956 = vadd.f32 %v955, 1.0
    %v957 = vrcp.pop %v956
    %v958 = vmul.f32 %v956, %v957
    %v959 = vsub.f32 1.0, %v958
    %v960 = vmul.f32 %v957, %v959
    %v961 = vadd.f32 %v957, %v960
    %vm962 = vweird.f32 %v956
    %vm963 = vweird.f32 %v957
    %vm964 = vmor %vm962, %vm963
    %v965 = vsel %vm964, %v957, %v961
    %v966 = vand.u32 2147483647, %v956
    %vm967 = vcmp.eq.f32.partialorder %v966, 8.507059e+37
    %v968 = vand.u32 %v956, 2147483648
    %v969 = vor.u32 1.1754944e-38, %v968
    %v970 = vsel %vm967, %v969, %v965
    %v971 = vmul.f32 1.0, %v970
    %v972 = vxor.u32 %v950, 2147483648
    %v973 = vmul.f32 %v972, 1.442695
    %v974 = vpow.pop %v973
    %v975 = vadd.f32 %v974, 1.0
    %v976 = vrcp.pop %v975
    %v977 = vmul.f32 %v975, %v976
    %v978 = vsub.f32 1.0, %v977
    %v979 = vmul.f32 %v976, %v978
    %v980 = vadd.f32 %v976, %v979
    %vm981 = vweird.f32 %v975
    %vm982 = vweird.f32 %v976
    %vm983 = vmor %vm981, %vm982
    %v984 = vsel %vm983, %v976, %v980
    %v985 = vand.u32 2147483647, %v975
    %vm986 = vcmp.eq.f32.partialorder %v985, 8.507059e+37
    %v987 = vand.u32 %v975, 2147483648
    %v988 = vor.u32 1.1754944e-38, %v987
    %v989 = vsel %vm986, %v988, %v984
    %v990 = vmul.f32 1.0, %v989
    %v991 = vtanh.pop %v951
    %v992 = vxor.u32 %v952, 2147483648
    %v993 = vmul.f32 %v992, 1.442695
    %v994 = vpow.pop %v993
    %v995 = vadd.f32 %v994, 1.0
    %v996 = vrcp.pop %v995
    %v997 = vmul.f32 %v995, %v996
    %v998 = vsub.f32 1.0, %v997
    %v999 = vmul.f32 %v996, %v998
    %v1000 = vadd.f32 %v996, %v999
    %vm1001 = vweird.f32 %v995
    %vm1002 = vweird.f32 %v996
    %vm1003 = vmor %vm1001, %vm1002
    %v1004 = vsel %vm1003, %v996, %v1000
    %v1005 = vand.u32 2147483647, %v995
    %vm1006 = vcmp.eq.f32.partialorder %v1005, 8.507059e+37
    %v1007 = vand.u32 %v995, 2147483648
    %v1008 = vor.u32 1.1754944e-38, %v1007
    %v1009 = vsel %vm1006, %v1008, %v1004
    %v1010 = vmul.f32 1.0, %v1009
    %v1011 = vmul.f32 %v990, %v834
    %v1012 = vmul.f32 %v971, %v991
    %v1013 = vadd.f32 %v1011, %v1012
    %v1014 = vtanh.pop %v1013
    %v1015 = vmul.f32 %v1010, %v1014
    %v1016 = vpack.c.bf16 %v1015, %v1015
    %s1017 = scalar_lea.vmem %s6, 12
    %1018 = vst [vmem:[%s1017] sm:$0xf] %v1016
    %s1019 = scalar_lea.vmem %s0, 16
    %v1020 = vld [vmem:[%s1019] sm:$0xf]
    %1021 = vmatpush.bf16.msra.mxu0 %v220
    %1022 = vmatpush.bf16.msra.mxu0 %v216
    %1023 = vmatpush.bf16.msra.mxu0 %v212
    %1024 = vmatpush.bf16.msra.mxu0 %v208
    %1025 = vmatpush.bf16.msra.mxu0 %v204
    %1026 = vmatpush.bf16.msra.mxu0 %v200
    %1027 = vmatpush.bf16.msra.mxu0 %v196
    %1028 = vmatpush.bf16.msra.mxu0 %v192
    %1029 = vmatmul.bf16.gmra.mxu0 %v1016
    %v1030 = vpop.f32.mrf.mxu0
    %v1031 = vadd.f32 0.0, %v1030
    %v1032 = vpop.f32.mrf.mxu0
    %1033 = vdwg.mxu0
    %1034 = vmatpush.bf16.msra.mxu0 %v221
    %1035 = vmatpush.bf16.msra.mxu0 %v217
    %1036 = vmatpush.bf16.msra.mxu0 %v213
    %1037 = vmatpush.bf16.msra.mxu0 %v209
    %1038 = vmatpush.bf16.msra.mxu0 %v205
    %1039 = vmatpush.bf16.msra.mxu0 %v201
    %1040 = vmatpush.bf16.msra.mxu0 %v197
    %1041 = vmatpush.bf16.msra.mxu0 %v193
    %1042 = vmatmul.bf16.gmra.mxu0 %v1016
    %v1043 = vpop.f32.mrf.mxu0
    %v1044 = vadd.f32 0.0, %v1043
    %v1045 = vpop.f32.mrf.mxu0
    %1046 = vdwg.mxu0
    %1047 = vmatpush.bf16.msra.mxu0 %v222
    %1048 = vmatpush.bf16.msra.mxu0 %v218
    %1049 = vmatpush.bf16.msra.mxu0 %v214
    %1050 = vmatpush.bf16.msra.mxu0 %v210
    %1051 = vmatpush.bf16.msra.mxu0 %v206
    %1052 = vmatpush.bf16.msra.mxu0 %v202
    %1053 = vmatpush.bf16.msra.mxu0 %v198
    %1054 = vmatpush.bf16.msra.mxu0 %v194
    %1055 = vmatmul.bf16.gmra.mxu0 %v1016
    %v1056 = vpop.f32.mrf.mxu0
    %v1057 = vadd.f32 0.0, %v1056
    %v1058 = vpop.f32.mrf.mxu0
    %1059 = vdwg.mxu0
    %1060 = vmatpush.bf16.msra.mxu0 %v223
    %1061 = vmatpush.bf16.msra.mxu0 %v219
    %1062 = vmatpush.bf16.msra.mxu0 %v215
    %1063 = vmatpush.bf16.msra.mxu0 %v211
    %1064 = vmatpush.bf16.msra.mxu0 %v207
    %1065 = vmatpush.bf16.msra.mxu0 %v203
    %1066 = vmatpush.bf16.msra.mxu0 %v199
    %1067 = vmatpush.bf16.msra.mxu0 %v195
    %1068 = vmatmul.bf16.gmra.mxu0 %v1016
    %v1069 = vpop.f32.mrf.mxu0
    %v1070 = vadd.f32 0.0, %v1069
    %v1071 = vpop.f32.mrf.mxu0
    %1072 = vdwg.mxu0
    %v1074 = vsel %vm348, %v1020, 0
    %1076 = vmatpush.bf16.msra.mxu0 0
    %1077 = vmatpush.bf16.msra.mxu0 0
    %1078 = vmatpush.bf16.msra.mxu0 0
    %1079 = vmatpush.bf16.msra.mxu0 0
    %1080 = vmatpush.bf16.msra.mxu0 0
    %1081 = vmatpush.bf16.msra.mxu0 0
    %1082 = vmatpush.bf16.msra.mxu0 %v336
    %1083 = vmatpush.bf16.msra.mxu0 %v332
    %1084 = vmatmul.bf16.gmra.mxu0 %v1074
    %v1085 = vpop.f32.mrf.mxu0
    %v1086 = vadd.f32 %v1031, %v1085
    %v1087 = vpop.f32.mrf.mxu0
    %1088 = vdwg.mxu0
    %1089 = vmatpush.bf16.msra.mxu0 0
    %1090 = vmatpush.bf16.msra.mxu0 0
    %1091 = vmatpush.bf16.msra.mxu0 0
    %1092 = vmatpush.bf16.msra.mxu0 0
    %1093 = vmatpush.bf16.msra.mxu0 0
    %1094 = vmatpush.bf16.msra.mxu0 0
    %1095 = vmatpush.bf16.msra.mxu0 %v337
    %1096 = vmatpush.bf16.msra.mxu0 %v333
    %1097 = vmatmul.bf16.gmra.mxu0 %v1074
    %v1098 = vpop.f32.mrf.mxu0
    %v1099 = vadd.f32 %v1044, %v1098
    %v1100 = vpop.f32.mrf.mxu0
    %1101 = vdwg.mxu0
    %1102 = vmatpush.bf16.msra.mxu0 0
    %1103 = vmatpush.bf16.msra.mxu0 0
    %1104 = vmatpush.bf16.msra.mxu0 0
    %1105 = vmatpush.bf16.msra.mxu0 0
    %1106 = vmatpush.bf16.msra.mxu0 0
    %1107 = vmatpush.bf16.msra.mxu0 0
    %1108 = vmatpush.bf16.msra.mxu0 %v338
    %1109 = vmatpush.bf16.msra.mxu0 %v334
    %1110 = vmatmul.bf16.gmra.mxu0 %v1074
    %v1111 = vpop.f32.mrf.mxu0
    %v1112 = vadd.f32 %v1057, %v1111
    %v1113 = vpop.f32.mrf.mxu0
    %1114 = vdwg.mxu0
    %1115 = vmatpush.bf16.msra.mxu0 0
    %1116 = vmatpush.bf16.msra.mxu0 0
    %1117 = vmatpush.bf16.msra.mxu0 0
    %1118 = vmatpush.bf16.msra.mxu0 0
    %1119 = vmatpush.bf16.msra.mxu0 0
    %1120 = vmatpush.bf16.msra.mxu0 0
    %1121 = vmatpush.bf16.msra.mxu0 %v339
    %1122 = vmatpush.bf16.msra.mxu0 %v335
    %1123 = vmatmul.bf16.gmra.mxu0 %v1074
    %v1124 = vpop.f32.mrf.mxu0
    %v1125 = vadd.f32 %v1070, %v1124
    %v1126 = vpop.f32.mrf.mxu0
    %1127 = vdwg.mxu0
    %v1128 = vadd.f32 %v1086, %v405
    %v1129 = vadd.f32 %v1099, %v406
    %v1130 = vadd.f32 %v1112, %v407
    %v1131 = vadd.f32 %v1125, %v408
    %v1132 = vxor.u32 %v1128, 2147483648
    %v1133 = vmul.f32 %v1132, 1.442695
    %v1134 = vpow.pop %v1133
    %v1135 = vadd.f32 %v1134, 1.0
    %v1136 = vrcp.pop %v1135
    %v1137 = vmul.f32 %v1135, %v1136
    %v1138 = vsub.f32 1.0, %v1137
    %v1139 = vmul.f32 %v1136, %v1138
    %v1140 = vadd.f32 %v1136, %v1139
    %vm1141 = vweird.f32 %v1135
    %vm1142 = vweird.f32 %v1136
    %vm1143 = vmor %vm1141, %vm1142
    %v1144 = vsel %vm1143, %v1136, %v1140
    %v1145 = vand.u32 2147483647, %v1135
    %vm1146 = vcmp.eq.f32.partialorder %v1145, 8.507059e+37
    %v1147 = vand.u32 %v1135, 2147483648
    %v1148 = vor.u32 1.1754944e-38, %v1147
    %v1149 = vsel %vm1146, %v1148, %v1144
    %v1150 = vmul.f32 1.0, %v1149
    %v1151 = vxor.u32 %v1129, 2147483648
    %v1152 = vmul.f32 %v1151, 1.442695
    %v1153 = vpow.pop %v1152
    %v1154 = vadd.f32 %v1153, 1.0
    %v1155 = vrcp.pop %v1154
    %v1156 = vmul.f32 %v1154, %v1155
    %v1157 = vsub.f32 1.0, %v1156
    %v1158 = vmul.f32 %v1155, %v1157
    %v1159 = vadd.f32 %v1155, %v1158
    %vm1160 = vweird.f32 %v1154
    %vm1161 = vweird.f32 %v1155
    %vm1162 = vmor %vm1160, %vm1161
    %v1163 = vsel %vm1162, %v1155, %v1159
    %v1164 = vand.u32 2147483647, %v1154
    %vm1165 = vcmp.eq.f32.partialorder %v1164, 8.507059e+37
    %v1166 = vand.u32 %v1154, 2147483648
    %v1167 = vor.u32 1.1754944e-38, %v1166
    %v1168 = vsel %vm1165, %v1167, %v1163
    %v1169 = vmul.f32 1.0, %v1168
    %v1170 = vtanh.pop %v1130
    %v1171 = vxor.u32 %v1131, 2147483648
    %v1172 = vmul.f32 %v1171, 1.442695
    %v1173 = vpow.pop %v1172
    %v1174 = vadd.f32 %v1173, 1.0
    %v1175 = vrcp.pop %v1174
    %v1176 = vmul.f32 %v1174, %v1175
    %v1177 = vsub.f32 1.0, %v1176
    %v1178 = vmul.f32 %v1175, %v1177
    %v1179 = vadd.f32 %v1175, %v1178
    %vm1180 = vweird.f32 %v1174
    %vm1181 = vweird.f32 %v1175
    %vm1182 = vmor %vm1180, %vm1181
    %v1183 = vsel %vm1182, %v1175, %v1179
    %v1184 = vand.u32 2147483647, %v1174
    %vm1185 = vcmp.eq.f32.partialorder %v1184, 8.507059e+37
    %v1186 = vand.u32 %v1174, 2147483648
    %v1187 = vor.u32 1.1754944e-38, %v1186
    %v1188 = vsel %vm1185, %v1187, %v1183
    %v1189 = vmul.f32 1.0, %v1188
    %v1190 = vmul.f32 %v1169, %v1013
    %v1191 = vmul.f32 %v1150, %v1170
    %v1192 = vadd.f32 %v1190, %v1191
    %v1193 = vtanh.pop %v1192
    %v1194 = vmul.f32 %v1189, %v1193
    %v1195 = vpack.c.bf16 %v1194, %v1194
    %s1196 = scalar_lea.vmem %s6, 16
    %1197 = vst [vmem:[%s1196] sm:$0xf] %v1195
    %s1198 = scalar_lea.vmem %s0, 20
    %v1199 = vld [vmem:[%s1198] sm:$0xf]
    %1200 = vmatpush.bf16.msra.mxu0 %v220
    %1201 = vmatpush.bf16.msra.mxu0 %v216
    %1202 = vmatpush.bf16.msra.mxu0 %v212
    %1203 = vmatpush.bf16.msra.mxu0 %v208
    %1204 = vmatpush.bf16.msra.mxu0 %v204
    %1205 = vmatpush.bf16.msra.mxu0 %v200
    %1206 = vmatpush.bf16.msra.mxu0 %v196
    %1207 = vmatpush.bf16.msra.mxu0 %v192
    %1208 = vmatmul.bf16.gmra.mxu0 %v1195
    %v1209 = vpop.f32.mrf.mxu0
    %v1210 = vadd.f32 0.0, %v1209
    %v1211 = vpop.f32.mrf.mxu0
    %1212 = vdwg.mxu0
    %1213 = vmatpush.bf16.msra.mxu0 %v221
    %1214 = vmatpush.bf16.msra.mxu0 %v217
    %1215 = vmatpush.bf16.msra.mxu0 %v213
    %1216 = vmatpush.bf16.msra.mxu0 %v209
    %1217 = vmatpush.bf16.msra.mxu0 %v205
    %1218 = vmatpush.bf16.msra.mxu0 %v201
    %1219 = vmatpush.bf16.msra.mxu0 %v197
    %1220 = vmatpush.bf16.msra.mxu0 %v193
    %1221 = vmatmul.bf16.gmra.mxu0 %v1195
    %v1222 = vpop.f32.mrf.mxu0
    %v1223 = vadd.f32 0.0, %v1222
    %v1224 = vpop.f32.mrf.mxu0
    %1225 = vdwg.mxu0
    %1226 = vmatpush.bf16.msra.mxu0 %v222
    %1227 = vmatpush.bf16.msra.mxu0 %v218
    %1228 = vmatpush.bf16.msra.mxu0 %v214
    %1229 = vmatpush.bf16.msra.mxu0 %v210
    %1230 = vmatpush.bf16.msra.mxu0 %v206
    %1231 = vmatpush.bf16.msra.mxu0 %v202
    %1232 = vmatpush.bf16.msra.mxu0 %v198
    %1233 = vmatpush.bf16.msra.mxu0 %v194
    %1234 = vmatmul.bf16.gmra.mxu0 %v1195
    %v1235 = vpop.f32.mrf.mxu0
    %v1236 = vadd.f32 0.0, %v1235
    %v1237 = vpop.f32.mrf.mxu0
    %1238 = vdwg.mxu0
    %1239 = vmatpush.bf16.msra.mxu0 %v223
    %1240 = vmatpush.bf16.msra.mxu0 %v219
    %1241 = vmatpush.bf16.msra.mxu0 %v215
    %1242 = vmatpush.bf16.msra.mxu0 %v211
    %1243 = vmatpush.bf16.msra.mxu0 %v207
    %1244 = vmatpush.bf16.msra.mxu0 %v203
    %1245 = vmatpush.bf16.msra.mxu0 %v199
    %1246 = vmatpush.bf16.msra.mxu0 %v195
    %1247 = vmatmul.bf16.gmra.mxu0 %v1195
    %v1248 = vpop.f32.mrf.mxu0
    %v1249 = vadd.f32 0.0, %v1248
    %v1250 = vpop.f32.mrf.mxu0
    %1251 = vdwg.mxu0
    %v1253 = vsel %vm348, %v1199, 0
    %1255 = vmatpush.bf16.msra.mxu0 0
    %1256 = vmatpush.bf16.msra.mxu0 0
    %1257 = vmatpush.bf16.msra.mxu0 0
    %1258 = vmatpush.bf16.msra.mxu0 0
    %1259 = vmatpush.bf16.msra.mxu0 0
    %1260 = vmatpush.bf16.msra.mxu0 0
    %1261 = vmatpush.bf16.msra.mxu0 %v336
    %1262 = vmatpush.bf16.msra.mxu0 %v332
    %1263 = vmatmul.bf16.gmra.mxu0 %v1253
    %v1264 = vpop.f32.mrf.mxu0
    %v1265 = vadd.f32 %v1210, %v1264
    %v1266 = vpop.f32.mrf.mxu0
    %1267 = vdwg.mxu0
    %1268 = vmatpush.bf16.msra.mxu0 0
    %1269 = vmatpush.bf16.msra.mxu0 0
    %1270 = vmatpush.bf16.msra.mxu0 0
    %1271 = vmatpush.bf16.msra.mxu0 0
    %1272 = vmatpush.bf16.msra.mxu0 0
    %1273 = vmatpush.bf16.msra.mxu0 0
    %1274 = vmatpush.bf16.msra.mxu0 %v337
    %1275 = vmatpush.bf16.msra.mxu0 %v333
    %1276 = vmatmul.bf16.gmra.mxu0 %v1253
    %v1277 = vpop.f32.mrf.mxu0
    %v1278 = vadd.f32 %v1223, %v1277
    %v1279 = vpop.f32.mrf.mxu0
    %1280 = vdwg.mxu0
    %1281 = vmatpush.bf16.msra.mxu0 0
    %1282 = vmatpush.bf16.msra.mxu0 0
    %1283 = vmatpush.bf16.msra.mxu0 0
    %1284 = vmatpush.bf16.msra.mxu0 0
    %1285 = vmatpush.bf16.msra.mxu0 0
    %1286 = vmatpush.bf16.msra.mxu0 0
    %1287 = vmatpush.bf16.msra.mxu0 %v338
    %1288 = vmatpush.bf16.msra.mxu0 %v334
    %1289 = vmatmul.bf16.gmra.mxu0 %v1253
    %v1290 = vpop.f32.mrf.mxu0
    %v1291 = vadd.f32 %v1236, %v1290
    %v1292 = vpop.f32.mrf.mxu0
    %1293 = vdwg.mxu0
    %1294 = vmatpush.bf16.msra.mxu0 0
    %1295 = vmatpush.bf16.msra.mxu0 0
    %1296 = vmatpush.bf16.msra.mxu0 0
    %1297 = vmatpush.bf16.msra.mxu0 0
    %1298 = vmatpush.bf16.msra.mxu0 0
    %1299 = vmatpush.bf16.msra.mxu0 0
    %1300 = vmatpush.bf16.msra.mxu0 %v339
    %1301 = vmatpush.bf16.msra.mxu0 %v335
    %1302 = vmatmul.bf16.gmra.mxu0 %v1253
    %v1303 = vpop.f32.mrf.mxu0
    %v1304 = vadd.f32 %v1249, %v1303
    %v1305 = vpop.f32.mrf.mxu0
    %1306 = vdwg.mxu0
    %v1307 = vadd.f32 %v1265, %v405
    %v1308 = vadd.f32 %v1278, %v406
    %v1309 = vadd.f32 %v1291, %v407
    %v1310 = vadd.f32 %v1304, %v408
    %v1311 = vxor.u32 %v1307, 2147483648
    %v1312 = vmul.f32 %v1311, 1.442695
    %v1313 = vpow.pop %v1312
    %v1314 = vadd.f32 %v1313, 1.0
    %v1315 = vrcp.pop %v1314
    %v1316 = vmul.f32 %v1314, %v1315
    %v1317 = vsub.f32 1.0, %v1316
    %v1318 = vmul.f32 %v1315, %v1317
    %v1319 = vadd.f32 %v1315, %v1318
    %vm1320 = vweird.f32 %v1314
    %vm1321 = vweird.f32 %v1315
    %vm1322 = vmor %vm1320, %vm1321
    %v1323 = vsel %vm1322, %v1315, %v1319
    %v1324 = vand.u32 2147483647, %v1314
    %vm1325 = vcmp.eq.f32.partialorder %v1324, 8.507059e+37
    %v1326 = vand.u32 %v1314, 2147483648
    %v1327 = vor.u32 1.1754944e-38, %v1326
    %v1328 = vsel %vm1325, %v1327, %v1323
    %v1329 = vmul.f32 1.0, %v1328
    %v1330 = vxor.u32 %v1308, 2147483648
    %v1331 = vmul.f32 %v1330, 1.442695
    %v1332 = vpow.pop %v1331
    %v1333 = vadd.f32 %v1332, 1.0
    %v1334 = vrcp.pop %v1333
    %v1335 = vmul.f32 %v1333, %v1334
    %v1336 = vsub.f32 1.0, %v1335
    %v1337 = vmul.f32 %v1334, %v1336
    %v1338 = vadd.f32 %v1334, %v1337
    %vm1339 = vweird.f32 %v1333
    %vm1340 = vweird.f32 %v1334
    %vm1341 = vmor %vm1339, %vm1340
    %v1342 = vsel %vm1341, %v1334, %v1338
    %v1343 = vand.u32 2147483647, %v1333
    %vm1344 = vcmp.eq.f32.partialorder %v1343, 8.507059e+37
    %v1345 = vand.u32 %v1333, 2147483648
    %v1346 = vor.u32 1.1754944e-38, %v1345
    %v1347 = vsel %vm1344, %v1346, %v1342
    %v1348 = vmul.f32 1.0, %v1347
    %v1349 = vtanh.pop %v1309
    %v1350 = vxor.u32 %v1310, 2147483648
    %v1351 = vmul.f32 %v1350, 1.442695
    %v1352 = vpow.pop %v1351
    %v1353 = vadd.f32 %v1352, 1.0
    %v1354 = vrcp.pop %v1353
    %v1355 = vmul.f32 %v1353, %v1354
    %v1356 = vsub.f32 1.0, %v1355
    %v1357 = vmul.f32 %v1354, %v1356
    %v1358 = vadd.f32 %v1354, %v1357
    %vm1359 = vweird.f32 %v1353
    %vm1360 = vweird.f32 %v1354
    %vm1361 = vmor %vm1359, %vm1360
    %v1362 = vsel %vm1361, %v1354, %v1358
    %v1363 = vand.u32 2147483647, %v1353
    %vm1364 = vcmp.eq.f32.partialorder %v1363, 8.507059e+37
    %v1365 = vand.u32 %v1353, 2147483648
    %v1366 = vor.u32 1.1754944e-38, %v1365
    %v1367 = vsel %vm1364, %v1366, %v1362
    %v1368 = vmul.f32 1.0, %v1367
    %v1369 = vmul.f32 %v1348, %v1192
    %v1370 = vmul.f32 %v1329, %v1349
    %v1371 = vadd.f32 %v1369, %v1370
    %v1372 = vtanh.pop %v1371
    %v1373 = vmul.f32 %v1368, %v1372
    %v1374 = vpack.c.bf16 %v1373, %v1373
    %s1375 = scalar_lea.vmem %s6, 20
    %1376 = vst [vmem:[%s1375] sm:$0xf] %v1374
    %s1377 = scalar_lea.vmem %s0, 24
    %v1378 = vld [vmem:[%s1377] sm:$0xf]
    %1379 = vmatpush.bf16.msra.mxu0 %v220
    %1380 = vmatpush.bf16.msra.mxu0 %v216
    %1381 = vmatpush.bf16.msra.mxu0 %v212
    %1382 = vmatpush.bf16.msra.mxu0 %v208
    %1383 = vmatpush.bf16.msra.mxu0 %v204
    %1384 = vmatpush.bf16.msra.mxu0 %v200
    %1385 = vmatpush.bf16.msra.mxu0 %v196
    %1386 = vmatpush.bf16.msra.mxu0 %v192
    %1387 = vmatmul.bf16.gmra.mxu0 %v1374
    %v1388 = vpop.f32.mrf.mxu0
    %v1389 = vadd.f32 0.0, %v1388
    %v1390 = vpop.f32.mrf.mxu0
    %1391 = vdwg.mxu0
    %1392 = vmatpush.bf16.msra.mxu0 %v221
    %1393 = vmatpush.bf16.msra.mxu0 %v217
    %1394 = vmatpush.bf16.msra.mxu0 %v213
    %1395 = vmatpush.bf16.msra.mxu0 %v209
    %1396 = vmatpush.bf16.msra.mxu0 %v205
    %1397 = vmatpush.bf16.msra.mxu0 %v201
    %1398 = vmatpush.bf16.msra.mxu0 %v197
    %1399 = vmatpush.bf16.msra.mxu0 %v193
    %1400 = vmatmul.bf16.gmra.mxu0 %v1374
    %v1401 = vpop.f32.mrf.mxu0
    %v1402 = vadd.f32 0.0, %v1401
    %v1403 = vpop.f32.mrf.mxu0
    %1404 = vdwg.mxu0
    %1405 = vmatpush.bf16.msra.mxu0 %v222
    %1406 = vmatpush.bf16.msra.mxu0 %v218
    %1407 = vmatpush.bf16.msra.mxu0 %v214
    %1408 = vmatpush.bf16.msra.mxu0 %v210
    %1409 = vmatpush.bf16.msra.mxu0 %v206
    %1410 = vmatpush.bf16.msra.mxu0 %v202
    %1411 = vmatpush.bf16.msra.mxu0 %v198
    %1412 = vmatpush.bf16.msra.mxu0 %v194
    %1413 = vmatmul.bf16.gmra.mxu0 %v1374
    %v1414 = vpop.f32.mrf.mxu0
    %v1415 = vadd.f32 0.0, %v1414
    %v1416 = vpop.f32.mrf.mxu0
    %1417 = vdwg.mxu0
    %1418 = vmatpush.bf16.msra.mxu0 %v223
    %1419 = vmatpush.bf16.msra.mxu0 %v219
    %1420 = vmatpush.bf16.msra.mxu0 %v215
    %1421 = vmatpush.bf16.msra.mxu0 %v211
    %1422 = vmatpush.bf16.msra.mxu0 %v207
    %1423 = vmatpush.bf16.msra.mxu0 %v203
    %1424 = vmatpush.bf16.msra.mxu0 %v199
    %1425 = vmatpush.bf16.msra.mxu0 %v195
    %1426 = vmatmul.bf16.gmra.mxu0 %v1374
    %v1427 = vpop.f32.mrf.mxu0
    %v1428 = vadd.f32 0.0, %v1427
    %v1429 = vpop.f32.mrf.mxu0
    %1430 = vdwg.mxu0
    %v1432 = vsel %vm348, %v1378, 0
    %1434 = vmatpush.bf16.msra.mxu0 0
    %1435 = vmatpush.bf16.msra.mxu0 0
    %1436 = vmatpush.bf16.msra.mxu0 0
    %1437 = vmatpush.bf16.msra.mxu0 0
    %1438 = vmatpush.bf16.msra.mxu0 0
    %1439 = vmatpush.bf16.msra.mxu0 0
    %1440 = vmatpush.bf16.msra.mxu0 %v336
    %1441 = vmatpush.bf16.msra.mxu0 %v332
    %1442 = vmatmul.bf16.gmra.mxu0 %v1432
    %v1443 = vpop.f32.mrf.mxu0
    %v1444 = vadd.f32 %v1389, %v1443
    %v1445 = vpop.f32.mrf.mxu0
    %1446 = vdwg.mxu0
    %1447 = vmatpush.bf16.msra.mxu0 0
    %1448 = vmatpush.bf16.msra.mxu0 0
    %1449 = vmatpush.bf16.msra.mxu0 0
    %1450 = vmatpush.bf16.msra.mxu0 0
    %1451 = vmatpush.bf16.msra.mxu0 0
    %1452 = vmatpush.bf16.msra.mxu0 0
    %1453 = vmatpush.bf16.msra.mxu0 %v337
    %1454 = vmatpush.bf16.msra.mxu0 %v333
    %1455 = vmatmul.bf16.gmra.mxu0 %v1432
    %v1456 = vpop.f32.mrf.mxu0
    %v1457 = vadd.f32 %v1402, %v1456
    %v1458 = vpop.f32.mrf.mxu0
    %1459 = vdwg.mxu0
    %1460 = vmatpush.bf16.msra.mxu0 0
    %1461 = vmatpush.bf16.msra.mxu0 0
    %1462 = vmatpush.bf16.msra.mxu0 0
    %1463 = vmatpush.bf16.msra.mxu0 0
    %1464 = vmatpush.bf16.msra.mxu0 0
    %1465 = vmatpush.bf16.msra.mxu0 0
    %1466 = vmatpush.bf16.msra.mxu0 %v338
    %1467 = vmatpush.bf16.msra.mxu0 %v334
    %1468 = vmatmul.bf16.gmra.mxu0 %v1432
    %v1469 = vpop.f32.mrf.mxu0
    %v1470 = vadd.f32 %v1415, %v1469
    %v1471 = vpop.f32.mrf.mxu0
    %1472 = vdwg.mxu0
    %1473 = vmatpush.bf16.msra.mxu0 0
    %1474 = vmatpush.bf16.msra.mxu0 0
    %1475 = vmatpush.bf16.msra.mxu0 0
    %1476 = vmatpush.bf16.msra.mxu0 0
    %1477 = vmatpush.bf16.msra.mxu0 0
    %1478 = vmatpush.bf16.msra.mxu0 0
    %1479 = vmatpush.bf16.msra.mxu0 %v339
    %1480 = vmatpush.bf16.msra.mxu0 %v335
    %1481 = vmatmul.bf16.gmra.mxu0 %v1432
    %v1482 = vpop.f32.mrf.mxu0
    %v1483 = vadd.f32 %v1428, %v1482
    %v1484 = vpop.f32.mrf.mxu0
    %1485 = vdwg.mxu0
    %v1486 = vadd.f32 %v1444, %v405
    %v1487 = vadd.f32 %v1457, %v406
    %v1488 = vadd.f32 %v1470, %v407
    %v1489 = vadd.f32 %v1483, %v408
    %v1490 = vxor.u32 %v1486, 2147483648
    %v1491 = vmul.f32 %v1490, 1.442695
    %v1492 = vpow.pop %v1491
    %v1493 = vadd.f32 %v1492, 1.0
    %v1494 = vrcp.pop %v1493
    %v1495 = vmul.f32 %v1493, %v1494
    %v1496 = vsub.f32 1.0, %v1495
    %v1497 = vmul.f32 %v1494, %v1496
    %v1498 = vadd.f32 %v1494, %v1497
    %vm1499 = vweird.f32 %v1493
    %vm1500 = vweird.f32 %v1494
    %vm1501 = vmor %vm1499, %vm1500
    %v1502 = vsel %vm1501, %v1494, %v1498
    %v1503 = vand.u32 2147483647, %v1493
    %vm1504 = vcmp.eq.f32.partialorder %v1503, 8.507059e+37
    %v1505 = vand.u32 %v1493, 2147483648
    %v1506 = vor.u32 1.1754944e-38, %v1505
    %v1507 = vsel %vm1504, %v1506, %v1502
    %v1508 = vmul.f32 1.0, %v1507
    %v1509 = vxor.u32 %v1487, 2147483648
    %v1510 = vmul.f32 %v1509, 1.442695
    %v1511 = vpow.pop %v1510
    %v1512 = vadd.f32 %v1511, 1.0
    %v1513 = vrcp.pop %v1512
    %v1514 = vmul.f32 %v1512, %v1513
    %v1515 = vsub.f32 1.0, %v1514
    %v1516 = vmul.f32 %v1513, %v1515
    %v1517 = vadd.f32 %v1513, %v1516
    %vm1518 = vweird.f32 %v1512
    %vm1519 = vweird.f32 %v1513
    %vm1520 = vmor %vm1518, %vm1519
    %v1521 = vsel %vm1520, %v1513, %v1517
    %v1522 = vand.u32 2147483647, %v1512
    %vm1523 = vcmp.eq.f32.partialorder %v1522, 8.507059e+37
    %v1524 = vand.u32 %v1512, 2147483648
    %v1525 = vor.u32 1.1754944e-38, %v1524
    %v1526 = vsel %vm1523, %v1525, %v1521
    %v1527 = vmul.f32 1.0, %v1526
    %v1528 = vtanh.pop %v1488
    %v1529 = vxor.u32 %v1489, 2147483648
    %v1530 = vmul.f32 %v1529, 1.442695
    %v1531 = vpow.pop %v1530
    %v1532 = vadd.f32 %v1531, 1.0
    %v1533 = vrcp.pop %v1532
    %v1534 = vmul.f32 %v1532, %v1533
    %v1535 = vsub.f32 1.0, %v1534
    %v1536 = vmul.f32 %v1533, %v1535
    %v1537 = vadd.f32 %v1533, %v1536
    %vm1538 = vweird.f32 %v1532
    %vm1539 = vweird.f32 %v1533
    %vm1540 = vmor %vm1538, %vm1539
    %v1541 = vsel %vm1540, %v1533, %v1537
    %v1542 = vand.u32 2147483647, %v1532
    %vm1543 = vcmp.eq.f32.partialorder %v1542, 8.507059e+37
    %v1544 = vand.u32 %v1532, 2147483648
    %v1545 = vor.u32 1.1754944e-38, %v1544
    %v1546 = vsel %vm1543, %v1545, %v1541
    %v1547 = vmul.f32 1.0, %v1546
    %v1548 = vmul.f32 %v1527, %v1371
    %v1549 = vmul.f32 %v1508, %v1528
    %v1550 = vadd.f32 %v1548, %v1549
    %v1551 = vtanh.pop %v1550
    %v1552 = vmul.f32 %v1547, %v1551
    %v1553 = vpack.c.bf16 %v1552, %v1552
    %s1554 = scalar_lea.vmem %s6, 24
    %1555 = vst [vmem:[%s1554] sm:$0xf] %v1553
    %s1556 = scalar_lea.vmem %s0, 28
    %v1557 = vld [vmem:[%s1556] sm:$0xf]
    %1558 = vmatpush.bf16.msra.mxu0 %v220
    %1559 = vmatpush.bf16.msra.mxu0 %v216
    %1560 = vmatpush.bf16.msra.mxu0 %v212
    %1561 = vmatpush.bf16.msra.mxu0 %v208
    %1562 = vmatpush.bf16.msra.mxu0 %v204
    %1563 = vmatpush.bf16.msra.mxu0 %v200
    %1564 = vmatpush.bf16.msra.mxu0 %v196
    %1565 = vmatpush.bf16.msra.mxu0 %v192
    %1566 = vmatmul.bf16.gmra.mxu0 %v1553
    %v1567 = vpop.f32.mrf.mxu0
    %v1568 = vadd.f32 0.0, %v1567
    %v1569 = vpop.f32.mrf.mxu0
    %1570 = vdwg.mxu0
    %1571 = vmatpush.bf16.msra.mxu0 %v221
    %1572 = vmatpush.bf16.msra.mxu0 %v217
    %1573 = vmatpush.bf16.msra.mxu0 %v213
    %1574 = vmatpush.bf16.msra.mxu0 %v209
    %1575 = vmatpush.bf16.msra.mxu0 %v205
    %1576 = vmatpush.bf16.msra.mxu0 %v201
    %1577 = vmatpush.bf16.msra.mxu0 %v197
    %1578 = vmatpush.bf16.msra.mxu0 %v193
    %1579 = vmatmul.bf16.gmra.mxu0 %v1553
    %v1580 = vpop.f32.mrf.mxu0
    %v1581 = vadd.f32 0.0, %v1580
    %v1582 = vpop.f32.mrf.mxu0
    %1583 = vdwg.mxu0
    %1584 = vmatpush.bf16.msra.mxu0 %v222
    %1585 = vmatpush.bf16.msra.mxu0 %v218
    %1586 = vmatpush.bf16.msra.mxu0 %v214
    %1587 = vmatpush.bf16.msra.mxu0 %v210
    %1588 = vmatpush.bf16.msra.mxu0 %v206
    %1589 = vmatpush.bf16.msra.mxu0 %v202
    %1590 = vmatpush.bf16.msra.mxu0 %v198
    %1591 = vmatpush.bf16.msra.mxu0 %v194
    %1592 = vmatmul.bf16.gmra.mxu0 %v1553
    %v1593 = vpop.f32.mrf.mxu0
    %v1594 = vadd.f32 0.0, %v1593
    %v1595 = vpop.f32.mrf.mxu0
    %1596 = vdwg.mxu0
    %1597 = vmatpush.bf16.msra.mxu0 %v223
    %1598 = vmatpush.bf16.msra.mxu0 %v219
    %1599 = vmatpush.bf16.msra.mxu0 %v215
    %1600 = vmatpush.bf16.msra.mxu0 %v211
    %1601 = vmatpush.bf16.msra.mxu0 %v207
    %1602 = vmatpush.bf16.msra.mxu0 %v203
    %1603 = vmatpush.bf16.msra.mxu0 %v199
    %1604 = vmatpush.bf16.msra.mxu0 %v195
    %1605 = vmatmul.bf16.gmra.mxu0 %v1553
    %v1606 = vpop.f32.mrf.mxu0
    %v1607 = vadd.f32 0.0, %v1606
    %v1608 = vpop.f32.mrf.mxu0
    %1609 = vdwg.mxu0
    %v1611 = vsel %vm348, %v1557, 0
    %1613 = vmatpush.bf16.msra.mxu0 0
    %1614 = vmatpush.bf16.msra.mxu0 0
    %1615 = vmatpush.bf16.msra.mxu0 0
    %1616 = vmatpush.bf16.msra.mxu0 0
    %1617 = vmatpush.bf16.msra.mxu0 0
    %1618 = vmatpush.bf16.msra.mxu0 0
    %1619 = vmatpush.bf16.msra.mxu0 %v336
    %1620 = vmatpush.bf16.msra.mxu0 %v332
    %1621 = vmatmul.bf16.gmra.mxu0 %v1611
    %v1622 = vpop.f32.mrf.mxu0
    %v1623 = vadd.f32 %v1568, %v1622
    %v1624 = vpop.f32.mrf.mxu0
    %1625 = vdwg.mxu0
    %1626 = vmatpush.bf16.msra.mxu0 0
    %1627 = vmatpush.bf16.msra.mxu0 0
    %1628 = vmatpush.bf16.msra.mxu0 0
    %1629 = vmatpush.bf16.msra.mxu0 0
    %1630 = vmatpush.bf16.msra.mxu0 0
    %1631 = vmatpush.bf16.msra.mxu0 0
    %1632 = vmatpush.bf16.msra.mxu0 %v337
    %1633 = vmatpush.bf16.msra.mxu0 %v333
    %1634 = vmatmul.bf16.gmra.mxu0 %v1611
    %v1635 = vpop.f32.mrf.mxu0
    %v1636 = vadd.f32 %v1581, %v1635
    %v1637 = vpop.f32.mrf.mxu0
    %1638 = vdwg.mxu0
    %1639 = vmatpush.bf16.msra.mxu0 0
    %1640 = vmatpush.bf16.msra.mxu0 0
    %1641 = vmatpush.bf16.msra.mxu0 0
    %1642 = vmatpush.bf16.msra.mxu0 0
    %1643 = vmatpush.bf16.msra.mxu0 0
    %1644 = vmatpush.bf16.msra.mxu0 0
    %1645 = vmatpush.bf16.msra.mxu0 %v338
    %1646 = vmatpush.bf16.msra.mxu0 %v334
    %1647 = vmatmul.bf16.gmra.mxu0 %v1611
    %v1648 = vpop.f32.mrf.mxu0
    %v1649 = vadd.f32 %v1594, %v1648
    %v1650 = vpop.f32.mrf.mxu0
    %1651 = vdwg.mxu0
    %1652 = vmatpush.bf16.msra.mxu0 0
    %1653 = vmatpush.bf16.msra.mxu0 0
    %1654 = vmatpush.bf16.msra.mxu0 0
    %1655 = vmatpush.bf16.msra.mxu0 0
    %1656 = vmatpush.bf16.msra.mxu0 0
    %1657 = vmatpush.bf16.msra.mxu0 0
    %1658 = vmatpush.bf16.msra.mxu0 %v339
    %1659 = vmatpush.bf16.msra.mxu0 %v335
    %1660 = vmatmul.bf16.gmra.mxu0 %v1611
    %v1661 = vpop.f32.mrf.mxu0
    %v1662 = vadd.f32 %v1607, %v1661
    %v1663 = vpop.f32.mrf.mxu0
    %1664 = vdwg.mxu0
    %v1665 = vadd.f32 %v1623, %v405
    %v1666 = vadd.f32 %v1636, %v406
    %v1667 = vadd.f32 %v1649, %v407
    %v1668 = vadd.f32 %v1662, %v408
    %v1669 = vxor.u32 %v1665, 2147483648
    %v1670 = vmul.f32 %v1669, 1.442695
    %v1671 = vpow.pop %v1670
    %v1672 = vadd.f32 %v1671, 1.0
    %v1673 = vrcp.pop %v1672
    %v1674 = vmul.f32 %v1672, %v1673
    %v1675 = vsub.f32 1.0, %v1674
    %v1676 = vmul.f32 %v1673, %v1675
    %v1677 = vadd.f32 %v1673, %v1676
    %vm1678 = vweird.f32 %v1672
    %vm1679 = vweird.f32 %v1673
    %vm1680 = vmor %vm1678, %vm1679
    %v1681 = vsel %vm1680, %v1673, %v1677
    %v1682 = vand.u32 2147483647, %v1672
    %vm1683 = vcmp.eq.f32.partialorder %v1682, 8.507059e+37
    %v1684 = vand.u32 %v1672, 2147483648
    %v1685 = vor.u32 1.1754944e-38, %v1684
    %v1686 = vsel %vm1683, %v1685, %v1681
    %v1687 = vmul.f32 1.0, %v1686
    %v1688 = vxor.u32 %v1666, 2147483648
    %v1689 = vmul.f32 %v1688, 1.442695
    %v1690 = vpow.pop %v1689
    %v1691 = vadd.f32 %v1690, 1.0
    %v1692 = vrcp.pop %v1691
    %v1693 = vmul.f32 %v1691, %v1692
    %v1694 = vsub.f32 1.0, %v1693
    %v1695 = vmul.f32 %v1692, %v1694
    %v1696 = vadd.f32 %v1692, %v1695
    %vm1697 = vweird.f32 %v1691
    %vm1698 = vweird.f32 %v1692
    %vm1699 = vmor %vm1697, %vm1698
    %v1700 = vsel %vm1699, %v1692, %v1696
    %v1701 = vand.u32 2147483647, %v1691
    %vm1702 = vcmp.eq.f32.partialorder %v1701, 8.507059e+37
    %v1703 = vand.u32 %v1691, 2147483648
    %v1704 = vor.u32 1.1754944e-38, %v1703
    %v1705 = vsel %vm1702, %v1704, %v1700
    %v1706 = vmul.f32 1.0, %v1705
    %v1707 = vtanh.pop %v1667
    %v1708 = vxor.u32 %v1668, 2147483648
    %v1709 = vmul.f32 %v1708, 1.442695
    %v1710 = vpow.pop %v1709
    %v1711 = vadd.f32 %v1710, 1.0
    %v1712 = vrcp.pop %v1711
    %v1713 = vmul.f32 %v1711, %v1712
    %v1714 = vsub.f32 1.0, %v1713
    %v1715 = vmul.f32 %v1712, %v1714
    %v1716 = vadd.f32 %v1712, %v1715
    %vm1717 = vweird.f32 %v1711
    %vm1718 = vweird.f32 %v1712
    %vm1719 = vmor %vm1717, %vm1718
    %v1720 = vsel %vm1719, %v1712, %v1716
    %v1721 = vand.u32 2147483647, %v1711
    %vm1722 = vcmp.eq.f32.partialorder %v1721, 8.507059e+37
    %v1723 = vand.u32 %v1711, 2147483648
    %v1724 = vor.u32 1.1754944e-38, %v1723
    %v1725 = vsel %vm1722, %v1724, %v1720
    %v1726 = vmul.f32 1.0, %v1725
    %v1727 = vmul.f32 %v1706, %v1550
    %v1728 = vmul.f32 %v1687, %v1707
    %v1729 = vadd.f32 %v1727, %v1728
    %v1730 = vtanh.pop %v1729
    %v1731 = vmul.f32 %v1726, %v1730
    %v1732 = vpack.c.bf16 %v1731, %v1731
    %s1733 = scalar_lea.vmem %s6, 28
    %1734 = vst [vmem:[%s1733] sm:$0xf] %v1732
    %p1735 = scmp.lt.s32.totalorder 0, 0
    // Predicated region
    $region34: #{rnn_model_forward.3} parent=1 // pred_check
      %p1736 = pneg %p1735
    $region35: #{rnn_model_forward.3} parent=1 // pred_check_branch
      %1738 = sbr.rel (%p1736) target = $region37
    $region36: #{rnn_model_forward.3} parent=1 // pred_region
      %1739 = vst [vmem:[#allocation2] sm:$0xff] %v1731
      %1740 = vst [vmem:[#allocation3] sm:$0xff] %v1729
    $region37: #{rnn_model_forward.3} parent=1 // pred_fallthru
      _
    // Predicated region
    $region38: #{rnn_model_forward.3} parent=1 // pred_check
      %p1741 = pneg %p43
    $region39: #{rnn_model_forward.3} parent=1 // pred_check_branch
      %1743 = sbr.rel (%p1741) target = $region41
    $region40: #{rnn_model_forward.3} parent=1 // pred_region
      %1744 = vst [vmem:[%s7] sm:$0xff] %v1731
      %1745 = vst [vmem:[%s8] sm:$0xff] %v1729
    $region41: #{rnn_model_forward.3} parent=1 // pred_fallthru
      _
    // Predicated region
    $region42: #{rnn_model_forward.3} parent=1 // pred_check
      _
    $region43: #{rnn_model_forward.3} parent=1 // pred_check_branch
      %1747 = sbr.rel (0) target = $region45
    $region44: #{rnn_model_forward.3} parent=1 // pred_region
      _
    $region45: #{rnn_model_forward.3} parent=1 // pred_fallthru
      _
    // Predicated region
    $region46: #{rnn_model_forward.3} parent=1 // pred_check
      _
    $region47: #{rnn_model_forward.3} parent=1 // pred_check_branch
      %1749 = sbr.rel (0) target = $region49
    $region48: #{rnn_model_forward.3} parent=1 // pred_region
      _
    $region49: #{rnn_model_forward.3} parent=1 // pred_fallthru
      _
    // Predicated region
    $region50: #{rnn_model_forward.3} parent=1 // pred_check
      _
    $region51: #{rnn_model_forward.3} parent=1 // pred_check_branch
      %1751 = sbr.rel (0) target = $region53
    $region52: #{rnn_model_forward.3} parent=1 // pred_region
      _
    $region53: #{rnn_model_forward.3} parent=1 // pred_fallthru
      _
    // Predicated region
    $region54: #{rnn_model_forward.3} parent=1 // pred_check
      _
    $region55: #{rnn_model_forward.3} parent=1 // pred_check_branch
      %1753 = sbr.rel (0) target = $region57
    $region56: #{rnn_model_forward.3} parent=1 // pred_region
      _
    $region57: #{rnn_model_forward.3} parent=1 // pred_fallthru
      _
    // Predicated region
    $region58: #{rnn_model_forward.3} parent=1 // pred_check
      _
    $region59: #{rnn_model_forward.3} parent=1 // pred_check_branch
      %1755 = sbr.rel (0) target = $region61
    $region60: #{rnn_model_forward.3} parent=1 // pred_region
      _
    $region61: #{rnn_model_forward.3} parent=1 // pred_fallthru
      _
    // Predicated region
    $region62: #{rnn_model_forward.3} parent=1 // pred_check
      _
    $region63: #{rnn_model_forward.3} parent=1 // pred_check_branch
      %1757 = sbr.rel (0) target = $region65
    $region64: #{rnn_model_forward.3} parent=1 // pred_region
      _
    $region65: #{rnn_model_forward.3} parent=1 // pred_fallthru
      _
    %1758 = vsyncpa [#allocation5], 1

// kernel: rnn_model_forward.4
$region0: #{rnn_model_forward.4}
  #allocation0 [shape = 'u32[]', space=smem, size = 0x4, offset = 0x4, fixed_abs, tag = 'smem constant byte address 0x4 - core index']
  #allocation1 [shape = 'u32[72,128]{1,0:T(1,128)}', space=vmem, size = 0x9000, scoped, tag = 'internal scratch']
  #allocation2 [shape = 'f32[8,128]{1,0:T(8,128)}', space=vmem, size = 0x1000, scoped, tag = 'scratch operand']
  #allocation3 [shape = 'f32[8,128]{1,0:T(8,128)}', space=vmem, size = 0x1000, scoped, tag = 'scratch operand']
  %s0 = inlined_call_operand.vmem [shape: bf16[8,8,128], index: 0, kind: input, shape index: {}]
  %s1 = inlined_call_operand.hbm [shape: bf16[128,512], index: 1, kind: input, shape index: {}]
  %s2 = inlined_call_operand.hbm [shape: bf16[128,512], index: 2, kind: input, shape index: {}]
  %s3 = inlined_call_operand.vmem [shape: f32[1,512], index: 3, kind: input, shape index: {}]
  %s4 = inlined_call_operand.vmem [shape: f32[8,128], index: 4, kind: input, shape index: {}]
  %s5 = inlined_call_operand.vmem [shape: f32[8,128], index: 5, kind: input, shape index: {}]
  %s6 = inlined_call_operand.vmem [shape: bf16[8,8,128], index: 6, kind: output, shape index: {0}]
  %s7 = inlined_call_operand.vmem [shape: f32[8,128], index: 7, kind: output, shape index: {1}]
  %s8 = inlined_call_operand.vmem [shape: f32[8,128], index: 8, kind: output, shape index: {2}]
  %9 = xla_tuple %s6, %s7, %s8
  %s10 = sld [smem:[#allocation0]]
  $region70: #{rnn_model_forward.4} parent=0
    _
  %s12 = ssub.s32 1, %s10
  %s13 = scalar_select 0, %s12, %s10
  $region1: #{rnn_model_forward.4} parent=0
    #allocation4 [shape = 'u8[131072]{0}', space=vmem, size = 0x20000, scoped, tag = 'input window, operand 1, single buffered']
    #allocation5 [shape = 's32[1]{0}', space=sflag, size = 0x4, scoped, tag = 'scoped memory for rnn_model_forward.4']
    #allocation6 [shape = 'u8[131072]{0}', space=vmem, size = 0x20000, scoped, tag = 'input window, operand 2, single buffered']
    #allocation7 [shape = 's32[1]{0}', space=sflag, size = 0x4, scoped, tag = 'scoped memory for rnn_model_forward.4']
    %14 = vsyncpa [#allocation5], 0
    %15 = vsyncpa [#allocation7], 0
    // Predicated region
    $region2: #{rnn_model_forward.4} parent=1 // pred_check
      _
    $region3: #{rnn_model_forward.4} parent=1 // pred_check_branch
      %17 = sbr.rel (0) target = $region5
    $region4: #{rnn_model_forward.4} parent=1 // pred_region
      _
    $region5: #{rnn_model_forward.4} parent=1 // pred_fallthru
      _
    // Predicated region
    $region6: #{rnn_model_forward.4} parent=1 // pred_check
      _
    $region7: #{rnn_model_forward.4} parent=1 // pred_check_branch
      %19 = sbr.rel (0) target = $region9
    $region8: #{rnn_model_forward.4} parent=1 // pred_region
      %21 = vsyncadd [#allocation5], 0
      %s22 = sshll.u32 %s1, 4
      %s23 = int_to_ptr.hbm [resolvable:$true] %s22
      %s24 = sshll.u32 [#allocation4], 4
      %s25 = int_to_ptr.vmem [resolvable:$true] %s24
      %30 = dma.hbm_to_vmem [thread:$0]  %s23, 4096, %s25, [#allocation5], 256, 256, 16
    $region9: #{rnn_model_forward.4} parent=1 // pred_fallthru
      _
    // Predicated region
    $region10: #{rnn_model_forward.4} parent=1 // pred_check
      _
    $region11: #{rnn_model_forward.4} parent=1 // pred_check_branch
      %32 = sbr.rel (0) target = $region13
    $region12: #{rnn_model_forward.4} parent=1 // pred_region
      %34 = vsyncadd [#allocation7], 0
      %s35 = sshll.u32 %s2, 4
      %s36 = int_to_ptr.hbm [resolvable:$true] %s35
      %s37 = sshll.u32 [#allocation6], 4
      %s38 = int_to_ptr.vmem [resolvable:$true] %s37
      %43 = dma.hbm_to_vmem [thread:$0]  %s36, 4096, %s38, [#allocation7], 256, 256, 16
    $region13: #{rnn_model_forward.4} parent=1 // pred_fallthru
      _
    // Predicated region
    $region14: #{rnn_model_forward.4} parent=1 // pred_check
      _
    $region15: #{rnn_model_forward.4} parent=1 // pred_check_branch
      %45 = sbr.rel (0) target = $region17
    $region16: #{rnn_model_forward.4} parent=1 // pred_region
      _
    $region17: #{rnn_model_forward.4} parent=1 // pred_fallthru
      _
    // Predicated region
    $region18: #{rnn_model_forward.4} parent=1 // pred_check
      _
    $region19: #{rnn_model_forward.4} parent=1 // pred_check_branch
      %47 = sbr.rel (0) target = $region21
    $region20: #{rnn_model_forward.4} parent=1 // pred_region
      _
    $region21: #{rnn_model_forward.4} parent=1 // pred_fallthru
      _
    // Predicated region
    $region22: #{rnn_model_forward.4} parent=1 // pred_check
      _
    $region23: #{rnn_model_forward.4} parent=1 // pred_check_branch
      %49 = sbr.rel (0) target = $region25
    $region24: #{rnn_model_forward.4} parent=1 // pred_region
      _
    $region25: #{rnn_model_forward.4} parent=1 // pred_fallthru
      _
    // Predicated region
    $region26: #{rnn_model_forward.4} parent=1 // pred_check
      _
    $region27: #{rnn_model_forward.4} parent=1 // pred_check_branch
      %51 = sbr.rel (0) target = $region29
    $region28: #{rnn_model_forward.4} parent=1 // pred_region
      %53 = dma.done [#allocation5], 4096
    $region29: #{rnn_model_forward.4} parent=1 // pred_fallthru
      _
    // Predicated region
    $region30: #{rnn_model_forward.4} parent=1 // pred_check
      _
    $region31: #{rnn_model_forward.4} parent=1 // pred_check_branch
      %55 = sbr.rel (0) target = $region33
    $region32: #{rnn_model_forward.4} parent=1 // pred_region
      %57 = dma.done [#allocation7], 4096
    $region33: #{rnn_model_forward.4} parent=1 // pred_fallthru
      _
    %p58 = scmp.eq.s32.totalorder 0, 0
    // Predicated region
    $region34: #{rnn_model_forward.4} parent=1 // pred_check
      %p59 = pneg %p58
    $region35: #{rnn_model_forward.4} parent=1 // pred_check_branch
      %61 = sbr.rel (%p59) target = $region37
    $region36: #{rnn_model_forward.4} parent=1 // pred_region
      %v62 = vld [vmem:[%s4] sm:$0xff]
      %63 = vst [vmem:[#allocation2] sm:$0xff] %v62
      %v64 = vld [vmem:[%s5] sm:$0xff]
      %65 = vst [vmem:[#allocation3] sm:$0xff] %v64
    $region37: #{rnn_model_forward.4} parent=1 // pred_fallthru
      _
    %v66 = vld [vmem:[#allocation4] sm:$0xff]
    %v67 = vld [vmem:[#allocation4 + $0x8] sm:$0xff]
    %v68 = vld [vmem:[#allocation4 + $0x10] sm:$0xff]
    %v69 = vld [vmem:[#allocation4 + $0x18] sm:$0xff]
    %v70 = vld [vmem:[#allocation4 + $0x20] sm:$0xff]
    %v71 = vld [vmem:[#allocation4 + $0x28] sm:$0xff]
    %v72 = vld [vmem:[#allocation4 + $0x30] sm:$0xff]
    %v73 = vld [vmem:[#allocation4 + $0x38] sm:$0xff]
    %v74 = vld [vmem:[#allocation4 + $0x40] sm:$0xff]
    %v75 = vld [vmem:[#allocation4 + $0x48] sm:$0xff]
    %v76 = vld [vmem:[#allocation4 + $0x50] sm:$0xff]
    %v77 = vld [vmem:[#allocation4 + $0x58] sm:$0xff]
    %v78 = vld [vmem:[#allocation4 + $0x60] sm:$0xff]
    %v79 = vld [vmem:[#allocation4 + $0x68] sm:$0xff]
    %v80 = vld [vmem:[#allocation4 + $0x70] sm:$0xff]
    %v81 = vld [vmem:[#allocation4 + $0x78] sm:$0xff]
    %v82 = vld [vmem:[#allocation4 + $0x80] sm:$0xff]
    %v83 = vld [vmem:[#allocation4 + $0x88] sm:$0xff]
    %v84 = vld [vmem:[#allocation4 + $0x90] sm:$0xff]
    %v85 = vld [vmem:[#allocation4 + $0x98] sm:$0xff]
    %v86 = vld [vmem:[#allocation4 + $0xa0] sm:$0xff]
    %v87 = vld [vmem:[#allocation4 + $0xa8] sm:$0xff]
    %v88 = vld [vmem:[#allocation4 + $0xb0] sm:$0xff]
    %v89 = vld [vmem:[#allocation4 + $0xb8] sm:$0xff]
    %v90 = vld [vmem:[#allocation4 + $0xc0] sm:$0xff]
    %v91 = vld [vmem:[#allocation4 + $0xc8] sm:$0xff]
    %v92 = vld [vmem:[#allocation4 + $0xd0] sm:$0xff]
    %v93 = vld [vmem:[#allocation4 + $0xd8] sm:$0xff]
    %v94 = vld [vmem:[#allocation4 + $0xe0] sm:$0xff]
    %v95 = vld [vmem:[#allocation4 + $0xe8] sm:$0xff]
    %v96 = vld [vmem:[#allocation4 + $0xf0] sm:$0xff]
    %v97 = vld [vmem:[#allocation4 + $0xf8] sm:$0xff]
    %v98 = vld [vmem:[#allocation6] sm:$0xff]
    %v99 = vld [vmem:[#allocation6 + $0x8] sm:$0xff]
    %v100 = vld [vmem:[#allocation6 + $0x10] sm:$0xff]
    %v101 = vld [vmem:[#allocation6 + $0x18] sm:$0xff]
    %v102 = vld [vmem:[#allocation6 + $0x20] sm:$0xff]
    %v103 = vld [vmem:[#allocation6 + $0x28] sm:$0xff]
    %v104 = vld [vmem:[#allocation6 + $0x30] sm:$0xff]
    %v105 = vld [vmem:[#allocation6 + $0x38] sm:$0xff]
    %v106 = vld [vmem:[#allocation6 + $0x40] sm:$0xff]
    %v107 = vld [vmem:[#allocation6 + $0x48] sm:$0xff]
    %v108 = vld [vmem:[#allocation6 + $0x50] sm:$0xff]
    %v109 = vld [vmem:[#allocation6 + $0x58] sm:$0xff]
    %v110 = vld [vmem:[#allocation6 + $0x60] sm:$0xff]
    %v111 = vld [vmem:[#allocation6 + $0x68] sm:$0xff]
    %v112 = vld [vmem:[#allocation6 + $0x70] sm:$0xff]
    %v113 = vld [vmem:[#allocation6 + $0x78] sm:$0xff]
    %v114 = vld [vmem:[#allocation6 + $0x80] sm:$0xff]
    %v115 = vld [vmem:[#allocation6 + $0x88] sm:$0xff]
    %v116 = vld [vmem:[#allocation6 + $0x90] sm:$0xff]
    %v117 = vld [vmem:[#allocation6 + $0x98] sm:$0xff]
    %v118 = vld [vmem:[#allocation6 + $0xa0] sm:$0xff]
    %v119 = vld [vmem:[#allocation6 + $0xa8] sm:$0xff]
    %v120 = vld [vmem:[#allocation6 + $0xb0] sm:$0xff]
    %v121 = vld [vmem:[#allocation6 + $0xb8] sm:$0xff]
    %v122 = vld [vmem:[#allocation6 + $0xc0] sm:$0xff]
    %v123 = vld [vmem:[#allocation6 + $0xc8] sm:$0xff]
    %v124 = vld [vmem:[#allocation6 + $0xd0] sm:$0xff]
    %v125 = vld [vmem:[#allocation6 + $0xd8] sm:$0xff]
    %v126 = vld [vmem:[#allocation6 + $0xe0] sm:$0xff]
    %v127 = vld [vmem:[#allocation6 + $0xe8] sm:$0xff]
    %v128 = vld [vmem:[#allocation6 + $0xf0] sm:$0xff]
    %v129 = vld [vmem:[#allocation6 + $0xf8] sm:$0xff]
    %v130 = vld [vmem:[%s3] sm:$0xf]
    %v131 = vld [vmem:[#allocation2] sm:$0xff]
    %v132 = vld [vmem:[#allocation3] sm:$0xff]
    %v133 = vld [vmem:[%s0] sm:$0xf]
    %v134 = vpack.c.bf16 %v131, %v131
    %v167 = vunpack.c.l.b16 %v98
    %v168 = vunpack.c.h.b16 %v98
    %v169 = vunpack.c.l.b16 %v99
    %v170 = vunpack.c.h.b16 %v99
    %v171 = vunpack.c.l.b16 %v100
    %v172 = vunpack.c.h.b16 %v100
    %v173 = vunpack.c.l.b16 %v101
    %v174 = vunpack.c.h.b16 %v101
    %v175 = vunpack.c.l.b16 %v102
    %v176 = vunpack.c.h.b16 %v102
    %v177 = vunpack.c.l.b16 %v103
    %v178 = vunpack.c.h.b16 %v103
    %v179 = vunpack.c.l.b16 %v104
    %v180 = vunpack.c.h.b16 %v104
    %v181 = vunpack.c.l.b16 %v105
    %v182 = vunpack.c.h.b16 %v105
    %v183 = vunpack.c.l.b16 %v106
    %v184 = vunpack.c.h.b16 %v106
    %v185 = vunpack.c.l.b16 %v107
    %v186 = vunpack.c.h.b16 %v107
    %v187 = vunpack.c.l.b16 %v108
    %v188 = vunpack.c.h.b16 %v108
    %v189 = vunpack.c.l.b16 %v109
    %v190 = vunpack.c.h.b16 %v109
    %v191 = vunpack.c.l.b16 %v110
    %v192 = vunpack.c.h.b16 %v110
    %v193 = vunpack.c.l.b16 %v111
    %v194 = vunpack.c.h.b16 %v111
    %v195 = vunpack.c.l.b16 %v112
    %v196 = vunpack.c.h.b16 %v112
    %v197 = vunpack.c.l.b16 %v113
    %v198 = vunpack.c.h.b16 %v113
    %v199 = vunpack.c.l.b16 %v114
    %v200 = vunpack.c.h.b16 %v114
    %v201 = vunpack.c.l.b16 %v115
    %v202 = vunpack.c.h.b16 %v115
    %v203 = vunpack.c.l.b16 %v116
    %v204 = vunpack.c.h.b16 %v116
    %v205 = vunpack.c.l.b16 %v117
    %v206 = vunpack.c.h.b16 %v117
    %v207 = vunpack.c.l.b16 %v118
    %v208 = vunpack.c.h.b16 %v118
    %v209 = vunpack.c.l.b16 %v119
    %v210 = vunpack.c.h.b16 %v119
    %v211 = vunpack.c.l.b16 %v120
    %v212 = vunpack.c.h.b16 %v120
    %v213 = vunpack.c.l.b16 %v121
    %v214 = vunpack.c.h.b16 %v121
    %v215 = vunpack.c.l.b16 %v122
    %v216 = vunpack.c.h.b16 %v122
    %v217 = vunpack.c.l.b16 %v123
    %v218 = vunpack.c.h.b16 %v123
    %v219 = vunpack.c.l.b16 %v124
    %v220 = vunpack.c.h.b16 %v124
    %v221 = vunpack.c.l.b16 %v125
    %v222 = vunpack.c.h.b16 %v125
    %v223 = vunpack.c.l.b16 %v126
    %v224 = vunpack.c.h.b16 %v126
    %v225 = vunpack.c.l.b16 %v127
    %v226 = vunpack.c.h.b16 %v127
    %v227 = vunpack.c.l.b16 %v128
    %v228 = vunpack.c.h.b16 %v128
    %v229 = vunpack.c.l.b16 %v129
    %v230 = vunpack.c.h.b16 %v129
    %v231 = vpack.c.b16 %v171, %v167
    %v232 = vpack.c.b16 %v172, %v168
    %v233 = vpack.c.b16 %v173, %v169
    %v234 = vpack.c.b16 %v174, %v170
    %v235 = vpack.c.b16 %v179, %v175
    %v236 = vpack.c.b16 %v180, %v176
    %v237 = vpack.c.b16 %v181, %v177
    %v238 = vpack.c.b16 %v182, %v178
    %v239 = vpack.c.b16 %v187, %v183
    %v240 = vpack.c.b16 %v188, %v184
    %v241 = vpack.c.b16 %v189, %v185
    %v242 = vpack.c.b16 %v190, %v186
    %v243 = vpack.c.b16 %v195, %v191
    %v244 = vpack.c.b16 %v196, %v192
    %v245 = vpack.c.b16 %v197, %v193
    %v246 = vpack.c.b16 %v198, %v194
    %v247 = vpack.c.b16 %v203, %v199
    %v248 = vpack.c.b16 %v204, %v200
    %v249 = vpack.c.b16 %v205, %v201
    %v250 = vpack.c.b16 %v206, %v202
    %v251 = vpack.c.b16 %v211, %v207
    %v252 = vpack.c.b16 %v212, %v208
    %v253 = vpack.c.b16 %v213, %v209
    %v254 = vpack.c.b16 %v214, %v210
    %v255 = vpack.c.b16 %v219, %v215
    %v256 = vpack.c.b16 %v220, %v216
    %v257 = vpack.c.b16 %v221, %v217
    %v258 = vpack.c.b16 %v222, %v218
    %v259 = vpack.c.b16 %v227, %v223
    %v260 = vpack.c.b16 %v228, %v224
    %v261 = vpack.c.b16 %v229, %v225
    %v262 = vpack.c.b16 %v230, %v226
    %295 = vmatpush.bf16.msra.mxu0 %v259
    %296 = vmatpush.bf16.msra.mxu0 %v255
    %297 = vmatpush.bf16.msra.mxu0 %v251
    %298 = vmatpush.bf16.msra.mxu0 %v247
    %299 = vmatpush.bf16.msra.mxu0 %v243
    %300 = vmatpush.bf16.msra.mxu0 %v239
    %301 = vmatpush.bf16.msra.mxu0 %v235
    %302 = vmatpush.bf16.msra.mxu0 %v231
    %303 = vmatmul.bf16.gmra.mxu0 %v134
    %v304 = vpop.f32.mrf.mxu0
    %v305 = vadd.f32 0.0, %v304
    %v306 = vpop.f32.mrf.mxu0
    %307 = vdwg.mxu0
    %308 = vmatpush.bf16.msra.mxu0 %v260
    %309 = vmatpush.bf16.msra.mxu0 %v256
    %310 = vmatpush.bf16.msra.mxu0 %v252
    %311 = vmatpush.bf16.msra.mxu0 %v248
    %312 = vmatpush.bf16.msra.mxu0 %v244
    %313 = vmatpush.bf16.msra.mxu0 %v240
    %314 = vmatpush.bf16.msra.mxu0 %v236
    %315 = vmatpush.bf16.msra.mxu0 %v232
    %316 = vmatmul.bf16.gmra.mxu0 %v134
    %v317 = vpop.f32.mrf.mxu0
    %v318 = vadd.f32 0.0, %v317
    %v319 = vpop.f32.mrf.mxu0
    %320 = vdwg.mxu0
    %321 = vmatpush.bf16.msra.mxu0 %v261
    %322 = vmatpush.bf16.msra.mxu0 %v257
    %323 = vmatpush.bf16.msra.mxu0 %v253
    %324 = vmatpush.bf16.msra.mxu0 %v249
    %325 = vmatpush.bf16.msra.mxu0 %v245
    %326 = vmatpush.bf16.msra.mxu0 %v241
    %327 = vmatpush.bf16.msra.mxu0 %v237
    %328 = vmatpush.bf16.msra.mxu0 %v233
    %329 = vmatmul.bf16.gmra.mxu0 %v134
    %v330 = vpop.f32.mrf.mxu0
    %v331 = vadd.f32 0.0, %v330
    %v332 = vpop.f32.mrf.mxu0
    %333 = vdwg.mxu0
    %334 = vmatpush.bf16.msra.mxu0 %v262
    %335 = vmatpush.bf16.msra.mxu0 %v258
    %336 = vmatpush.bf16.msra.mxu0 %v254
    %337 = vmatpush.bf16.msra.mxu0 %v250
    %338 = vmatpush.bf16.msra.mxu0 %v246
    %339 = vmatpush.bf16.msra.mxu0 %v242
    %340 = vmatpush.bf16.msra.mxu0 %v238
    %341 = vmatpush.bf16.msra.mxu0 %v234
    %342 = vmatmul.bf16.gmra.mxu0 %v134
    %v343 = vpop.f32.mrf.mxu0
    %v344 = vadd.f32 0.0, %v343
    %v345 = vpop.f32.mrf.mxu0
    %346 = vdwg.mxu0
    %v379 = vunpack.c.l.b16 %v66
    %v380 = vunpack.c.h.b16 %v66
    %v381 = vunpack.c.l.b16 %v67
    %v382 = vunpack.c.h.b16 %v67
    %v383 = vunpack.c.l.b16 %v68
    %v384 = vunpack.c.h.b16 %v68
    %v385 = vunpack.c.l.b16 %v69
    %v386 = vunpack.c.h.b16 %v69
    %v387 = vunpack.c.l.b16 %v70
    %v388 = vunpack.c.h.b16 %v70
    %v389 = vunpack.c.l.b16 %v71
    %v390 = vunpack.c.h.b16 %v71
    %v391 = vunpack.c.l.b16 %v72
    %v392 = vunpack.c.h.b16 %v72
    %v393 = vunpack.c.l.b16 %v73
    %v394 = vunpack.c.h.b16 %v73
    %v395 = vunpack.c.l.b16 %v74
    %v396 = vunpack.c.h.b16 %v74
    %v397 = vunpack.c.l.b16 %v75
    %v398 = vunpack.c.h.b16 %v75
    %v399 = vunpack.c.l.b16 %v76
    %v400 = vunpack.c.h.b16 %v76
    %v401 = vunpack.c.l.b16 %v77
    %v402 = vunpack.c.h.b16 %v77
    %v403 = vunpack.c.l.b16 %v78
    %v404 = vunpack.c.h.b16 %v78
    %v405 = vunpack.c.l.b16 %v79
    %v406 = vunpack.c.h.b16 %v79
    %v407 = vunpack.c.l.b16 %v80
    %v408 = vunpack.c.h.b16 %v80
    %v409 = vunpack.c.l.b16 %v81
    %v410 = vunpack.c.h.b16 %v81
    %v411 = vunpack.c.l.b16 %v82
    %v412 = vunpack.c.h.b16 %v82
    %v413 = vunpack.c.l.b16 %v83
    %v414 = vunpack.c.h.b16 %v83
    %v415 = vunpack.c.l.b16 %v84
    %v416 = vunpack.c.h.b16 %v84
    %v417 = vunpack.c.l.b16 %v85
    %v418 = vunpack.c.h.b16 %v85
    %v419 = vunpack.c.l.b16 %v86
    %v420 = vunpack.c.h.b16 %v86
    %v421 = vunpack.c.l.b16 %v87
    %v422 = vunpack.c.h.b16 %v87
    %v423 = vunpack.c.l.b16 %v88
    %v424 = vunpack.c.h.b16 %v88
    %v425 = vunpack.c.l.b16 %v89
    %v426 = vunpack.c.h.b16 %v89
    %v427 = vunpack.c.l.b16 %v90
    %v428 = vunpack.c.h.b16 %v90
    %v429 = vunpack.c.l.b16 %v91
    %v430 = vunpack.c.h.b16 %v91
    %v431 = vunpack.c.l.b16 %v92
    %v432 = vunpack.c.h.b16 %v92
    %v433 = vunpack.c.l.b16 %v93
    %v434 = vunpack.c.h.b16 %v93
    %v435 = vunpack.c.l.b16 %v94
    %v436 = vunpack.c.h.b16 %v94
    %v437 = vunpack.c.l.b16 %v95
    %v438 = vunpack.c.h.b16 %v95
    %v439 = vunpack.c.l.b16 %v96
    %v440 = vunpack.c.h.b16 %v96
    %v441 = vunpack.c.l.b16 %v97
    %v442 = vunpack.c.h.b16 %v97
    %v443 = vpack.c.b16 %v383, %v379
    %v444 = vpack.c.b16 %v384, %v380
    %v445 = vpack.c.b16 %v385, %v381
    %v446 = vpack.c.b16 %v386, %v382
    %v447 = vpack.c.b16 %v391, %v387
    %v448 = vpack.c.b16 %v392, %v388
    %v449 = vpack.c.b16 %v393, %v389
    %v450 = vpack.c.b16 %v394, %v390
    %v451 = vpack.c.b16 %v399, %v395
    %v452 = vpack.c.b16 %v400, %v396
    %v453 = vpack.c.b16 %v401, %v397
    %v454 = vpack.c.b16 %v402, %v398
    %v455 = vpack.c.b16 %v407, %v403
    %v456 = vpack.c.b16 %v408, %v404
    %v457 = vpack.c.b16 %v409, %v405
    %v458 = vpack.c.b16 %v410, %v406
    %v459 = vpack.c.b16 %v415, %v411
    %v460 = vpack.c.b16 %v416, %v412
    %v461 = vpack.c.b16 %v417, %v413
    %v462 = vpack.c.b16 %v418, %v414
    %v463 = vpack.c.b16 %v423, %v419
    %v464 = vpack.c.b16 %v424, %v420
    %v465 = vpack.c.b16 %v425, %v421
    %v466 = vpack.c.b16 %v426, %v422
    %v467 = vpack.c.b16 %v431, %v427
    %v468 = vpack.c.b16 %v432, %v428
    %v469 = vpack.c.b16 %v433, %v429
    %v470 = vpack.c.b16 %v434, %v430
    %v471 = vpack.c.b16 %v439, %v435
    %v472 = vpack.c.b16 %v440, %v436
    %v473 = vpack.c.b16 %v441, %v437
    %v474 = vpack.c.b16 %v442, %v438
    %507 = vmatpush.bf16.msra.mxu0 %v471
    %508 = vmatpush.bf16.msra.mxu0 %v467
    %509 = vmatpush.bf16.msra.mxu0 %v463
    %510 = vmatpush.bf16.msra.mxu0 %v459
    %511 = vmatpush.bf16.msra.mxu0 %v455
    %512 = vmatpush.bf16.msra.mxu0 %v451
    %513 = vmatpush.bf16.msra.mxu0 %v447
    %514 = vmatpush.bf16.msra.mxu0 %v443
    %515 = vmatmul.bf16.gmra.mxu0 %v133
    %v516 = vpop.f32.mrf.mxu0
    %v517 = vadd.f32 %v305, %v516
    %v518 = vpop.f32.mrf.mxu0
    %519 = vdwg.mxu0
    %520 = vmatpush.bf16.msra.mxu0 %v472
    %521 = vmatpush.bf16.msra.mxu0 %v468
    %522 = vmatpush.bf16.msra.mxu0 %v464
    %523 = vmatpush.bf16.msra.mxu0 %v460
    %524 = vmatpush.bf16.msra.mxu0 %v456
    %525 = vmatpush.bf16.msra.mxu0 %v452
    %526 = vmatpush.bf16.msra.mxu0 %v448
    %527 = vmatpush.bf16.msra.mxu0 %v444
    %528 = vmatmul.bf16.gmra.mxu0 %v133
    %v529 = vpop.f32.mrf.mxu0
    %v530 = vadd.f32 %v318, %v529
    %v531 = vpop.f32.mrf.mxu0
    %532 = vdwg.mxu0
    %533 = vmatpush.bf16.msra.mxu0 %v473
    %534 = vmatpush.bf16.msra.mxu0 %v469
    %535 = vmatpush.bf16.msra.mxu0 %v465
    %536 = vmatpush.bf16.msra.mxu0 %v461
    %537 = vmatpush.bf16.msra.mxu0 %v457
    %538 = vmatpush.bf16.msra.mxu0 %v453
    %539 = vmatpush.bf16.msra.mxu0 %v449
    %540 = vmatpush.bf16.msra.mxu0 %v445
    %541 = vmatmul.bf16.gmra.mxu0 %v133
    %v542 = vpop.f32.mrf.mxu0
    %v543 = vadd.f32 %v331, %v542
    %v544 = vpop.f32.mrf.mxu0
    %545 = vdwg.mxu0
    %546 = vmatpush.bf16.msra.mxu0 %v474
    %547 = vmatpush.bf16.msra.mxu0 %v470
    %548 = vmatpush.bf16.msra.mxu0 %v466
    %549 = vmatpush.bf16.msra.mxu0 %v462
    %550 = vmatpush.bf16.msra.mxu0 %v458
    %551 = vmatpush.bf16.msra.mxu0 %v454
    %552 = vmatpush.bf16.msra.mxu0 %v450
    %553 = vmatpush.bf16.msra.mxu0 %v446
    %554 = vmatmul.bf16.gmra.mxu0 %v133
    %v555 = vpop.f32.mrf.mxu0
    %v556 = vadd.f32 %v344, %v555
    %v557 = vpop.f32.mrf.mxu0
    %558 = vdwg.mxu0
    %v560 = vperm.slane %v130, 0
    %v561 = vperm.slane %v130, 1
    %v562 = vperm.slane %v130, 2
    %v563 = vperm.slane %v130, 3
    %v568 = vadd.f32 %v517, %v560
    %v569 = vadd.f32 %v530, %v561
    %v570 = vadd.f32 %v543, %v562
    %v571 = vadd.f32 %v556, %v563
    %v572 = vxor.u32 %v568, 2147483648
    %v573 = vmul.f32 %v572, 1.442695
    %v574 = vpow.pop %v573
    %v575 = vadd.f32 %v574, 1.0
    %v576 = vrcp.pop %v575
    %v577 = vmul.f32 %v575, %v576
    %v578 = vsub.f32 1.0, %v577
    %v579 = vmul.f32 %v576, %v578
    %v580 = vadd.f32 %v576, %v579
    %vm581 = vweird.f32 %v575
    %vm582 = vweird.f32 %v576
    %vm583 = vmor %vm581, %vm582
    %v584 = vsel %vm583, %v576, %v580
    %v585 = vand.u32 2147483647, %v575
    %vm586 = vcmp.eq.f32.partialorder %v585, 8.507059e+37
    %v587 = vand.u32 %v575, 2147483648
    %v588 = vor.u32 1.1754944e-38, %v587
    %v589 = vsel %vm586, %v588, %v584
    %v590 = vmul.f32 1.0, %v589
    %v591 = vxor.u32 %v569, 2147483648
    %v592 = vmul.f32 %v591, 1.442695
    %v593 = vpow.pop %v592
    %v594 = vadd.f32 %v593, 1.0
    %v595 = vrcp.pop %v594
    %v596 = vmul.f32 %v594, %v595
    %v597 = vsub.f32 1.0, %v596
    %v598 = vmul.f32 %v595, %v597
    %v599 = vadd.f32 %v595, %v598
    %vm600 = vweird.f32 %v594
    %vm601 = vweird.f32 %v595
    %vm602 = vmor %vm600, %vm601
    %v603 = vsel %vm602, %v595, %v599
    %v604 = vand.u32 2147483647, %v594
    %vm605 = vcmp.eq.f32.partialorder %v604, 8.507059e+37
    %v606 = vand.u32 %v594, 2147483648
    %v607 = vor.u32 1.1754944e-38, %v606
    %v608 = vsel %vm605, %v607, %v603
    %v609 = vmul.f32 1.0, %v608
    %v610 = vtanh.pop %v570
    %v611 = vxor.u32 %v571, 2147483648
    %v612 = vmul.f32 %v611, 1.442695
    %v613 = vpow.pop %v612
    %v614 = vadd.f32 %v613, 1.0
    %v615 = vrcp.pop %v614
    %v616 = vmul.f32 %v614, %v615
    %v617 = vsub.f32 1.0, %v616
    %v618 = vmul.f32 %v615, %v617
    %v619 = vadd.f32 %v615, %v618
    %vm620 = vweird.f32 %v614
    %vm621 = vweird.f32 %v615
    %vm622 = vmor %vm620, %vm621
    %v623 = vsel %vm622, %v615, %v619
    %v624 = vand.u32 2147483647, %v614
    %vm625 = vcmp.eq.f32.partialorder %v624, 8.507059e+37
    %v626 = vand.u32 %v614, 2147483648
    %v627 = vor.u32 1.1754944e-38, %v626
    %v628 = vsel %vm625, %v627, %v623
    %v629 = vmul.f32 1.0, %v628
    %v630 = vmul.f32 %v609, %v132
    %v631 = vmul.f32 %v590, %v610
    %v632 = vadd.f32 %v630, %v631
    %v633 = vtanh.pop %v632
    %v634 = vmul.f32 %v629, %v633
    %v635 = vpack.c.bf16 %v634, %v634
    %636 = vst [vmem:[%s6] sm:$0xf] %v635
    %s637 = scalar_lea.vmem %s0, 4
    %v638 = vld [vmem:[%s637] sm:$0xf]
    %639 = vmatpush.bf16.msra.mxu0 %v259
    %640 = vmatpush.bf16.msra.mxu0 %v255
    %641 = vmatpush.bf16.msra.mxu0 %v251
    %642 = vmatpush.bf16.msra.mxu0 %v247
    %643 = vmatpush.bf16.msra.mxu0 %v243
    %644 = vmatpush.bf16.msra.mxu0 %v239
    %645 = vmatpush.bf16.msra.mxu0 %v235
    %646 = vmatpush.bf16.msra.mxu0 %v231
    %647 = vmatmul.bf16.gmra.mxu0 %v635
    %v648 = vpop.f32.mrf.mxu0
    %v649 = vadd.f32 0.0, %v648
    %v650 = vpop.f32.mrf.mxu0
    %651 = vdwg.mxu0
    %652 = vmatpush.bf16.msra.mxu0 %v260
    %653 = vmatpush.bf16.msra.mxu0 %v256
    %654 = vmatpush.bf16.msra.mxu0 %v252
    %655 = vmatpush.bf16.msra.mxu0 %v248
    %656 = vmatpush.bf16.msra.mxu0 %v244
    %657 = vmatpush.bf16.msra.mxu0 %v240
    %658 = vmatpush.bf16.msra.mxu0 %v236
    %659 = vmatpush.bf16.msra.mxu0 %v232
    %660 = vmatmul.bf16.gmra.mxu0 %v635
    %v661 = vpop.f32.mrf.mxu0
    %v662 = vadd.f32 0.0, %v661
    %v663 = vpop.f32.mrf.mxu0
    %664 = vdwg.mxu0
    %665 = vmatpush.bf16.msra.mxu0 %v261
    %666 = vmatpush.bf16.msra.mxu0 %v257
    %667 = vmatpush.bf16.msra.mxu0 %v253
    %668 = vmatpush.bf16.msra.mxu0 %v249
    %669 = vmatpush.bf16.msra.mxu0 %v245
    %670 = vmatpush.bf16.msra.mxu0 %v241
    %671 = vmatpush.bf16.msra.mxu0 %v237
    %672 = vmatpush.bf16.msra.mxu0 %v233
    %673 = vmatmul.bf16.gmra.mxu0 %v635
    %v674 = vpop.f32.mrf.mxu0
    %v675 = vadd.f32 0.0, %v674
    %v676 = vpop.f32.mrf.mxu0
    %677 = vdwg.mxu0
    %678 = vmatpush.bf16.msra.mxu0 %v262
    %679 = vmatpush.bf16.msra.mxu0 %v258
    %680 = vmatpush.bf16.msra.mxu0 %v254
    %681 = vmatpush.bf16.msra.mxu0 %v250
    %682 = vmatpush.bf16.msra.mxu0 %v246
    %683 = vmatpush.bf16.msra.mxu0 %v242
    %684 = vmatpush.bf16.msra.mxu0 %v238
    %685 = vmatpush.bf16.msra.mxu0 %v234
    %686 = vmatmul.bf16.gmra.mxu0 %v635
    %v687 = vpop.f32.mrf.mxu0
    %v688 = vadd.f32 0.0, %v687
    %v689 = vpop.f32.mrf.mxu0
    %690 = vdwg.mxu0
    %691 = vmatpush.bf16.msra.mxu0 %v471
    %692 = vmatpush.bf16.msra.mxu0 %v467
    %693 = vmatpush.bf16.msra.mxu0 %v463
    %694 = vmatpush.bf16.msra.mxu0 %v459
    %695 = vmatpush.bf16.msra.mxu0 %v455
    %696 = vmatpush.bf16.msra.mxu0 %v451
    %697 = vmatpush.bf16.msra.mxu0 %v447
    %698 = vmatpush.bf16.msra.mxu0 %v443
    %699 = vmatmul.bf16.gmra.mxu0 %v638
    %v700 = vpop.f32.mrf.mxu0
    %v701 = vadd.f32 %v649, %v700
    %v702 = vpop.f32.mrf.mxu0
    %703 = vdwg.mxu0
    %704 = vmatpush.bf16.msra.mxu0 %v472
    %705 = vmatpush.bf16.msra.mxu0 %v468
    %706 = vmatpush.bf16.msra.mxu0 %v464
    %707 = vmatpush.bf16.msra.mxu0 %v460
    %708 = vmatpush.bf16.msra.mxu0 %v456
    %709 = vmatpush.bf16.msra.mxu0 %v452
    %710 = vmatpush.bf16.msra.mxu0 %v448
    %711 = vmatpush.bf16.msra.mxu0 %v444
    %712 = vmatmul.bf16.gmra.mxu0 %v638
    %v713 = vpop.f32.mrf.mxu0
    %v714 = vadd.f32 %v662, %v713
    %v715 = vpop.f32.mrf.mxu0
    %716 = vdwg.mxu0
    %717 = vmatpush.bf16.msra.mxu0 %v473
    %718 = vmatpush.bf16.msra.mxu0 %v469
    %719 = vmatpush.bf16.msra.mxu0 %v465
    %720 = vmatpush.bf16.msra.mxu0 %v461
    %721 = vmatpush.bf16.msra.mxu0 %v457
    %722 = vmatpush.bf16.msra.mxu0 %v453
    %723 = vmatpush.bf16.msra.mxu0 %v449
    %724 = vmatpush.bf16.msra.mxu0 %v445
    %725 = vmatmul.bf16.gmra.mxu0 %v638
    %v726 = vpop.f32.mrf.mxu0
    %v727 = vadd.f32 %v675, %v726
    %v728 = vpop.f32.mrf.mxu0
    %729 = vdwg.mxu0
    %730 = vmatpush.bf16.msra.mxu0 %v474
    %731 = vmatpush.bf16.msra.mxu0 %v470
    %732 = vmatpush.bf16.msra.mxu0 %v466
    %733 = vmatpush.bf16.msra.mxu0 %v462
    %734 = vmatpush.bf16.msra.mxu0 %v458
    %735 = vmatpush.bf16.msra.mxu0 %v454
    %736 = vmatpush.bf16.msra.mxu0 %v450
    %737 = vmatpush.bf16.msra.mxu0 %v446
    %738 = vmatmul.bf16.gmra.mxu0 %v638
    %v739 = vpop.f32.mrf.mxu0
    %v740 = vadd.f32 %v688, %v739
    %v741 = vpop.f32.mrf.mxu0
    %742 = vdwg.mxu0
    %v743 = vadd.f32 %v701, %v560
    %v744 = vadd.f32 %v714, %v561
    %v745 = vadd.f32 %v727, %v562
    %v746 = vadd.f32 %v740, %v563
    %v747 = vxor.u32 %v743, 2147483648
    %v748 = vmul.f32 %v747, 1.442695
    %v749 = vpow.pop %v748
    %v750 = vadd.f32 %v749, 1.0
    %v751 = vrcp.pop %v750
    %v752 = vmul.f32 %v750, %v751
    %v753 = vsub.f32 1.0, %v752
    %v754 = vmul.f32 %v751, %v753
    %v755 = vadd.f32 %v751, %v754
    %vm756 = vweird.f32 %v750
    %vm757 = vweird.f32 %v751
    %vm758 = vmor %vm756, %vm757
    %v759 = vsel %vm758, %v751, %v755
    %v760 = vand.u32 2147483647, %v750
    %vm761 = vcmp.eq.f32.partialorder %v760, 8.507059e+37
    %v762 = vand.u32 %v750, 2147483648
    %v763 = vor.u32 1.1754944e-38, %v762
    %v764 = vsel %vm761, %v763, %v759
    %v765 = vmul.f32 1.0, %v764
    %v766 = vxor.u32 %v744, 2147483648
    %v767 = vmul.f32 %v766, 1.442695
    %v768 = vpow.pop %v767
    %v769 = vadd.f32 %v768, 1.0
    %v770 = vrcp.pop %v769
    %v771 = vmul.f32 %v769, %v770
    %v772 = vsub.f32 1.0, %v771
    %v773 = vmul.f32 %v770, %v772
    %v774 = vadd.f32 %v770, %v773
    %vm775 = vweird.f32 %v769
    %vm776 = vweird.f32 %v770
    %vm777 = vmor %vm775, %vm776
    %v778 = vsel %vm777, %v770, %v774
    %v779 = vand.u32 2147483647, %v769
    %vm780 = vcmp.eq.f32.partialorder %v779, 8.507059e+37
    %v781 = vand.u32 %v769, 2147483648
    %v782 = vor.u32 1.1754944e-38, %v781
    %v783 = vsel %vm780, %v782, %v778
    %v784 = vmul.f32 1.0, %v783
    %v785 = vtanh.pop %v745
    %v786 = vxor.u32 %v746, 2147483648
    %v787 = vmul.f32 %v786, 1.442695
    %v788 = vpow.pop %v787
    %v789 = vadd.f32 %v788, 1.0
    %v790 = vrcp.pop %v789
    %v791 = vmul.f32 %v789, %v790
    %v792 = vsub.f32 1.0, %v791
    %v793 = vmul.f32 %v790, %v792
    %v794 = vadd.f32 %v790, %v793
    %vm795 = vweird.f32 %v789
    %vm796 = vweird.f32 %v790
    %vm797 = vmor %vm795, %vm796
    %v798 = vsel %vm797, %v790, %v794
    %v799 = vand.u32 2147483647, %v789
    %vm800 = vcmp.eq.f32.partialorder %v799, 8.507059e+37
    %v801 = vand.u32 %v789, 2147483648
    %v802 = vor.u32 1.1754944e-38, %v801
    %v803 = vsel %vm800, %v802, %v798
    %v804 = vmul.f32 1.0, %v803
    %v805 = vmul.f32 %v784, %v632
    %v806 = vmul.f32 %v765, %v785
    %v807 = vadd.f32 %v805, %v806
    %v808 = vtanh.pop %v807
    %v809 = vmul.f32 %v804, %v808
    %v810 = vpack.c.bf16 %v809, %v809
    %s811 = scalar_lea.vmem %s6, 4
    %812 = vst [vmem:[%s811] sm:$0xf] %v810
    %s813 = scalar_lea.vmem %s0, 8
    %v814 = vld [vmem:[%s813] sm:$0xf]
    %815 = vmatpush.bf16.msra.mxu0 %v259
    %816 = vmatpush.bf16.msra.mxu0 %v255
    %817 = vmatpush.bf16.msra.mxu0 %v251
    %818 = vmatpush.bf16.msra.mxu0 %v247
    %819 = vmatpush.bf16.msra.mxu0 %v243
    %820 = vmatpush.bf16.msra.mxu0 %v239
    %821 = vmatpush.bf16.msra.mxu0 %v235
    %822 = vmatpush.bf16.msra.mxu0 %v231
    %823 = vmatmul.bf16.gmra.mxu0 %v810
    %v824 = vpop.f32.mrf.mxu0
    %v825 = vadd.f32 0.0, %v824
    %v826 = vpop.f32.mrf.mxu0
    %827 = vdwg.mxu0
    %828 = vmatpush.bf16.msra.mxu0 %v260
    %829 = vmatpush.bf16.msra.mxu0 %v256
    %830 = vmatpush.bf16.msra.mxu0 %v252
    %831 = vmatpush.bf16.msra.mxu0 %v248
    %832 = vmatpush.bf16.msra.mxu0 %v244
    %833 = vmatpush.bf16.msra.mxu0 %v240
    %834 = vmatpush.bf16.msra.mxu0 %v236
    %835 = vmatpush.bf16.msra.mxu0 %v232
    %836 = vmatmul.bf16.gmra.mxu0 %v810
    %v837 = vpop.f32.mrf.mxu0
    %v838 = vadd.f32 0.0, %v837
    %v839 = vpop.f32.mrf.mxu0
    %840 = vdwg.mxu0
    %841 = vmatpush.bf16.msra.mxu0 %v261
    %842 = vmatpush.bf16.msra.mxu0 %v257
    %843 = vmatpush.bf16.msra.mxu0 %v253
    %844 = vmatpush.bf16.msra.mxu0 %v249
    %845 = vmatpush.bf16.msra.mxu0 %v245
    %846 = vmatpush.bf16.msra.mxu0 %v241
    %847 = vmatpush.bf16.msra.mxu0 %v237
    %848 = vmatpush.bf16.msra.mxu0 %v233
    %849 = vmatmul.bf16.gmra.mxu0 %v810
    %v850 = vpop.f32.mrf.mxu0
    %v851 = vadd.f32 0.0, %v850
    %v852 = vpop.f32.mrf.mxu0
    %853 = vdwg.mxu0
    %854 = vmatpush.bf16.msra.mxu0 %v262
    %855 = vmatpush.bf16.msra.mxu0 %v258
    %856 = vmatpush.bf16.msra.mxu0 %v254
    %857 = vmatpush.bf16.msra.mxu0 %v250
    %858 = vmatpush.bf16.msra.mxu0 %v246
    %859 = vmatpush.bf16.msra.mxu0 %v242
    %860 = vmatpush.bf16.msra.mxu0 %v238
    %861 = vmatpush.bf16.msra.mxu0 %v234
    %862 = vmatmul.bf16.gmra.mxu0 %v810
    %v863 = vpop.f32.mrf.mxu0
    %v864 = vadd.f32 0.0, %v863
    %v865 = vpop.f32.mrf.mxu0
    %866 = vdwg.mxu0
    %867 = vmatpush.bf16.msra.mxu0 %v471
    %868 = vmatpush.bf16.msra.mxu0 %v467
    %869 = vmatpush.bf16.msra.mxu0 %v463
    %870 = vmatpush.bf16.msra.mxu0 %v459
    %871 = vmatpush.bf16.msra.mxu0 %v455
    %872 = vmatpush.bf16.msra.mxu0 %v451
    %873 = vmatpush.bf16.msra.mxu0 %v447
    %874 = vmatpush.bf16.msra.mxu0 %v443
    %875 = vmatmul.bf16.gmra.mxu0 %v814
    %v876 = vpop.f32.mrf.mxu0
    %v877 = vadd.f32 %v825, %v876
    %v878 = vpop.f32.mrf.mxu0
    %879 = vdwg.mxu0
    %880 = vmatpush.bf16.msra.mxu0 %v472
    %881 = vmatpush.bf16.msra.mxu0 %v468
    %882 = vmatpush.bf16.msra.mxu0 %v464
    %883 = vmatpush.bf16.msra.mxu0 %v460
    %884 = vmatpush.bf16.msra.mxu0 %v456
    %885 = vmatpush.bf16.msra.mxu0 %v452
    %886 = vmatpush.bf16.msra.mxu0 %v448
    %887 = vmatpush.bf16.msra.mxu0 %v444
    %888 = vmatmul.bf16.gmra.mxu0 %v814
    %v889 = vpop.f32.mrf.mxu0
    %v890 = vadd.f32 %v838, %v889
    %v891 = vpop.f32.mrf.mxu0
    %892 = vdwg.mxu0
    %893 = vmatpush.bf16.msra.mxu0 %v473
    %894 = vmatpush.bf16.msra.mxu0 %v469
    %895 = vmatpush.bf16.msra.mxu0 %v465
    %896 = vmatpush.bf16.msra.mxu0 %v461
    %897 = vmatpush.bf16.msra.mxu0 %v457
    %898 = vmatpush.bf16.msra.mxu0 %v453
    %899 = vmatpush.bf16.msra.mxu0 %v449
    %900 = vmatpush.bf16.msra.mxu0 %v445
    %901 = vmatmul.bf16.gmra.mxu0 %v814
    %v902 = vpop.f32.mrf.mxu0
    %v903 = vadd.f32 %v851, %v902
    %v904 = vpop.f32.mrf.mxu0
    %905 = vdwg.mxu0
    %906 = vmatpush.bf16.msra.mxu0 %v474
    %907 = vmatpush.bf16.msra.mxu0 %v470
    %908 = vmatpush.bf16.msra.mxu0 %v466
    %909 = vmatpush.bf16.msra.mxu0 %v462
    %910 = vmatpush.bf16.msra.mxu0 %v458
    %911 = vmatpush.bf16.msra.mxu0 %v454
    %912 = vmatpush.bf16.msra.mxu0 %v450
    %913 = vmatpush.bf16.msra.mxu0 %v446
    %914 = vmatmul.bf16.gmra.mxu0 %v814
    %v915 = vpop.f32.mrf.mxu0
    %v916 = vadd.f32 %v864, %v915
    %v917 = vpop.f32.mrf.mxu0
    %918 = vdwg.mxu0
    %v919 = vadd.f32 %v877, %v560
    %v920 = vadd.f32 %v890, %v561
    %v921 = vadd.f32 %v903, %v562
    %v922 = vadd.f32 %v916, %v563
    %v923 = vxor.u32 %v919, 2147483648
    %v924 = vmul.f32 %v923, 1.442695
    %v925 = vpow.pop %v924
    %v926 = vadd.f32 %v925, 1.0
    %v927 = vrcp.pop %v926
    %v928 = vmul.f32 %v926, %v927
    %v929 = vsub.f32 1.0, %v928
    %v930 = vmul.f32 %v927, %v929
    %v931 = vadd.f32 %v927, %v930
    %vm932 = vweird.f32 %v926
    %vm933 = vweird.f32 %v927
    %vm934 = vmor %vm932, %vm933
    %v935 = vsel %vm934, %v927, %v931
    %v936 = vand.u32 2147483647, %v926
    %vm937 = vcmp.eq.f32.partialorder %v936, 8.507059e+37
    %v938 = vand.u32 %v926, 2147483648
    %v939 = vor.u32 1.1754944e-38, %v938
    %v940 = vsel %vm937, %v939, %v935
    %v941 = vmul.f32 1.0, %v940
    %v942 = vxor.u32 %v920, 2147483648
    %v943 = vmul.f32 %v942, 1.442695
    %v944 = vpow.pop %v943
    %v945 = vadd.f32 %v944, 1.0
    %v946 = vrcp.pop %v945
    %v947 = vmul.f32 %v945, %v946
    %v948 = vsub.f32 1.0, %v947
    %v949 = vmul.f32 %v946, %v948
    %v950 = vadd.f32 %v946, %v949
    %vm951 = vweird.f32 %v945
    %vm952 = vweird.f32 %v946
    %vm953 = vmor %vm951, %vm952
    %v954 = vsel %vm953, %v946, %v950
    %v955 = vand.u32 2147483647, %v945
    %vm956 = vcmp.eq.f32.partialorder %v955, 8.507059e+37
    %v957 = vand.u32 %v945, 2147483648
    %v958 = vor.u32 1.1754944e-38, %v957
    %v959 = vsel %vm956, %v958, %v954
    %v960 = vmul.f32 1.0, %v959
    %v961 = vtanh.pop %v921
    %v962 = vxor.u32 %v922, 2147483648
    %v963 = vmul.f32 %v962, 1.442695
    %v964 = vpow.pop %v963
    %v965 = vadd.f32 %v964, 1.0
    %v966 = vrcp.pop %v965
    %v967 = vmul.f32 %v965, %v966
    %v968 = vsub.f32 1.0, %v967
    %v969 = vmul.f32 %v966, %v968
    %v970 = vadd.f32 %v966, %v969
    %vm971 = vweird.f32 %v965
    %vm972 = vweird.f32 %v966
    %vm973 = vmor %vm971, %vm972
    %v974 = vsel %vm973, %v966, %v970
    %v975 = vand.u32 2147483647, %v965
    %vm976 = vcmp.eq.f32.partialorder %v975, 8.507059e+37
    %v977 = vand.u32 %v965, 2147483648
    %v978 = vor.u32 1.1754944e-38, %v977
    %v979 = vsel %vm976, %v978, %v974
    %v980 = vmul.f32 1.0, %v979
    %v981 = vmul.f32 %v960, %v807
    %v982 = vmul.f32 %v941, %v961
    %v983 = vadd.f32 %v981, %v982
    %v984 = vtanh.pop %v983
    %v985 = vmul.f32 %v980, %v984
    %v986 = vpack.c.bf16 %v985, %v985
    %s987 = scalar_lea.vmem %s6, 8
    %988 = vst [vmem:[%s987] sm:$0xf] %v986
    %s989 = scalar_lea.vmem %s0, 12
    %v990 = vld [vmem:[%s989] sm:$0xf]
    %991 = vmatpush.bf16.msra.mxu0 %v259
    %992 = vmatpush.bf16.msra.mxu0 %v255
    %993 = vmatpush.bf16.msra.mxu0 %v251
    %994 = vmatpush.bf16.msra.mxu0 %v247
    %995 = vmatpush.bf16.msra.mxu0 %v243
    %996 = vmatpush.bf16.msra.mxu0 %v239
    %997 = vmatpush.bf16.msra.mxu0 %v235
    %998 = vmatpush.bf16.msra.mxu0 %v231
    %999 = vmatmul.bf16.gmra.mxu0 %v986
    %v1000 = vpop.f32.mrf.mxu0
    %v1001 = vadd.f32 0.0, %v1000
    %v1002 = vpop.f32.mrf.mxu0
    %1003 = vdwg.mxu0
    %1004 = vmatpush.bf16.msra.mxu0 %v260
    %1005 = vmatpush.bf16.msra.mxu0 %v256
    %1006 = vmatpush.bf16.msra.mxu0 %v252
    %1007 = vmatpush.bf16.msra.mxu0 %v248
    %1008 = vmatpush.bf16.msra.mxu0 %v244
    %1009 = vmatpush.bf16.msra.mxu0 %v240
    %1010 = vmatpush.bf16.msra.mxu0 %v236
    %1011 = vmatpush.bf16.msra.mxu0 %v232
    %1012 = vmatmul.bf16.gmra.mxu0 %v986
    %v1013 = vpop.f32.mrf.mxu0
    %v1014 = vadd.f32 0.0, %v1013
    %v1015 = vpop.f32.mrf.mxu0
    %1016 = vdwg.mxu0
    %1017 = vmatpush.bf16.msra.mxu0 %v261
    %1018 = vmatpush.bf16.msra.mxu0 %v257
    %1019 = vmatpush.bf16.msra.mxu0 %v253
    %1020 = vmatpush.bf16.msra.mxu0 %v249
    %1021 = vmatpush.bf16.msra.mxu0 %v245
    %1022 = vmatpush.bf16.msra.mxu0 %v241
    %1023 = vmatpush.bf16.msra.mxu0 %v237
    %1024 = vmatpush.bf16.msra.mxu0 %v233
    %1025 = vmatmul.bf16.gmra.mxu0 %v986
    %v1026 = vpop.f32.mrf.mxu0
    %v1027 = vadd.f32 0.0, %v1026
    %v1028 = vpop.f32.mrf.mxu0
    %1029 = vdwg.mxu0
    %1030 = vmatpush.bf16.msra.mxu0 %v262
    %1031 = vmatpush.bf16.msra.mxu0 %v258
    %1032 = vmatpush.bf16.msra.mxu0 %v254
    %1033 = vmatpush.bf16.msra.mxu0 %v250
    %1034 = vmatpush.bf16.msra.mxu0 %v246
    %1035 = vmatpush.bf16.msra.mxu0 %v242
    %1036 = vmatpush.bf16.msra.mxu0 %v238
    %1037 = vmatpush.bf16.msra.mxu0 %v234
    %1038 = vmatmul.bf16.gmra.mxu0 %v986
    %v1039 = vpop.f32.mrf.mxu0
    %v1040 = vadd.f32 0.0, %v1039
    %v1041 = vpop.f32.mrf.mxu0
    %1042 = vdwg.mxu0
    %1043 = vmatpush.bf16.msra.mxu0 %v471
    %1044 = vmatpush.bf16.msra.mxu0 %v467
    %1045 = vmatpush.bf16.msra.mxu0 %v463
    %1046 = vmatpush.bf16.msra.mxu0 %v459
    %1047 = vmatpush.bf16.msra.mxu0 %v455
    %1048 = vmatpush.bf16.msra.mxu0 %v451
    %1049 = vmatpush.bf16.msra.mxu0 %v447
    %1050 = vmatpush.bf16.msra.mxu0 %v443
    %1051 = vmatmul.bf16.gmra.mxu0 %v990
    %v1052 = vpop.f32.mrf.mxu0
    %v1053 = vadd.f32 %v1001, %v1052
    %v1054 = vpop.f32.mrf.mxu0
    %1055 = vdwg.mxu0
    %1056 = vmatpush.bf16.msra.mxu0 %v472
    %1057 = vmatpush.bf16.msra.mxu0 %v468
    %1058 = vmatpush.bf16.msra.mxu0 %v464
    %1059 = vmatpush.bf16.msra.mxu0 %v460
    %1060 = vmatpush.bf16.msra.mxu0 %v456
    %1061 = vmatpush.bf16.msra.mxu0 %v452
    %1062 = vmatpush.bf16.msra.mxu0 %v448
    %1063 = vmatpush.bf16.msra.mxu0 %v444
    %1064 = vmatmul.bf16.gmra.mxu0 %v990
    %v1065 = vpop.f32.mrf.mxu0
    %v1066 = vadd.f32 %v1014, %v1065
    %v1067 = vpop.f32.mrf.mxu0
    %1068 = vdwg.mxu0
    %1069 = vmatpush.bf16.msra.mxu0 %v473
    %1070 = vmatpush.bf16.msra.mxu0 %v469
    %1071 = vmatpush.bf16.msra.mxu0 %v465
    %1072 = vmatpush.bf16.msra.mxu0 %v461
    %1073 = vmatpush.bf16.msra.mxu0 %v457
    %1074 = vmatpush.bf16.msra.mxu0 %v453
    %1075 = vmatpush.bf16.msra.mxu0 %v449
    %1076 = vmatpush.bf16.msra.mxu0 %v445
    %1077 = vmatmul.bf16.gmra.mxu0 %v990
    %v1078 = vpop.f32.mrf.mxu0
    %v1079 = vadd.f32 %v1027, %v1078
    %v1080 = vpop.f32.mrf.mxu0
    %1081 = vdwg.mxu0
    %1082 = vmatpush.bf16.msra.mxu0 %v474
    %1083 = vmatpush.bf16.msra.mxu0 %v470
    %1084 = vmatpush.bf16.msra.mxu0 %v466
    %1085 = vmatpush.bf16.msra.mxu0 %v462
    %1086 = vmatpush.bf16.msra.mxu0 %v458
    %1087 = vmatpush.bf16.msra.mxu0 %v454
    %1088 = vmatpush.bf16.msra.mxu0 %v450
    %1089 = vmatpush.bf16.msra.mxu0 %v446
    %1090 = vmatmul.bf16.gmra.mxu0 %v990
    %v1091 = vpop.f32.mrf.mxu0
    %v1092 = vadd.f32 %v1040, %v1091
    %v1093 = vpop.f32.mrf.mxu0
    %1094 = vdwg.mxu0
    %v1095 = vadd.f32 %v1053, %v560
    %v1096 = vadd.f32 %v1066, %v561
    %v1097 = vadd.f32 %v1079, %v562
    %v1098 = vadd.f32 %v1092, %v563
    %v1099 = vxor.u32 %v1095, 2147483648
    %v1100 = vmul.f32 %v1099, 1.442695
    %v1101 = vpow.pop %v1100
    %v1102 = vadd.f32 %v1101, 1.0
    %v1103 = vrcp.pop %v1102
    %v1104 = vmul.f32 %v1102, %v1103
    %v1105 = vsub.f32 1.0, %v1104
    %v1106 = vmul.f32 %v1103, %v1105
    %v1107 = vadd.f32 %v1103, %v1106
    %vm1108 = vweird.f32 %v1102
    %vm1109 = vweird.f32 %v1103
    %vm1110 = vmor %vm1108, %vm1109
    %v1111 = vsel %vm1110, %v1103, %v1107
    %v1112 = vand.u32 2147483647, %v1102
    %vm1113 = vcmp.eq.f32.partialorder %v1112, 8.507059e+37
    %v1114 = vand.u32 %v1102, 2147483648
    %v1115 = vor.u32 1.1754944e-38, %v1114
    %v1116 = vsel %vm1113, %v1115, %v1111
    %v1117 = vmul.f32 1.0, %v1116
    %v1118 = vxor.u32 %v1096, 2147483648
    %v1119 = vmul.f32 %v1118, 1.442695
    %v1120 = vpow.pop %v1119
    %v1121 = vadd.f32 %v1120, 1.0
    %v1122 = vrcp.pop %v1121
    %v1123 = vmul.f32 %v1121, %v1122
    %v1124 = vsub.f32 1.0, %v1123
    %v1125 = vmul.f32 %v1122, %v1124
    %v1126 = vadd.f32 %v1122, %v1125
    %vm1127 = vweird.f32 %v1121
    %vm1128 = vweird.f32 %v1122
    %vm1129 = vmor %vm1127, %vm1128
    %v1130 = vsel %vm1129, %v1122, %v1126
    %v1131 = vand.u32 2147483647, %v1121
    %vm1132 = vcmp.eq.f32.partialorder %v1131, 8.507059e+37
    %v1133 = vand.u32 %v1121, 2147483648
    %v1134 = vor.u32 1.1754944e-38, %v1133
    %v1135 = vsel %vm1132, %v1134, %v1130
    %v1136 = vmul.f32 1.0, %v1135
    %v1137 = vtanh.pop %v1097
    %v1138 = vxor.u32 %v1098, 2147483648
    %v1139 = vmul.f32 %v1138, 1.442695
    %v1140 = vpow.pop %v1139
    %v1141 = vadd.f32 %v1140, 1.0
    %v1142 = vrcp.pop %v1141
    %v1143 = vmul.f32 %v1141, %v1142
    %v1144 = vsub.f32 1.0, %v1143
    %v1145 = vmul.f32 %v1142, %v1144
    %v1146 = vadd.f32 %v1142, %v1145
    %vm1147 = vweird.f32 %v1141
    %vm1148 = vweird.f32 %v1142
    %vm1149 = vmor %vm1147, %vm1148
    %v1150 = vsel %vm1149, %v1142, %v1146
    %v1151 = vand.u32 2147483647, %v1141
    %vm1152 = vcmp.eq.f32.partialorder %v1151, 8.507059e+37
    %v1153 = vand.u32 %v1141, 2147483648
    %v1154 = vor.u32 1.1754944e-38, %v1153
    %v1155 = vsel %vm1152, %v1154, %v1150
    %v1156 = vmul.f32 1.0, %v1155
    %v1157 = vmul.f32 %v1136, %v983
    %v1158 = vmul.f32 %v1117, %v1137
    %v1159 = vadd.f32 %v1157, %v1158
    %v1160 = vtanh.pop %v1159
    %v1161 = vmul.f32 %v1156, %v1160
    %v1162 = vpack.c.bf16 %v1161, %v1161
    %s1163 = scalar_lea.vmem %s6, 12
    %1164 = vst [vmem:[%s1163] sm:$0xf] %v1162
    %s1165 = scalar_lea.vmem %s0, 16
    %v1166 = vld [vmem:[%s1165] sm:$0xf]
    %1167 = vmatpush.bf16.msra.mxu0 %v259
    %1168 = vmatpush.bf16.msra.mxu0 %v255
    %1169 = vmatpush.bf16.msra.mxu0 %v251
    %1170 = vmatpush.bf16.msra.mxu0 %v247
    %1171 = vmatpush.bf16.msra.mxu0 %v243
    %1172 = vmatpush.bf16.msra.mxu0 %v239
    %1173 = vmatpush.bf16.msra.mxu0 %v235
    %1174 = vmatpush.bf16.msra.mxu0 %v231
    %1175 = vmatmul.bf16.gmra.mxu0 %v1162
    %v1176 = vpop.f32.mrf.mxu0
    %v1177 = vadd.f32 0.0, %v1176
    %v1178 = vpop.f32.mrf.mxu0
    %1179 = vdwg.mxu0
    %1180 = vmatpush.bf16.msra.mxu0 %v260
    %1181 = vmatpush.bf16.msra.mxu0 %v256
    %1182 = vmatpush.bf16.msra.mxu0 %v252
    %1183 = vmatpush.bf16.msra.mxu0 %v248
    %1184 = vmatpush.bf16.msra.mxu0 %v244
    %1185 = vmatpush.bf16.msra.mxu0 %v240
    %1186 = vmatpush.bf16.msra.mxu0 %v236
    %1187 = vmatpush.bf16.msra.mxu0 %v232
    %1188 = vmatmul.bf16.gmra.mxu0 %v1162
    %v1189 = vpop.f32.mrf.mxu0
    %v1190 = vadd.f32 0.0, %v1189
    %v1191 = vpop.f32.mrf.mxu0
    %1192 = vdwg.mxu0
    %1193 = vmatpush.bf16.msra.mxu0 %v261
    %1194 = vmatpush.bf16.msra.mxu0 %v257
    %1195 = vmatpush.bf16.msra.mxu0 %v253
    %1196 = vmatpush.bf16.msra.mxu0 %v249
    %1197 = vmatpush.bf16.msra.mxu0 %v245
    %1198 = vmatpush.bf16.msra.mxu0 %v241
    %1199 = vmatpush.bf16.msra.mxu0 %v237
    %1200 = vmatpush.bf16.msra.mxu0 %v233
    %1201 = vmatmul.bf16.gmra.mxu0 %v1162
    %v1202 = vpop.f32.mrf.mxu0
    %v1203 = vadd.f32 0.0, %v1202
    %v1204 = vpop.f32.mrf.mxu0
    %1205 = vdwg.mxu0
    %1206 = vmatpush.bf16.msra.mxu0 %v262
    %1207 = vmatpush.bf16.msra.mxu0 %v258
    %1208 = vmatpush.bf16.msra.mxu0 %v254
    %1209 = vmatpush.bf16.msra.mxu0 %v250
    %1210 = vmatpush.bf16.msra.mxu0 %v246
    %1211 = vmatpush.bf16.msra.mxu0 %v242
    %1212 = vmatpush.bf16.msra.mxu0 %v238
    %1213 = vmatpush.bf16.msra.mxu0 %v234
    %1214 = vmatmul.bf16.gmra.mxu0 %v1162
    %v1215 = vpop.f32.mrf.mxu0
    %v1216 = vadd.f32 0.0, %v1215
    %v1217 = vpop.f32.mrf.mxu0
    %1218 = vdwg.mxu0
    %1219 = vmatpush.bf16.msra.mxu0 %v471
    %1220 = vmatpush.bf16.msra.mxu0 %v467
    %1221 = vmatpush.bf16.msra.mxu0 %v463
    %1222 = vmatpush.bf16.msra.mxu0 %v459
    %1223 = vmatpush.bf16.msra.mxu0 %v455
    %1224 = vmatpush.bf16.msra.mxu0 %v451
    %1225 = vmatpush.bf16.msra.mxu0 %v447
    %1226 = vmatpush.bf16.msra.mxu0 %v443
    %1227 = vmatmul.bf16.gmra.mxu0 %v1166
    %v1228 = vpop.f32.mrf.mxu0
    %v1229 = vadd.f32 %v1177, %v1228
    %v1230 = vpop.f32.mrf.mxu0
    %1231 = vdwg.mxu0
    %1232 = vmatpush.bf16.msra.mxu0 %v472
    %1233 = vmatpush.bf16.msra.mxu0 %v468
    %1234 = vmatpush.bf16.msra.mxu0 %v464
    %1235 = vmatpush.bf16.msra.mxu0 %v460
    %1236 = vmatpush.bf16.msra.mxu0 %v456
    %1237 = vmatpush.bf16.msra.mxu0 %v452
    %1238 = vmatpush.bf16.msra.mxu0 %v448
    %1239 = vmatpush.bf16.msra.mxu0 %v444
    %1240 = vmatmul.bf16.gmra.mxu0 %v1166
    %v1241 = vpop.f32.mrf.mxu0
    %v1242 = vadd.f32 %v1190, %v1241
    %v1243 = vpop.f32.mrf.mxu0
    %1244 = vdwg.mxu0
    %1245 = vmatpush.bf16.msra.mxu0 %v473
    %1246 = vmatpush.bf16.msra.mxu0 %v469
    %1247 = vmatpush.bf16.msra.mxu0 %v465
    %1248 = vmatpush.bf16.msra.mxu0 %v461
    %1249 = vmatpush.bf16.msra.mxu0 %v457
    %1250 = vmatpush.bf16.msra.mxu0 %v453
    %1251 = vmatpush.bf16.msra.mxu0 %v449
    %1252 = vmatpush.bf16.msra.mxu0 %v445
    %1253 = vmatmul.bf16.gmra.mxu0 %v1166
    %v1254 = vpop.f32.mrf.mxu0
    %v1255 = vadd.f32 %v1203, %v1254
    %v1256 = vpop.f32.mrf.mxu0
    %1257 = vdwg.mxu0
    %1258 = vmatpush.bf16.msra.mxu0 %v474
    %1259 = vmatpush.bf16.msra.mxu0 %v470
    %1260 = vmatpush.bf16.msra.mxu0 %v466
    %1261 = vmatpush.bf16.msra.mxu0 %v462
    %1262 = vmatpush.bf16.msra.mxu0 %v458
    %1263 = vmatpush.bf16.msra.mxu0 %v454
    %1264 = vmatpush.bf16.msra.mxu0 %v450
    %1265 = vmatpush.bf16.msra.mxu0 %v446
    %1266 = vmatmul.bf16.gmra.mxu0 %v1166
    %v1267 = vpop.f32.mrf.mxu0
    %v1268 = vadd.f32 %v1216, %v1267
    %v1269 = vpop.f32.mrf.mxu0
    %1270 = vdwg.mxu0
    %v1271 = vadd.f32 %v1229, %v560
    %v1272 = vadd.f32 %v1242, %v561
    %v1273 = vadd.f32 %v1255, %v562
    %v1274 = vadd.f32 %v1268, %v563
    %v1275 = vxor.u32 %v1271, 2147483648
    %v1276 = vmul.f32 %v1275, 1.442695
    %v1277 = vpow.pop %v1276
    %v1278 = vadd.f32 %v1277, 1.0
    %v1279 = vrcp.pop %v1278
    %v1280 = vmul.f32 %v1278, %v1279
    %v1281 = vsub.f32 1.0, %v1280
    %v1282 = vmul.f32 %v1279, %v1281
    %v1283 = vadd.f32 %v1279, %v1282
    %vm1284 = vweird.f32 %v1278
    %vm1285 = vweird.f32 %v1279
    %vm1286 = vmor %vm1284, %vm1285
    %v1287 = vsel %vm1286, %v1279, %v1283
    %v1288 = vand.u32 2147483647, %v1278
    %vm1289 = vcmp.eq.f32.partialorder %v1288, 8.507059e+37
    %v1290 = vand.u32 %v1278, 2147483648
    %v1291 = vor.u32 1.1754944e-38, %v1290
    %v1292 = vsel %vm1289, %v1291, %v1287
    %v1293 = vmul.f32 1.0, %v1292
    %v1294 = vxor.u32 %v1272, 2147483648
    %v1295 = vmul.f32 %v1294, 1.442695
    %v1296 = vpow.pop %v1295
    %v1297 = vadd.f32 %v1296, 1.0
    %v1298 = vrcp.pop %v1297
    %v1299 = vmul.f32 %v1297, %v1298
    %v1300 = vsub.f32 1.0, %v1299
    %v1301 = vmul.f32 %v1298, %v1300
    %v1302 = vadd.f32 %v1298, %v1301
    %vm1303 = vweird.f32 %v1297
    %vm1304 = vweird.f32 %v1298
    %vm1305 = vmor %vm1303, %vm1304
    %v1306 = vsel %vm1305, %v1298, %v1302
    %v1307 = vand.u32 2147483647, %v1297
    %vm1308 = vcmp.eq.f32.partialorder %v1307, 8.507059e+37
    %v1309 = vand.u32 %v1297, 2147483648
    %v1310 = vor.u32 1.1754944e-38, %v1309
    %v1311 = vsel %vm1308, %v1310, %v1306
    %v1312 = vmul.f32 1.0, %v1311
    %v1313 = vtanh.pop %v1273
    %v1314 = vxor.u32 %v1274, 2147483648
    %v1315 = vmul.f32 %v1314, 1.442695
    %v1316 = vpow.pop %v1315
    %v1317 = vadd.f32 %v1316, 1.0
    %v1318 = vrcp.pop %v1317
    %v1319 = vmul.f32 %v1317, %v1318
    %v1320 = vsub.f32 1.0, %v1319
    %v1321 = vmul.f32 %v1318, %v1320
    %v1322 = vadd.f32 %v1318, %v1321
    %vm1323 = vweird.f32 %v1317
    %vm1324 = vweird.f32 %v1318
    %vm1325 = vmor %vm1323, %vm1324
    %v1326 = vsel %vm1325, %v1318, %v1322
    %v1327 = vand.u32 2147483647, %v1317
    %vm1328 = vcmp.eq.f32.partialorder %v1327, 8.507059e+37
    %v1329 = vand.u32 %v1317, 2147483648
    %v1330 = vor.u32 1.1754944e-38, %v1329
    %v1331 = vsel %vm1328, %v1330, %v1326
    %v1332 = vmul.f32 1.0, %v1331
    %v1333 = vmul.f32 %v1312, %v1159
    %v1334 = vmul.f32 %v1293, %v1313
    %v1335 = vadd.f32 %v1333, %v1334
    %v1336 = vtanh.pop %v1335
    %v1337 = vmul.f32 %v1332, %v1336
    %v1338 = vpack.c.bf16 %v1337, %v1337
    %s1339 = scalar_lea.vmem %s6, 16
    %1340 = vst [vmem:[%s1339] sm:$0xf] %v1338
    %s1341 = scalar_lea.vmem %s0, 20
    %v1342 = vld [vmem:[%s1341] sm:$0xf]
    %1343 = vmatpush.bf16.msra.mxu0 %v259
    %1344 = vmatpush.bf16.msra.mxu0 %v255
    %1345 = vmatpush.bf16.msra.mxu0 %v251
    %1346 = vmatpush.bf16.msra.mxu0 %v247
    %1347 = vmatpush.bf16.msra.mxu0 %v243
    %1348 = vmatpush.bf16.msra.mxu0 %v239
    %1349 = vmatpush.bf16.msra.mxu0 %v235
    %1350 = vmatpush.bf16.msra.mxu0 %v231
    %1351 = vmatmul.bf16.gmra.mxu0 %v1338
    %v1352 = vpop.f32.mrf.mxu0
    %v1353 = vadd.f32 0.0, %v1352
    %v1354 = vpop.f32.mrf.mxu0
    %1355 = vdwg.mxu0
    %1356 = vmatpush.bf16.msra.mxu0 %v260
    %1357 = vmatpush.bf16.msra.mxu0 %v256
    %1358 = vmatpush.bf16.msra.mxu0 %v252
    %1359 = vmatpush.bf16.msra.mxu0 %v248
    %1360 = vmatpush.bf16.msra.mxu0 %v244
    %1361 = vmatpush.bf16.msra.mxu0 %v240
    %1362 = vmatpush.bf16.msra.mxu0 %v236
    %1363 = vmatpush.bf16.msra.mxu0 %v232
    %1364 = vmatmul.bf16.gmra.mxu0 %v1338
    %v1365 = vpop.f32.mrf.mxu0
    %v1366 = vadd.f32 0.0, %v1365
    %v1367 = vpop.f32.mrf.mxu0
    %1368 = vdwg.mxu0
    %1369 = vmatpush.bf16.msra.mxu0 %v261
    %1370 = vmatpush.bf16.msra.mxu0 %v257
    %1371 = vmatpush.bf16.msra.mxu0 %v253
    %1372 = vmatpush.bf16.msra.mxu0 %v249
    %1373 = vmatpush.bf16.msra.mxu0 %v245
    %1374 = vmatpush.bf16.msra.mxu0 %v241
    %1375 = vmatpush.bf16.msra.mxu0 %v237
    %1376 = vmatpush.bf16.msra.mxu0 %v233
    %1377 = vmatmul.bf16.gmra.mxu0 %v1338
    %v1378 = vpop.f32.mrf.mxu0
    %v1379 = vadd.f32 0.0, %v1378
    %v1380 = vpop.f32.mrf.mxu0
    %1381 = vdwg.mxu0
    %1382 = vmatpush.bf16.msra.mxu0 %v262
    %1383 = vmatpush.bf16.msra.mxu0 %v258
    %1384 = vmatpush.bf16.msra.mxu0 %v254
    %1385 = vmatpush.bf16.msra.mxu0 %v250
    %1386 = vmatpush.bf16.msra.mxu0 %v246
    %1387 = vmatpush.bf16.msra.mxu0 %v242
    %1388 = vmatpush.bf16.msra.mxu0 %v238
    %1389 = vmatpush.bf16.msra.mxu0 %v234
    %1390 = vmatmul.bf16.gmra.mxu0 %v1338
    %v1391 = vpop.f32.mrf.mxu0
    %v1392 = vadd.f32 0.0, %v1391
    %v1393 = vpop.f32.mrf.mxu0
    %1394 = vdwg.mxu0
    %1395 = vmatpush.bf16.msra.mxu0 %v471
    %1396 = vmatpush.bf16.msra.mxu0 %v467
    %1397 = vmatpush.bf16.msra.mxu0 %v463
    %1398 = vmatpush.bf16.msra.mxu0 %v459
    %1399 = vmatpush.bf16.msra.mxu0 %v455
    %1400 = vmatpush.bf16.msra.mxu0 %v451
    %1401 = vmatpush.bf16.msra.mxu0 %v447
    %1402 = vmatpush.bf16.msra.mxu0 %v443
    %1403 = vmatmul.bf16.gmra.mxu0 %v1342
    %v1404 = vpop.f32.mrf.mxu0
    %v1405 = vadd.f32 %v1353, %v1404
    %v1406 = vpop.f32.mrf.mxu0
    %1407 = vdwg.mxu0
    %1408 = vmatpush.bf16.msra.mxu0 %v472
    %1409 = vmatpush.bf16.msra.mxu0 %v468
    %1410 = vmatpush.bf16.msra.mxu0 %v464
    %1411 = vmatpush.bf16.msra.mxu0 %v460
    %1412 = vmatpush.bf16.msra.mxu0 %v456
    %1413 = vmatpush.bf16.msra.mxu0 %v452
    %1414 = vmatpush.bf16.msra.mxu0 %v448
    %1415 = vmatpush.bf16.msra.mxu0 %v444
    %1416 = vmatmul.bf16.gmra.mxu0 %v1342
    %v1417 = vpop.f32.mrf.mxu0
    %v1418 = vadd.f32 %v1366, %v1417
    %v1419 = vpop.f32.mrf.mxu0
    %1420 = vdwg.mxu0
    %1421 = vmatpush.bf16.msra.mxu0 %v473
    %1422 = vmatpush.bf16.msra.mxu0 %v469
    %1423 = vmatpush.bf16.msra.mxu0 %v465
    %1424 = vmatpush.bf16.msra.mxu0 %v461
    %1425 = vmatpush.bf16.msra.mxu0 %v457
    %1426 = vmatpush.bf16.msra.mxu0 %v453
    %1427 = vmatpush.bf16.msra.mxu0 %v449
    %1428 = vmatpush.bf16.msra.mxu0 %v445
    %1429 = vmatmul.bf16.gmra.mxu0 %v1342
    %v1430 = vpop.f32.mrf.mxu0
    %v1431 = vadd.f32 %v1379, %v1430
    %v1432 = vpop.f32.mrf.mxu0
    %1433 = vdwg.mxu0
    %1434 = vmatpush.bf16.msra.mxu0 %v474
    %1435 = vmatpush.bf16.msra.mxu0 %v470
    %1436 = vmatpush.bf16.msra.mxu0 %v466
    %1437 = vmatpush.bf16.msra.mxu0 %v462
    %1438 = vmatpush.bf16.msra.mxu0 %v458
    %1439 = vmatpush.bf16.msra.mxu0 %v454
    %1440 = vmatpush.bf16.msra.mxu0 %v450
    %1441 = vmatpush.bf16.msra.mxu0 %v446
    %1442 = vmatmul.bf16.gmra.mxu0 %v1342
    %v1443 = vpop.f32.mrf.mxu0
    %v1444 = vadd.f32 %v1392, %v1443
    %v1445 = vpop.f32.mrf.mxu0
    %1446 = vdwg.mxu0
    %v1447 = vadd.f32 %v1405, %v560
    %v1448 = vadd.f32 %v1418, %v561
    %v1449 = vadd.f32 %v1431, %v562
    %v1450 = vadd.f32 %v1444, %v563
    %v1451 = vxor.u32 %v1447, 2147483648
    %v1452 = vmul.f32 %v1451, 1.442695
    %v1453 = vpow.pop %v1452
    %v1454 = vadd.f32 %v1453, 1.0
    %v1455 = vrcp.pop %v1454
    %v1456 = vmul.f32 %v1454, %v1455
    %v1457 = vsub.f32 1.0, %v1456
    %v1458 = vmul.f32 %v1455, %v1457
    %v1459 = vadd.f32 %v1455, %v1458
    %vm1460 = vweird.f32 %v1454
    %vm1461 = vweird.f32 %v1455
    %vm1462 = vmor %vm1460, %vm1461
    %v1463 = vsel %vm1462, %v1455, %v1459
    %v1464 = vand.u32 2147483647, %v1454
    %vm1465 = vcmp.eq.f32.partialorder %v1464, 8.507059e+37
    %v1466 = vand.u32 %v1454, 2147483648
    %v1467 = vor.u32 1.1754944e-38, %v1466
    %v1468 = vsel %vm1465, %v1467, %v1463
    %v1469 = vmul.f32 1.0, %v1468
    %v1470 = vxor.u32 %v1448, 2147483648
    %v1471 = vmul.f32 %v1470, 1.442695
    %v1472 = vpow.pop %v1471
    %v1473 = vadd.f32 %v1472, 1.0
    %v1474 = vrcp.pop %v1473
    %v1475 = vmul.f32 %v1473, %v1474
    %v1476 = vsub.f32 1.0, %v1475
    %v1477 = vmul.f32 %v1474, %v1476
    %v1478 = vadd.f32 %v1474, %v1477
    %vm1479 = vweird.f32 %v1473
    %vm1480 = vweird.f32 %v1474
    %vm1481 = vmor %vm1479, %vm1480
    %v1482 = vsel %vm1481, %v1474, %v1478
    %v1483 = vand.u32 2147483647, %v1473
    %vm1484 = vcmp.eq.f32.partialorder %v1483, 8.507059e+37
    %v1485 = vand.u32 %v1473, 2147483648
    %v1486 = vor.u32 1.1754944e-38, %v1485
    %v1487 = vsel %vm1484, %v1486, %v1482
    %v1488 = vmul.f32 1.0, %v1487
    %v1489 = vtanh.pop %v1449
    %v1490 = vxor.u32 %v1450, 2147483648
    %v1491 = vmul.f32 %v1490, 1.442695
    %v1492 = vpow.pop %v1491
    %v1493 = vadd.f32 %v1492, 1.0
    %v1494 = vrcp.pop %v1493
    %v1495 = vmul.f32 %v1493, %v1494
    %v1496 = vsub.f32 1.0, %v1495
    %v1497 = vmul.f32 %v1494, %v1496
    %v1498 = vadd.f32 %v1494, %v1497
    %vm1499 = vweird.f32 %v1493
    %vm1500 = vweird.f32 %v1494
    %vm1501 = vmor %vm1499, %vm1500
    %v1502 = vsel %vm1501, %v1494, %v1498
    %v1503 = vand.u32 2147483647, %v1493
    %vm1504 = vcmp.eq.f32.partialorder %v1503, 8.507059e+37
    %v1505 = vand.u32 %v1493, 2147483648
    %v1506 = vor.u32 1.1754944e-38, %v1505
    %v1507 = vsel %vm1504, %v1506, %v1502
    %v1508 = vmul.f32 1.0, %v1507
    %v1509 = vmul.f32 %v1488, %v1335
    %v1510 = vmul.f32 %v1469, %v1489
    %v1511 = vadd.f32 %v1509, %v1510
    %v1512 = vtanh.pop %v1511
    %v1513 = vmul.f32 %v1508, %v1512
    %v1514 = vpack.c.bf16 %v1513, %v1513
    %s1515 = scalar_lea.vmem %s6, 20
    %1516 = vst [vmem:[%s1515] sm:$0xf] %v1514
    %s1517 = scalar_lea.vmem %s0, 24
    %v1518 = vld [vmem:[%s1517] sm:$0xf]
    %1519 = vmatpush.bf16.msra.mxu0 %v259
    %1520 = vmatpush.bf16.msra.mxu0 %v255
    %1521 = vmatpush.bf16.msra.mxu0 %v251
    %1522 = vmatpush.bf16.msra.mxu0 %v247
    %1523 = vmatpush.bf16.msra.mxu0 %v243
    %1524 = vmatpush.bf16.msra.mxu0 %v239
    %1525 = vmatpush.bf16.msra.mxu0 %v235
    %1526 = vmatpush.bf16.msra.mxu0 %v231
    %1527 = vmatmul.bf16.gmra.mxu0 %v1514
    %v1528 = vpop.f32.mrf.mxu0
    %v1529 = vadd.f32 0.0, %v1528
    %v1530 = vpop.f32.mrf.mxu0
    %1531 = vdwg.mxu0
    %1532 = vmatpush.bf16.msra.mxu0 %v260
    %1533 = vmatpush.bf16.msra.mxu0 %v256
    %1534 = vmatpush.bf16.msra.mxu0 %v252
    %1535 = vmatpush.bf16.msra.mxu0 %v248
    %1536 = vmatpush.bf16.msra.mxu0 %v244
    %1537 = vmatpush.bf16.msra.mxu0 %v240
    %1538 = vmatpush.bf16.msra.mxu0 %v236
    %1539 = vmatpush.bf16.msra.mxu0 %v232
    %1540 = vmatmul.bf16.gmra.mxu0 %v1514
    %v1541 = vpop.f32.mrf.mxu0
    %v1542 = vadd.f32 0.0, %v1541
    %v1543 = vpop.f32.mrf.mxu0
    %1544 = vdwg.mxu0
    %1545 = vmatpush.bf16.msra.mxu0 %v261
    %1546 = vmatpush.bf16.msra.mxu0 %v257
    %1547 = vmatpush.bf16.msra.mxu0 %v253
    %1548 = vmatpush.bf16.msra.mxu0 %v249
    %1549 = vmatpush.bf16.msra.mxu0 %v245
    %1550 = vmatpush.bf16.msra.mxu0 %v241
    %1551 = vmatpush.bf16.msra.mxu0 %v237
    %1552 = vmatpush.bf16.msra.mxu0 %v233
    %1553 = vmatmul.bf16.gmra.mxu0 %v1514
    %v1554 = vpop.f32.mrf.mxu0
    %v1555 = vadd.f32 0.0, %v1554
    %v1556 = vpop.f32.mrf.mxu0
    %1557 = vdwg.mxu0
    %1558 = vmatpush.bf16.msra.mxu0 %v262
    %1559 = vmatpush.bf16.msra.mxu0 %v258
    %1560 = vmatpush.bf16.msra.mxu0 %v254
    %1561 = vmatpush.bf16.msra.mxu0 %v250
    %1562 = vmatpush.bf16.msra.mxu0 %v246
    %1563 = vmatpush.bf16.msra.mxu0 %v242
    %1564 = vmatpush.bf16.msra.mxu0 %v238
    %1565 = vmatpush.bf16.msra.mxu0 %v234
    %1566 = vmatmul.bf16.gmra.mxu0 %v1514
    %v1567 = vpop.f32.mrf.mxu0
    %v1568 = vadd.f32 0.0, %v1567
    %v1569 = vpop.f32.mrf.mxu0
    %1570 = vdwg.mxu0
    %1571 = vmatpush.bf16.msra.mxu0 %v471
    %1572 = vmatpush.bf16.msra.mxu0 %v467
    %1573 = vmatpush.bf16.msra.mxu0 %v463
    %1574 = vmatpush.bf16.msra.mxu0 %v459
    %1575 = vmatpush.bf16.msra.mxu0 %v455
    %1576 = vmatpush.bf16.msra.mxu0 %v451
    %1577 = vmatpush.bf16.msra.mxu0 %v447
    %1578 = vmatpush.bf16.msra.mxu0 %v443
    %1579 = vmatmul.bf16.gmra.mxu0 %v1518
    %v1580 = vpop.f32.mrf.mxu0
    %v1581 = vadd.f32 %v1529, %v1580
    %v1582 = vpop.f32.mrf.mxu0
    %1583 = vdwg.mxu0
    %1584 = vmatpush.bf16.msra.mxu0 %v472
    %1585 = vmatpush.bf16.msra.mxu0 %v468
    %1586 = vmatpush.bf16.msra.mxu0 %v464
    %1587 = vmatpush.bf16.msra.mxu0 %v460
    %1588 = vmatpush.bf16.msra.mxu0 %v456
    %1589 = vmatpush.bf16.msra.mxu0 %v452
    %1590 = vmatpush.bf16.msra.mxu0 %v448
    %1591 = vmatpush.bf16.msra.mxu0 %v444
    %1592 = vmatmul.bf16.gmra.mxu0 %v1518
    %v1593 = vpop.f32.mrf.mxu0
    %v1594 = vadd.f32 %v1542, %v1593
    %v1595 = vpop.f32.mrf.mxu0
    %1596 = vdwg.mxu0
    %1597 = vmatpush.bf16.msra.mxu0 %v473
    %1598 = vmatpush.bf16.msra.mxu0 %v469
    %1599 = vmatpush.bf16.msra.mxu0 %v465
    %1600 = vmatpush.bf16.msra.mxu0 %v461
    %1601 = vmatpush.bf16.msra.mxu0 %v457
    %1602 = vmatpush.bf16.msra.mxu0 %v453
    %1603 = vmatpush.bf16.msra.mxu0 %v449
    %1604 = vmatpush.bf16.msra.mxu0 %v445
    %1605 = vmatmul.bf16.gmra.mxu0 %v1518
    %v1606 = vpop.f32.mrf.mxu0
    %v1607 = vadd.f32 %v1555, %v1606
    %v1608 = vpop.f32.mrf.mxu0
    %1609 = vdwg.mxu0
    %1610 = vmatpush.bf16.msra.mxu0 %v474
    %1611 = vmatpush.bf16.msra.mxu0 %v470
    %1612 = vmatpush.bf16.msra.mxu0 %v466
    %1613 = vmatpush.bf16.msra.mxu0 %v462
    %1614 = vmatpush.bf16.msra.mxu0 %v458
    %1615 = vmatpush.bf16.msra.mxu0 %v454
    %1616 = vmatpush.bf16.msra.mxu0 %v450
    %1617 = vmatpush.bf16.msra.mxu0 %v446
    %1618 = vmatmul.bf16.gmra.mxu0 %v1518
    %v1619 = vpop.f32.mrf.mxu0
    %v1620 = vadd.f32 %v1568, %v1619
    %v1621 = vpop.f32.mrf.mxu0
    %1622 = vdwg.mxu0
    %v1623 = vadd.f32 %v1581, %v560
    %v1624 = vadd.f32 %v1594, %v561
    %v1625 = vadd.f32 %v1607, %v562
    %v1626 = vadd.f32 %v1620, %v563
    %v1627 = vxor.u32 %v1623, 2147483648
    %v1628 = vmul.f32 %v1627, 1.442695
    %v1629 = vpow.pop %v1628
    %v1630 = vadd.f32 %v1629, 1.0
    %v1631 = vrcp.pop %v1630
    %v1632 = vmul.f32 %v1630, %v1631
    %v1633 = vsub.f32 1.0, %v1632
    %v1634 = vmul.f32 %v1631, %v1633
    %v1635 = vadd.f32 %v1631, %v1634
    %vm1636 = vweird.f32 %v1630
    %vm1637 = vweird.f32 %v1631
    %vm1638 = vmor %vm1636, %vm1637
    %v1639 = vsel %vm1638, %v1631, %v1635
    %v1640 = vand.u32 2147483647, %v1630
    %vm1641 = vcmp.eq.f32.partialorder %v1640, 8.507059e+37
    %v1642 = vand.u32 %v1630, 2147483648
    %v1643 = vor.u32 1.1754944e-38, %v1642
    %v1644 = vsel %vm1641, %v1643, %v1639
    %v1645 = vmul.f32 1.0, %v1644
    %v1646 = vxor.u32 %v1624, 2147483648
    %v1647 = vmul.f32 %v1646, 1.442695
    %v1648 = vpow.pop %v1647
    %v1649 = vadd.f32 %v1648, 1.0
    %v1650 = vrcp.pop %v1649
    %v1651 = vmul.f32 %v1649, %v1650
    %v1652 = vsub.f32 1.0, %v1651
    %v1653 = vmul.f32 %v1650, %v1652
    %v1654 = vadd.f32 %v1650, %v1653
    %vm1655 = vweird.f32 %v1649
    %vm1656 = vweird.f32 %v1650
    %vm1657 = vmor %vm1655, %vm1656
    %v1658 = vsel %vm1657, %v1650, %v1654
    %v1659 = vand.u32 2147483647, %v1649
    %vm1660 = vcmp.eq.f32.partialorder %v1659, 8.507059e+37
    %v1661 = vand.u32 %v1649, 2147483648
    %v1662 = vor.u32 1.1754944e-38, %v1661
    %v1663 = vsel %vm1660, %v1662, %v1658
    %v1664 = vmul.f32 1.0, %v1663
    %v1665 = vtanh.pop %v1625
    %v1666 = vxor.u32 %v1626, 2147483648
    %v1667 = vmul.f32 %v1666, 1.442695
    %v1668 = vpow.pop %v1667
    %v1669 = vadd.f32 %v1668, 1.0
    %v1670 = vrcp.pop %v1669
    %v1671 = vmul.f32 %v1669, %v1670
    %v1672 = vsub.f32 1.0, %v1671
    %v1673 = vmul.f32 %v1670, %v1672
    %v1674 = vadd.f32 %v1670, %v1673
    %vm1675 = vweird.f32 %v1669
    %vm1676 = vweird.f32 %v1670
    %vm1677 = vmor %vm1675, %vm1676
    %v1678 = vsel %vm1677, %v1670, %v1674
    %v1679 = vand.u32 2147483647, %v1669
    %vm1680 = vcmp.eq.f32.partialorder %v1679, 8.507059e+37
    %v1681 = vand.u32 %v1669, 2147483648
    %v1682 = vor.u32 1.1754944e-38, %v1681
    %v1683 = vsel %vm1680, %v1682, %v1678
    %v1684 = vmul.f32 1.0, %v1683
    %v1685 = vmul.f32 %v1664, %v1511
    %v1686 = vmul.f32 %v1645, %v1665
    %v1687 = vadd.f32 %v1685, %v1686
    %v1688 = vtanh.pop %v1687
    %v1689 = vmul.f32 %v1684, %v1688
    %v1690 = vpack.c.bf16 %v1689, %v1689
    %s1691 = scalar_lea.vmem %s6, 24
    %1692 = vst [vmem:[%s1691] sm:$0xf] %v1690
    %s1693 = scalar_lea.vmem %s0, 28
    %v1694 = vld [vmem:[%s1693] sm:$0xf]
    %1695 = vmatpush.bf16.msra.mxu0 %v259
    %1696 = vmatpush.bf16.msra.mxu0 %v255
    %1697 = vmatpush.bf16.msra.mxu0 %v251
    %1698 = vmatpush.bf16.msra.mxu0 %v247
    %1699 = vmatpush.bf16.msra.mxu0 %v243
    %1700 = vmatpush.bf16.msra.mxu0 %v239
    %1701 = vmatpush.bf16.msra.mxu0 %v235
    %1702 = vmatpush.bf16.msra.mxu0 %v231
    %1703 = vmatmul.bf16.gmra.mxu0 %v1690
    %v1704 = vpop.f32.mrf.mxu0
    %v1705 = vadd.f32 0.0, %v1704
    %v1706 = vpop.f32.mrf.mxu0
    %1707 = vdwg.mxu0
    %1708 = vmatpush.bf16.msra.mxu0 %v260
    %1709 = vmatpush.bf16.msra.mxu0 %v256
    %1710 = vmatpush.bf16.msra.mxu0 %v252
    %1711 = vmatpush.bf16.msra.mxu0 %v248
    %1712 = vmatpush.bf16.msra.mxu0 %v244
    %1713 = vmatpush.bf16.msra.mxu0 %v240
    %1714 = vmatpush.bf16.msra.mxu0 %v236
    %1715 = vmatpush.bf16.msra.mxu0 %v232
    %1716 = vmatmul.bf16.gmra.mxu0 %v1690
    %v1717 = vpop.f32.mrf.mxu0
    %v1718 = vadd.f32 0.0, %v1717
    %v1719 = vpop.f32.mrf.mxu0
    %1720 = vdwg.mxu0
    %1721 = vmatpush.bf16.msra.mxu0 %v261
    %1722 = vmatpush.bf16.msra.mxu0 %v257
    %1723 = vmatpush.bf16.msra.mxu0 %v253
    %1724 = vmatpush.bf16.msra.mxu0 %v249
    %1725 = vmatpush.bf16.msra.mxu0 %v245
    %1726 = vmatpush.bf16.msra.mxu0 %v241
    %1727 = vmatpush.bf16.msra.mxu0 %v237
    %1728 = vmatpush.bf16.msra.mxu0 %v233
    %1729 = vmatmul.bf16.gmra.mxu0 %v1690
    %v1730 = vpop.f32.mrf.mxu0
    %v1731 = vadd.f32 0.0, %v1730
    %v1732 = vpop.f32.mrf.mxu0
    %1733 = vdwg.mxu0
    %1734 = vmatpush.bf16.msra.mxu0 %v262
    %1735 = vmatpush.bf16.msra.mxu0 %v258
    %1736 = vmatpush.bf16.msra.mxu0 %v254
    %1737 = vmatpush.bf16.msra.mxu0 %v250
    %1738 = vmatpush.bf16.msra.mxu0 %v246
    %1739 = vmatpush.bf16.msra.mxu0 %v242
    %1740 = vmatpush.bf16.msra.mxu0 %v238
    %1741 = vmatpush.bf16.msra.mxu0 %v234
    %1742 = vmatmul.bf16.gmra.mxu0 %v1690
    %v1743 = vpop.f32.mrf.mxu0
    %v1744 = vadd.f32 0.0, %v1743
    %v1745 = vpop.f32.mrf.mxu0
    %1746 = vdwg.mxu0
    %1747 = vmatpush.bf16.msra.mxu0 %v471
    %1748 = vmatpush.bf16.msra.mxu0 %v467
    %1749 = vmatpush.bf16.msra.mxu0 %v463
    %1750 = vmatpush.bf16.msra.mxu0 %v459
    %1751 = vmatpush.bf16.msra.mxu0 %v455
    %1752 = vmatpush.bf16.msra.mxu0 %v451
    %1753 = vmatpush.bf16.msra.mxu0 %v447
    %1754 = vmatpush.bf16.msra.mxu0 %v443
    %1755 = vmatmul.bf16.gmra.mxu0 %v1694
    %v1756 = vpop.f32.mrf.mxu0
    %v1757 = vadd.f32 %v1705, %v1756
    %v1758 = vpop.f32.mrf.mxu0
    %1759 = vdwg.mxu0
    %1760 = vmatpush.bf16.msra.mxu0 %v472
    %1761 = vmatpush.bf16.msra.mxu0 %v468
    %1762 = vmatpush.bf16.msra.mxu0 %v464
    %1763 = vmatpush.bf16.msra.mxu0 %v460
    %1764 = vmatpush.bf16.msra.mxu0 %v456
    %1765 = vmatpush.bf16.msra.mxu0 %v452
    %1766 = vmatpush.bf16.msra.mxu0 %v448
    %1767 = vmatpush.bf16.msra.mxu0 %v444
    %1768 = vmatmul.bf16.gmra.mxu0 %v1694
    %v1769 = vpop.f32.mrf.mxu0
    %v1770 = vadd.f32 %v1718, %v1769
    %v1771 = vpop.f32.mrf.mxu0
    %1772 = vdwg.mxu0
    %1773 = vmatpush.bf16.msra.mxu0 %v473
    %1774 = vmatpush.bf16.msra.mxu0 %v469
    %1775 = vmatpush.bf16.msra.mxu0 %v465
    %1776 = vmatpush.bf16.msra.mxu0 %v461
    %1777 = vmatpush.bf16.msra.mxu0 %v457
    %1778 = vmatpush.bf16.msra.mxu0 %v453
    %1779 = vmatpush.bf16.msra.mxu0 %v449
    %1780 = vmatpush.bf16.msra.mxu0 %v445
    %1781 = vmatmul.bf16.gmra.mxu0 %v1694
    %v1782 = vpop.f32.mrf.mxu0
    %v1783 = vadd.f32 %v1731, %v1782
    %v1784 = vpop.f32.mrf.mxu0
    %1785 = vdwg.mxu0
    %1786 = vmatpush.bf16.msra.mxu0 %v474
    %1787 = vmatpush.bf16.msra.mxu0 %v470
    %1788 = vmatpush.bf16.msra.mxu0 %v466
    %1789 = vmatpush.bf16.msra.mxu0 %v462
    %1790 = vmatpush.bf16.msra.mxu0 %v458
    %1791 = vmatpush.bf16.msra.mxu0 %v454
    %1792 = vmatpush.bf16.msra.mxu0 %v450
    %1793 = vmatpush.bf16.msra.mxu0 %v446
    %1794 = vmatmul.bf16.gmra.mxu0 %v1694
    %v1795 = vpop.f32.mrf.mxu0
    %v1796 = vadd.f32 %v1744, %v1795
    %v1797 = vpop.f32.mrf.mxu0
    %1798 = vdwg.mxu0
    %v1799 = vadd.f32 %v1757, %v560
    %v1800 = vadd.f32 %v1770, %v561
    %v1801 = vadd.f32 %v1783, %v562
    %v1802 = vadd.f32 %v1796, %v563
    %v1803 = vxor.u32 %v1799, 2147483648
    %v1804 = vmul.f32 %v1803, 1.442695
    %v1805 = vpow.pop %v1804
    %v1806 = vadd.f32 %v1805, 1.0
    %v1807 = vrcp.pop %v1806
    %v1808 = vmul.f32 %v1806, %v1807
    %v1809 = vsub.f32 1.0, %v1808
    %v1810 = vmul.f32 %v1807, %v1809
    %v1811 = vadd.f32 %v1807, %v1810
    %vm1812 = vweird.f32 %v1806
    %vm1813 = vweird.f32 %v1807
    %vm1814 = vmor %vm1812, %vm1813
    %v1815 = vsel %vm1814, %v1807, %v1811
    %v1816 = vand.u32 2147483647, %v1806
    %vm1817 = vcmp.eq.f32.partialorder %v1816, 8.507059e+37
    %v1818 = vand.u32 %v1806, 2147483648
    %v1819 = vor.u32 1.1754944e-38, %v1818
    %v1820 = vsel %vm1817, %v1819, %v1815
    %v1821 = vmul.f32 1.0, %v1820
    %v1822 = vxor.u32 %v1800, 2147483648
    %v1823 = vmul.f32 %v1822, 1.442695
    %v1824 = vpow.pop %v1823
    %v1825 = vadd.f32 %v1824, 1.0
    %v1826 = vrcp.pop %v1825
    %v1827 = vmul.f32 %v1825, %v1826
    %v1828 = vsub.f32 1.0, %v1827
    %v1829 = vmul.f32 %v1826, %v1828
    %v1830 = vadd.f32 %v1826, %v1829
    %vm1831 = vweird.f32 %v1825
    %vm1832 = vweird.f32 %v1826
    %vm1833 = vmor %vm1831, %vm1832
    %v1834 = vsel %vm1833, %v1826, %v1830
    %v1835 = vand.u32 2147483647, %v1825
    %vm1836 = vcmp.eq.f32.partialorder %v1835, 8.507059e+37
    %v1837 = vand.u32 %v1825, 2147483648
    %v1838 = vor.u32 1.1754944e-38, %v1837
    %v1839 = vsel %vm1836, %v1838, %v1834
    %v1840 = vmul.f32 1.0, %v1839
    %v1841 = vtanh.pop %v1801
    %v1842 = vxor.u32 %v1802, 2147483648
    %v1843 = vmul.f32 %v1842, 1.442695
    %v1844 = vpow.pop %v1843
    %v1845 = vadd.f32 %v1844, 1.0
    %v1846 = vrcp.pop %v1845
    %v1847 = vmul.f32 %v1845, %v1846
    %v1848 = vsub.f32 1.0, %v1847
    %v1849 = vmul.f32 %v1846, %v1848
    %v1850 = vadd.f32 %v1846, %v1849
    %vm1851 = vweird.f32 %v1845
    %vm1852 = vweird.f32 %v1846
    %vm1853 = vmor %vm1851, %vm1852
    %v1854 = vsel %vm1853, %v1846, %v1850
    %v1855 = vand.u32 2147483647, %v1845
    %vm1856 = vcmp.eq.f32.partialorder %v1855, 8.507059e+37
    %v1857 = vand.u32 %v1845, 2147483648
    %v1858 = vor.u32 1.1754944e-38, %v1857
    %v1859 = vsel %vm1856, %v1858, %v1854
    %v1860 = vmul.f32 1.0, %v1859
    %v1861 = vmul.f32 %v1840, %v1687
    %v1862 = vmul.f32 %v1821, %v1841
    %v1863 = vadd.f32 %v1861, %v1862
    %v1864 = vtanh.pop %v1863
    %v1865 = vmul.f32 %v1860, %v1864
    %v1866 = vpack.c.bf16 %v1865, %v1865
    %s1867 = scalar_lea.vmem %s6, 28
    %1868 = vst [vmem:[%s1867] sm:$0xf] %v1866
    %p1869 = scmp.lt.s32.totalorder 0, 0
    // Predicated region
    $region38: #{rnn_model_forward.4} parent=1 // pred_check
      %p1870 = pneg %p1869
    $region39: #{rnn_model_forward.4} parent=1 // pred_check_branch
      %1872 = sbr.rel (%p1870) target = $region41
    $region40: #{rnn_model_forward.4} parent=1 // pred_region
      %1873 = vst [vmem:[#allocation2] sm:$0xff] %v1865
      %1874 = vst [vmem:[#allocation3] sm:$0xff] %v1863
    $region41: #{rnn_model_forward.4} parent=1 // pred_fallthru
      _
    // Predicated region
    $region42: #{rnn_model_forward.4} parent=1 // pred_check
      %p1875 = pneg %p58
    $region43: #{rnn_model_forward.4} parent=1 // pred_check_branch
      %1877 = sbr.rel (%p1875) target = $region45
    $region44: #{rnn_model_forward.4} parent=1 // pred_region
      %1878 = vst [vmem:[%s7] sm:$0xff] %v1865
      %1879 = vst [vmem:[%s8] sm:$0xff] %v1863
    $region45: #{rnn_model_forward.4} parent=1 // pred_fallthru
      _
    // Predicated region
    $region46: #{rnn_model_forward.4} parent=1 // pred_check
      _
    $region47: #{rnn_model_forward.4} parent=1 // pred_check_branch
      %1881 = sbr.rel (0) target = $region49
    $region48: #{rnn_model_forward.4} parent=1 // pred_region
      _
    $region49: #{rnn_model_forward.4} parent=1 // pred_fallthru
      _
    // Predicated region
    $region50: #{rnn_model_forward.4} parent=1 // pred_check
      _
    $region51: #{rnn_model_forward.4} parent=1 // pred_check_branch
      %1883 = sbr.rel (0) target = $region53
    $region52: #{rnn_model_forward.4} parent=1 // pred_region
      _
    $region53: #{rnn_model_forward.4} parent=1 // pred_fallthru
      _
    // Predicated region
    $region54: #{rnn_model_forward.4} parent=1 // pred_check
      _
    $region55: #{rnn_model_forward.4} parent=1 // pred_check_branch
      %1885 = sbr.rel (0) target = $region57
    $region56: #{rnn_model_forward.4} parent=1 // pred_region
      _
    $region57: #{rnn_model_forward.4} parent=1 // pred_fallthru
      _
    // Predicated region
    $region58: #{rnn_model_forward.4} parent=1 // pred_check
      _
    $region59: #{rnn_model_forward.4} parent=1 // pred_check_branch
      %1887 = sbr.rel (0) target = $region61
    $region60: #{rnn_model_forward.4} parent=1 // pred_region
      _
    $region61: #{rnn_model_forward.4} parent=1 // pred_fallthru
      _
    // Predicated region
    $region62: #{rnn_model_forward.4} parent=1 // pred_check
      _
    $region63: #{rnn_model_forward.4} parent=1 // pred_check_branch
      %1889 = sbr.rel (0) target = $region65
    $region64: #{rnn_model_forward.4} parent=1 // pred_region
      _
    $region65: #{rnn_model_forward.4} parent=1 // pred_fallthru
      _
    // Predicated region
    $region66: #{rnn_model_forward.4} parent=1 // pred_check
      _
    $region67: #{rnn_model_forward.4} parent=1 // pred_check_branch
      %1891 = sbr.rel (0) target = $region69
    $region68: #{rnn_model_forward.4} parent=1 // pred_region
      _
    $region69: #{rnn_model_forward.4} parent=1 // pred_fallthru
      _
    %1892 = vsyncpa [#allocation5], 1
    %1893 = vsyncpa [#allocation7], 1

</llo_original>
